<compile_context>
chip_gen: v6e
topology: v6e:2x2x1
jax: 0.10.0
libtpu: 0.0.40
codegen_flags: <defaults>
</compile_context>

<pallas_src>
import math
import jax
import jax.numpy as jnp
from jax.experimental import pallas as pl
from jax.experimental.pallas import tpu as pltpu

# ---------------- configuration (matches the PyTorch module defaults) -------
INPUT_CHANNELS = 4          # pse_input_dim
NUM_TIMESTEPS = 8           # T  (positional-encoding max_len = T + 1)
PSE_MLP1_DIMS = [32, 64]
PSE_MLP2_DIMS = [128]
PSE_OUTPUT_DIM = PSE_MLP2_DIMS[-1]        # 128
D_MODEL = PSE_OUTPUT_DIM                  # 128
NHEAD = 4
HEAD_DIM = D_MODEL // NHEAD               # 32
NUM_LAYERS = 4
DIM_FF = PSE_OUTPUT_DIM * 4               # 512
CLASSIFIER_HIDDEN = 64
NUM_CLASSES = 10
HEAD_PAD = 128                            # pad logits to a full lane tile
BN_EPS = 1e-5
LN_EPS = 1e-5
NEG_INF = -1e9                            # additive mask for cross-batch attn

_BF16 = jnp.bfloat16
_F32 = jnp.float32


# ---------------------------- fused Pallas kernel ----------------------------
def _layernorm(x, gamma, beta):
    mu = jnp.mean(x, axis=-1, keepdims=True)
    d = x - mu
    var = jnp.mean(d * d, axis=-1, keepdims=True)
    return d * jax.lax.rsqrt(var + LN_EPS) * gamma + beta


def fused_kernel(
        # pixel-set encoder (BN folded into w1/b1, W3 split for mean/std)
        x_ref, w1_ref, b1_ref, w2_ref, b2_ref, w3m_ref, w3s_ref, b3_ref,
        # sequence assembly (per-batch cls+pe[0] rows, flattened per-token pe)
        prefix_ref, posr_ref,
        # block-diagonal additive attention mask (0 same batch / -1e9 cross)
        amask_ref,
        # transformer layer weights (per-layer blocks, QKV fused,
        # 1/sqrt(head_dim) folded into the Q columns)
        wqkv_ref, bqkv_ref, wo_ref, bo_ref, g1_ref, be1_ref,
        wf1_ref, bf1_ref, wf2_ref, bf2_ref, g2_ref, be2_ref,
        # classifier head (output padded to HEAD_PAD lanes)
        wh1_ref, bh1_ref, wh2_ref, bh2_ref,
        # output + flat sequence carry scratch
        out_ref, xbuf):
    layer = pl.program_id(0)
    last = pl.num_programs(0) - 1
    Lf, D = xbuf.shape                  # flat tokens: B*T real + B cls (last)
    B = prefix_ref.shape[0]
    BT = Lf - B                         # number of real tokens

    # ---- grid step 0: PSE + flat sequence assembly ---------------------------
    # (cls tokens go LAST; the encoder is permutation equivariant, the mask
    #  keeps batches separated -> identical logits, tile-aligned stores)
    @pl.when(layer == 0)
    def _():
        s_pix = x_ref.shape[0] // BT
        xp = x_ref[...].astype(_BF16)                        # (B*T*S, C)
        h = jnp.dot(xp, w1_ref[...],
                    preferred_element_type=_F32) + b1_ref[...]
        h = jnp.maximum(h, 0.0)
        h = jnp.dot(h.astype(_BF16), w2_ref[...],
                    preferred_element_type=_F32) + b2_ref[...]   # (B*T*S, 64)
        h3 = h.reshape(BT, s_pix, h.shape[-1])               # (B*T, S, 64)
        mean = jnp.mean(h3, axis=1)                          # (B*T, 64)
        diff = h3 - mean[:, None, :]
        std = jnp.sqrt(jnp.sum(diff * diff, axis=1) * (1.0 / (s_pix - 1)))
        pse = (jnp.dot(mean.astype(_BF16), w3m_ref[...],
                       preferred_element_type=_F32)
               + jnp.dot(std.astype(_BF16), w3s_ref[...],
                         preferred_element_type=_F32)
               + b3_ref[...])                                # (B*T, D) f32
        xbuf[0:BT, :] = pse + posr_ref[...]                  # tile-aligned
        xbuf[BT:Lf, :] = prefix_ref[...]                     # cls rows at end

    # ---- one post-norm TransformerEncoderLayer per grid step ----------------
    x = xbuf[...]                                            # (Lf, D) f32
    xb = x.astype(_BF16)
    # fused QKV projection: single (Lf,128)@(128,384) push
    qkv = jnp.dot(xb, wqkv_ref[0],
                  preferred_element_type=_F32) + bqkv_ref[0]  # (Lf, 3D)
    mask = amask_ref[...]                                     # (Lf, Lf)
    ctx_heads = []
    for hh in range(NHEAD):
        q = qkv[:, hh * HEAD_DIM:(hh + 1) * HEAD_DIM]
        k = qkv[:, D + hh * HEAD_DIM:D + (hh + 1) * HEAD_DIM]
        v = qkv[:, 2 * D + hh * HEAD_DIM:2 * D + (hh + 1) * HEAD_DIM]
        # scores for the whole flat sequence + block-diagonal batch mask
        s = jax.lax.dot_general(q.astype(_BF16), k.astype(_BF16),
                                (((1,), (1,)), ((), ())),
                                preferred_element_type=_F32) + mask
        s = s - jnp.max(s, axis=-1, keepdims=True)
        e = jnp.exp(s)
        # approx reciprocal: EUP slot, ~1e-3 rel err -- fine for inference
        p = e * pl.reciprocal(jnp.sum(e, axis=-1, keepdims=True), approx=True)
        ctx_heads.append(jnp.dot(p.astype(_BF16), v.astype(_BF16),
                                 preferred_element_type=_F32))  # (Lf, HD)
    ctx = jnp.concatenate(ctx_heads, axis=-1)                 # (Lf, D)
    # single fused out-projection (K = 128)
    attn = jnp.dot(ctx.astype(_BF16), wo_ref[0],
                   preferred_element_type=_F32) + bo_ref[0]
    y = _layernorm(x + attn, g1_ref[0], be1_ref[0])

    h1 = jnp.maximum(jnp.dot(y.astype(_BF16), wf1_ref[0],
                             preferred_element_type=_F32) + bf1_ref[0], 0.0)
    ff = jnp.dot(h1.astype(_BF16), wf2_ref[0],
                 preferred_element_type=_F32) + bf2_ref[0]
    z = _layernorm(y + ff, g2_ref[0], be2_ref[0])

    @pl.when(layer < last)
    def _():
        xbuf[...] = z                       # carry; skipped on the last step

    # ---- last grid step: classifier head on the cls tokens ------------------
    @pl.when(layer == last)
    def _():
        cls = z[BT:Lf, :]                                    # (B, D)
        hc = jnp.maximum(jnp.dot(cls.astype(_BF16), wh1_ref[...],
                                 preferred_element_type=_F32) + bh1_ref[...],
                         0.0)
        out_ref[...] = jnp.dot(hc.astype(_BF16), wh2_ref[...],
                               preferred_element_type=_F32) + bh2_ref[...]


# ---------------------------- wrapper ----------------------------------------
_PSE_KEYS = ['w1', 'b1', 'w2', 'b2', 'w3m', 'w3s', 'b3']
_LAYER_KEYS = ['wqkv', 'bqkv', 'wo', 'bo', 'g1', 'be1',
               'wf1', 'bf1', 'wf2', 'bf2', 'g2', 'be2']
_HEAD_KEYS = ['wh1', 'bh1', 'wh2', 'bh2']


def _const_spec(a):
    nd = a.ndim
    return pl.BlockSpec(a.shape, lambda l, nd=nd: (0,) * nd)


def _layer_spec(a):
    nd = a.ndim - 1
    return pl.BlockSpec((1,) + a.shape[1:], lambda l, nd=nd: (l,) + (0,) * nd)


def run_fused(x, prefix, posr, amask, fp):
    B = prefix.shape[0]
    Lf = amask.shape[0]
    D = posr.shape[1]
    n_layers = fp['wqkv'].shape[0]

    args, specs = [], []
    for a in [x] + [fp[k] for k in _PSE_KEYS] + [prefix, posr, amask]:
        args.append(a)
        specs.append(_const_spec(a))
    for kname in _LAYER_KEYS:                 # streamed per-layer blocks
        a = fp[kname]
        args.append(a)
        specs.append(_layer_spec(a))
    for kname in _HEAD_KEYS:
        a = fp[kname]
        args.append(a)
        specs.append(_const_spec(a))

    grid_spec = pltpu.PrefetchScalarGridSpec(
        num_scalar_prefetch=0,
        grid=(n_layers,),
        in_specs=specs,
        out_specs=pl.BlockSpec((B, HEAD_PAD), lambda l: (0, 0)),
        scratch_shapes=[pltpu.VMEM((Lf, D), jnp.float32)],
    )
    return pl.pallas_call(
        fused_kernel,
        out_shape=jax.ShapeDtypeStruct((B, HEAD_PAD), jnp.float32),
        grid_spec=grid_spec,
        compiler_params=pltpu.CompilerParams(
            dimension_semantics=("arbitrary",)),   # layer carry -> sequential
    )(*args)


# ---------------------------- parameters --------------------------------------
def _init_linear(key, fan_in, fan_out):
    k1, k2 = jax.random.split(key)
    bound = 1.0 / math.sqrt(fan_in)
    w = jax.random.uniform(k1, (fan_in, fan_out), jnp.float32, -bound, bound)
    b = jax.random.uniform(k2, (fan_out,), jnp.float32, -bound, bound)
    return w, b


def make_pe(d_model, max_len):
    position = jnp.arange(max_len, dtype=jnp.float32)[:, None]
    div_term = jnp.exp(jnp.arange(0, d_model, 2, dtype=jnp.float32) *
                       (-math.log(10000.0) / d_model))
    pe = jnp.zeros((max_len, d_model), jnp.float32)
    pe = pe.at[:, 0::2].set(jnp.sin(position * div_term))
    pe = pe.at[:, 1::2].set(jnp.cos(position * div_term))
    return pe


def init_params(key):
    """Raw (PyTorch-layout, float32) parameters."""
    keys = iter(jax.random.split(key, 40))
    w1, b1 = _init_linear(next(keys), INPUT_CHANNELS, PSE_MLP1_DIMS[0])
    w2, b2 = _init_linear(next(keys), PSE_MLP1_DIMS[0], PSE_MLP1_DIMS[1])
    w3, b3 = _init_linear(next(keys), PSE_MLP1_DIMS[1] * 2, PSE_MLP2_DIMS[0])
    pse = dict(w1=w1, b1=b1, w2=w2, b2=b2, w3=w3, b3=b3,
               bn_g=jnp.ones((PSE_MLP1_DIMS[0],), jnp.float32),
               bn_b=jnp.zeros((PSE_MLP1_DIMS[0],), jnp.float32),
               bn_m=jnp.zeros((PSE_MLP1_DIMS[0],), jnp.float32),
               bn_v=jnp.ones((PSE_MLP1_DIMS[0],), jnp.float32))

    names = ['wqkv', 'bqkv', 'wo', 'bo', 'wf1', 'bf1', 'wf2', 'bf2',
             'g1', 'be1', 'g2', 'be2']
    per = {k: [] for k in names}
    for _ in range(NUM_LAYERS):
        wqkv, bqkv = _init_linear(next(keys), D_MODEL, 3 * D_MODEL)
        wo, bo = _init_linear(next(keys), D_MODEL, D_MODEL)
        wf1, bf1 = _init_linear(next(keys), D_MODEL, DIM_FF)
        wf2, bf2 = _init_linear(next(keys), DIM_FF, D_MODEL)
        per['wqkv'].append(wqkv); per['bqkv'].append(bqkv)
        per['wo'].append(wo); per['bo'].append(bo)
        per['wf1'].append(wf1); per['bf1'].append(bf1)
        per['wf2'].append(wf2); per['bf2'].append(bf2)
        per['g1'].append(jnp.ones((D_MODEL,), jnp.float32))
        per['be1'].append(jnp.zeros((D_MODEL,), jnp.float32))
        per['g2'].append(jnp.ones((D_MODEL,), jnp.float32))
        per['be2'].append(jnp.zeros((D_MODEL,), jnp.float32))
    transformer = {k: jnp.stack(v, 0) for k, v in per.items()}

    wh1, bh1 = _init_linear(next(keys), D_MODEL, CLASSIFIER_HIDDEN)
    wh2, bh2 = _init_linear(next(keys), CLASSIFIER_HIDDEN, NUM_CLASSES)
    head = dict(wh1=wh1, bh1=bh1, wh2=wh2, bh2=bh2)
    return dict(pse=pse, transformer=transformer, head=head,
                cls_token=jnp.zeros((1, 1, D_MODEL), jnp.float32),
                pe=make_pe(D_MODEL, NUM_TIMESTEPS + 1))


def fold_params(p):
    """Kernel-ready params: fold eval BN into w1/b1, split W3 (mean/std),
    keep QKV fused with 1/sqrt(head_dim) folded into the Q columns, cast
    matmul weights to bf16, pad the classifier output to a full lane tile."""
    pse = p['pse']
    bn_s = pse['bn_g'] * jax.lax.rsqrt(pse['bn_v'] + BN_EPS)          # (32,)
    h1 = PSE_MLP1_DIMS[-1]
    fp = dict(
        w1=(pse['w1'] * bn_s[None, :]).astype(_BF16),
        b1=((pse['b1'] - pse['bn_m']) * bn_s + pse['bn_b'])[None, :],
        w2=pse['w2'].astype(_BF16), b2=pse['b2'][None, :],
        w3m=pse['w3'][:h1].astype(_BF16), w3s=pse['w3'][h1:].astype(_BF16),
        b3=pse['b3'][None, :],
    )

    t = p['transformer']
    qs = 1.0 / math.sqrt(HEAD_DIM)
    scale = jnp.concatenate([jnp.full((D_MODEL,), qs, jnp.float32),
                             jnp.ones((2 * D_MODEL,), jnp.float32)])   # (3D,)
    fp.update(
        wqkv=(t['wqkv'] * scale[None, None, :]).astype(_BF16),   # (L, D, 3D)
        bqkv=(t['bqkv'] * scale[None, :])[:, None, :],           # (L, 1, 3D)
        wo=t['wo'].astype(_BF16),                                # (L, D, D)
        bo=t['bo'][:, None, :],
        g1=t['g1'][:, None, :], be1=t['be1'][:, None, :],
        wf1=t['wf1'].astype(_BF16), bf1=t['bf1'][:, None, :],
        wf2=t['wf2'].astype(_BF16), bf2=t['bf2'][:, None, :],
        g2=t['g2'][:, None, :], be2=t['be2'][:, None, :],
    )

    hd = p['head']
    wh2p = jnp.zeros((CLASSIFIER_HIDDEN, HEAD_PAD), jnp.float32)
    wh2p = wh2p.at[:, :NUM_CLASSES].set(hd['wh2'])
    bh2p = jnp.zeros((HEAD_PAD,), jnp.float32).at[:NUM_CLASSES].set(hd['bh2'])
    fp.update(
        wh1=hd['wh1'].astype(_BF16), bh1=hd['bh1'][None, :],
        wh2=wh2p.astype(_BF16), bh2=bh2p[None, :],
    )
    fp['prefix'] = (p['cls_token'][0, 0] + p['pe'][0])[None, :]   # (1, D)
    fp['pe'] = p['pe']
    return fp


# ---------------------------- full forward ------------------------------------
@jax.jit
def forward(fp, pixels, positions):
    B, T, C, S = pixels.shape
    # PyTorch: permute(0,1,3,2) -> (B,T,S,C); kernel takes flat (B*T*S, C)
    x = jnp.transpose(pixels, (0, 1, 3, 2)).reshape(B * T * S, C)
    # positional-encoding gather (tiny JAX glue, fused under jit)
    pe = fp['pe']
    pos = jnp.clip(positions[:, :T].astype(jnp.int32) + 1, 0, pe.shape[0] - 1)
    posr = jnp.take(pe, pos.reshape(-1), axis=0)          # (B*T, D)
    prefix = jnp.broadcast_to(fp['prefix'], (B, D_MODEL)) # cls + pe[0] rows
    # block-diagonal additive mask: flat sequence = B*T tokens then B cls rows
    tok_b = jnp.concatenate([jnp.repeat(jnp.arange(B), T), jnp.arange(B)])
    amask = jnp.where(tok_b[:, None] == tok_b[None, :],
                      0.0, NEG_INF).astype(jnp.float32)   # (B*(T+1), B*(T+1))
    logits_pad = run_fused(x, prefix, posr, amask, fp)    # (B, 128)
    return logits_pad[:, :NUM_CLASSES]


if __name__ == "__main__":
    key = jax.random.PRNGKey(0)
    kpix, kpos, kparam = jax.random.split(key, 3)
    B, T, C, S = 2, NUM_TIMESTEPS, INPUT_CHANNELS, 16
    pixels = jax.random.normal(kpix, (B, T, C, S), jnp.float32)
    positions = jax.random.randint(kpos, (B, T), 0, NUM_TIMESTEPS,
                                   dtype=jnp.int32)
    params = init_params(kparam)
    fused = fold_params(params)
    logits = forward(fused, pixels, positions)
    jax.block_until_ready(logits)
    assert logits.shape == (B, NUM_CLASSES)
    assert bool(jnp.all(jnp.isfinite(logits)))
    print("KERNEL_OK")
</pallas_src>

<mosaic_0001>
module attributes {stable_mosaic.version = 11 : i64} {
  func.func @fused_kernel(%arg0: i32, %arg1: memref<256x4xf32, #tpu.memory_space<vmem>>, %arg2: memref<4x32xbf16, #tpu.memory_space<vmem>>, %arg3: memref<1x32xf32, #tpu.memory_space<vmem>>, %arg4: memref<32x64xbf16, #tpu.memory_space<vmem>>, %arg5: memref<1x64xf32, #tpu.memory_space<vmem>>, %arg6: memref<64x128xbf16, #tpu.memory_space<vmem>>, %arg7: memref<64x128xbf16, #tpu.memory_space<vmem>>, %arg8: memref<1x128xf32, #tpu.memory_space<vmem>>, %arg9: memref<2x128xf32, #tpu.memory_space<vmem>>, %arg10: memref<16x128xf32, #tpu.memory_space<vmem>>, %arg11: memref<18x18xf32, #tpu.memory_space<vmem>>, %arg12: memref<1x128x384xbf16, #tpu.memory_space<vmem>>, %arg13: memref<1x1x384xf32, #tpu.memory_space<vmem>>, %arg14: memref<1x128x128xbf16, #tpu.memory_space<vmem>>, %arg15: memref<1x1x128xf32, #tpu.memory_space<vmem>>, %arg16: memref<1x1x128xf32, #tpu.memory_space<vmem>>, %arg17: memref<1x1x128xf32, #tpu.memory_space<vmem>>, %arg18: memref<1x128x512xbf16, #tpu.memory_space<vmem>>, %arg19: memref<1x1x512xf32, #tpu.memory_space<vmem>>, %arg20: memref<1x512x128xbf16, #tpu.memory_space<vmem>>, %arg21: memref<1x1x128xf32, #tpu.memory_space<vmem>>, %arg22: memref<1x1x128xf32, #tpu.memory_space<vmem>>, %arg23: memref<1x1x128xf32, #tpu.memory_space<vmem>>, %arg24: memref<128x64xbf16, #tpu.memory_space<vmem>>, %arg25: memref<1x64xf32, #tpu.memory_space<vmem>>, %arg26: memref<64x128xbf16, #tpu.memory_space<vmem>>, %arg27: memref<1x128xf32, #tpu.memory_space<vmem>>, %arg28: memref<2x128xf32, #tpu.memory_space<vmem>>, %arg29: memref<18x128xf32, #tpu.memory_space<vmem>>) attributes {dimension_semantics = [#tpu.dimension_semantics<arbitrary>], iteration_bounds = array<i64: 4>, scalar_prefetch = 0 : i64, scratch_operands = 1 : i64, tpu.core_type = #tpu.core_type<tc>, window_params = [{pipeline_mode = #tpu.pipeline_mode<synchronous>, transform_indices = @transform_0, window_bounds = array<i64: 256, 4>}, {pipeline_mode = #tpu.pipeline_mode<synchronous>, transform_indices = @transform_1, window_bounds = array<i64: 4, 32>}, {pipeline_mode = #tpu.pipeline_mode<synchronous>, transform_indices = @transform_2, window_bounds = array<i64: 1, 32>}, {pipeline_mode = #tpu.pipeline_mode<synchronous>, transform_indices = @transform_3, window_bounds = array<i64: 32, 64>}, {pipeline_mode = #tpu.pipeline_mode<synchronous>, transform_indices = @transform_4, window_bounds = array<i64: 1, 64>}, {pipeline_mode = #tpu.pipeline_mode<synchronous>, transform_indices = @transform_5, window_bounds = array<i64: 64, 128>}, {pipeline_mode = #tpu.pipeline_mode<synchronous>, transform_indices = @transform_6, window_bounds = array<i64: 64, 128>}, {pipeline_mode = #tpu.pipeline_mode<synchronous>, transform_indices = @transform_7, window_bounds = array<i64: 1, 128>}, {pipeline_mode = #tpu.pipeline_mode<synchronous>, transform_indices = @transform_8, window_bounds = array<i64: 2, 128>}, {pipeline_mode = #tpu.pipeline_mode<synchronous>, transform_indices = @transform_9, window_bounds = array<i64: 16, 128>}, {pipeline_mode = #tpu.pipeline_mode<synchronous>, transform_indices = @transform_10, window_bounds = array<i64: 18, 18>}, {transform_indices = @transform_11, window_bounds = array<i64: 1, 128, 384>}, {transform_indices = @transform_12, window_bounds = array<i64: 1, 1, 384>}, {transform_indices = @transform_13, window_bounds = array<i64: 1, 128, 128>}, {transform_indices = @transform_14, window_bounds = array<i64: 1, 1, 128>}, {transform_indices = @transform_15, window_bounds = array<i64: 1, 1, 128>}, {transform_indices = @transform_16, window_bounds = array<i64: 1, 1, 128>}, {transform_indices = @transform_17, window_bounds = array<i64: 1, 128, 512>}, {transform_indices = @transform_18, window_bounds = array<i64: 1, 1, 512>}, {transform_indices = @transform_19, window_bounds = array<i64: 1, 512, 128>}, {transform_indices = @transform_20, window_bounds = array<i64: 1, 1, 128>}, {transform_indices = @transform_21, window_bounds = array<i64: 1, 1, 128>}, {transform_indices = @transform_22, window_bounds = array<i64: 1, 1, 128>}, {pipeline_mode = #tpu.pipeline_mode<synchronous>, transform_indices = @transform_23, window_bounds = array<i64: 128, 64>}, {pipeline_mode = #tpu.pipeline_mode<synchronous>, transform_indices = @transform_24, window_bounds = array<i64: 1, 64>}, {pipeline_mode = #tpu.pipeline_mode<synchronous>, transform_indices = @transform_25, window_bounds = array<i64: 64, 128>}, {pipeline_mode = #tpu.pipeline_mode<synchronous>, transform_indices = @transform_26, window_bounds = array<i64: 1, 128>}, {pipeline_mode = #tpu.pipeline_mode<synchronous>, transform_indices = @transform_27, window_bounds = array<i64: 2, 128>}]} {
    %c0_i32 = arith.constant 0 : i32
    %0 = arith.cmpi eq, %arg0, %c0_i32 : i32
    %1 = arith.extui %0 : i1 to i32
    %c0_i32_0 = arith.constant 0 : i32
    %2 = arith.cmpi ne, %1, %c0_i32_0 : i32
    scf.if %2 {
      %c0_73 = arith.constant 0 : index
      %c0_74 = arith.constant 0 : index
      %176 = vector.load %arg1[%c0_73, %c0_74] : memref<256x4xf32, #tpu.memory_space<vmem>>, vector<256x4xf32>
      %177 = arith.truncf %176 : vector<256x4xf32> to vector<256x4xbf16>
      %c0_75 = arith.constant 0 : index
      %c0_76 = arith.constant 0 : index
      %178 = vector.load %arg2[%c0_75, %c0_76] : memref<4x32xbf16, #tpu.memory_space<vmem>>, vector<4x32xbf16>
      %cst_77 = arith.constant dense<0.000000e+00> : vector<256x32xf32>
      %179 = tpu.matmul %177, %178, %cst_77 {dimension_numbers = #tpu.dot_dimension_numbers<[1], [0], [0], [1], [0, 0, 1, 1], [], []>} : vector<256x4xbf16>, vector<4x32xbf16>, vector<256x32xf32> -> vector<256x32xf32>
      %c0_78 = arith.constant 0 : index
      %c0_79 = arith.constant 0 : index
      %180 = vector.load %arg3[%c0_78, %c0_79] : memref<1x32xf32, #tpu.memory_space<vmem>>, vector<1x32xf32>
      %181 = vector.broadcast %180 : vector<1x32xf32> to vector<256x32xf32>
      %182 = arith.addf %179, %181 : vector<256x32xf32>
      %cst_80 = arith.constant 0.000000e+00 : f32
      %183 = vector.broadcast %cst_80 : f32 to vector<256x32xf32>
      %184 = arith.maximumf %182, %183 : vector<256x32xf32>
      %185 = arith.truncf %184 : vector<256x32xf32> to vector<256x32xbf16>
      %c0_81 = arith.constant 0 : index
      %c0_82 = arith.constant 0 : index
      %186 = vector.load %arg4[%c0_81, %c0_82] : memref<32x64xbf16, #tpu.memory_space<vmem>>, vector<32x64xbf16>
      %cst_83 = arith.constant dense<0.000000e+00> : vector<256x64xf32>
      %187 = tpu.matmul %185, %186, %cst_83 {dimension_numbers = #tpu.dot_dimension_numbers<[1], [0], [0], [1], [0, 0, 1, 1], [], []>} : vector<256x32xbf16>, vector<32x64xbf16>, vector<256x64xf32> -> vector<256x64xf32>
      %c0_84 = arith.constant 0 : index
      %c0_85 = arith.constant 0 : index
      %188 = vector.load %arg5[%c0_84, %c0_85] : memref<1x64xf32, #tpu.memory_space<vmem>>, vector<1x64xf32>
      %189 = vector.broadcast %188 : vector<1x64xf32> to vector<256x64xf32>
      %190 = arith.addf %187, %189 : vector<256x64xf32>
      %191 = vector.shape_cast %190 : vector<256x64xf32> to vector<16x16x64xf32>
      %cst_86 = arith.constant dense<0.000000e+00> : vector<16x64xf32>
      %192 = vector.multi_reduction <add>, %191, %cst_86 [1] : vector<16x16x64xf32> to vector<16x64xf32>
      %cst_87 = arith.constant 1.600000e+01 : f32
      %193 = vector.broadcast %cst_87 : f32 to vector<16x64xf32>
      %194 = arith.divf %192, %193 : vector<16x64xf32>
      %195 = vector.shape_cast %194 : vector<16x64xf32> to vector<16x1x64xf32>
      %196 = vector.broadcast %195 : vector<16x1x64xf32> to vector<16x16x64xf32>
      %197 = arith.subf %191, %196 : vector<16x16x64xf32>
      %198 = arith.mulf %197, %197 : vector<16x16x64xf32>
      %cst_88 = arith.constant dense<0.000000e+00> : vector<16x64xf32>
      %199 = vector.multi_reduction <add>, %198, %cst_88 [1] : vector<16x16x64xf32> to vector<16x64xf32>
      %cst_89 = arith.constant 0.0666666701 : f32
      %200 = vector.broadcast %cst_89 : f32 to vector<16x64xf32>
      %201 = arith.mulf %199, %200 : vector<16x64xf32>
      %202 = math.sqrt %201 : vector<16x64xf32>
      %203 = arith.truncf %194 : vector<16x64xf32> to vector<16x64xbf16>
      %c0_90 = arith.constant 0 : index
      %c0_91 = arith.constant 0 : index
      %204 = vector.load %arg6[%c0_90, %c0_91] : memref<64x128xbf16, #tpu.memory_space<vmem>>, vector<64x128xbf16>
      %cst_92 = arith.constant dense<0.000000e+00> : vector<16x128xf32>
      %205 = tpu.matmul %203, %204, %cst_92 {dimension_numbers = #tpu.dot_dimension_numbers<[1], [0], [0], [1], [0, 0, 1, 1], [], []>} : vector<16x64xbf16>, vector<64x128xbf16>, vector<16x128xf32> -> vector<16x128xf32>
      %206 = arith.truncf %202 : vector<16x64xf32> to vector<16x64xbf16>
      %c0_93 = arith.constant 0 : index
      %c0_94 = arith.constant 0 : index
      %207 = vector.load %arg7[%c0_93, %c0_94] : memref<64x128xbf16, #tpu.memory_space<vmem>>, vector<64x128xbf16>
      %cst_95 = arith.constant dense<0.000000e+00> : vector<16x128xf32>
      %208 = tpu.matmul %206, %207, %cst_95 {dimension_numbers = #tpu.dot_dimension_numbers<[1], [0], [0], [1], [0, 0, 1, 1], [], []>} : vector<16x64xbf16>, vector<64x128xbf16>, vector<16x128xf32> -> vector<16x128xf32>
      %209 = arith.addf %205, %208 : vector<16x128xf32>
      %c0_96 = arith.constant 0 : index
      %c0_97 = arith.constant 0 : index
      %210 = vector.load %arg8[%c0_96, %c0_97] : memref<1x128xf32, #tpu.memory_space<vmem>>, vector<1x128xf32>
      %211 = vector.broadcast %210 : vector<1x128xf32> to vector<16x128xf32>
      %212 = arith.addf %209, %211 : vector<16x128xf32>
      %c0_98 = arith.constant 0 : index
      %c0_99 = arith.constant 0 : index
      %213 = vector.load %arg10[%c0_98, %c0_99] : memref<16x128xf32, #tpu.memory_space<vmem>>, vector<16x128xf32>
      %214 = arith.addf %212, %213 : vector<16x128xf32>
      %c0_100 = arith.constant 0 : index
      %c0_101 = arith.constant 0 : index
      %215 = vector.load %arg29[%c0_100, %c0_101] : memref<18x128xf32, #tpu.memory_space<vmem>>, vector<16x128xf32>
      tpu.vector_store %arg29[%c0_100, %c0_101], %214 {strides = array<i32>} : memref<18x128xf32, #tpu.memory_space<vmem>>, vector<16x128xf32>,
      %c0_102 = arith.constant 0 : index
      %c0_103 = arith.constant 0 : index
      %216 = vector.load %arg9[%c0_102, %c0_103] : memref<2x128xf32, #tpu.memory_space<vmem>>, vector<2x128xf32>
      %c16 = arith.constant 16 : index
      %c0_104 = arith.constant 0 : index
      %217 = vector.load %arg29[%c16, %c0_104] : memref<18x128xf32, #tpu.memory_space<vmem>>, vector<2x128xf32>
      tpu.vector_store %arg29[%c16, %c0_104], %216 {strides = array<i32>} : memref<18x128xf32, #tpu.memory_space<vmem>>, vector<2x128xf32>,
    } else {
    }
    %c0 = arith.constant 0 : index
    %c0_1 = arith.constant 0 : index
    %3 = vector.load %arg29[%c0, %c0_1] : memref<18x128xf32, #tpu.memory_space<vmem>>, vector<18x128xf32>
    %4 = arith.truncf %3 : vector<18x128xf32> to vector<18x128xbf16>
    %c0_2 = arith.constant 0 : index
    %c0_3 = arith.constant 0 : index
    %c0_4 = arith.constant 0 : index
    %5 = vector.load %arg12[%c0_2, %c0_3, %c0_4] : memref<1x128x384xbf16, #tpu.memory_space<vmem>>, vector<1x128x384xbf16>
    %6 = vector.shape_cast %5 : vector<1x128x384xbf16> to vector<128x384xbf16>
    %cst = arith.constant dense<0.000000e+00> : vector<18x384xf32>
    %7 = tpu.matmul %4, %6, %cst {dimension_numbers = #tpu.dot_dimension_numbers<[1], [0], [0], [1], [0, 0, 1, 1], [], []>} : vector<18x128xbf16>, vector<128x384xbf16>, vector<18x384xf32> -> vector<18x384xf32>
    %c0_5 = arith.constant 0 : index
    %c0_6 = arith.constant 0 : index
    %c0_7 = arith.constant 0 : index
    %8 = vector.load %arg13[%c0_5, %c0_6, %c0_7] : memref<1x1x384xf32, #tpu.memory_space<vmem>>, vector<1x1x384xf32>
    %9 = vector.shape_cast %8 : vector<1x1x384xf32> to vector<1x384xf32>
    %10 = vector.broadcast %9 : vector<1x384xf32> to vector<18x384xf32>
    %11 = arith.addf %7, %10 : vector<18x384xf32>
    %c0_8 = arith.constant 0 : index
    %c0_9 = arith.constant 0 : index
    %12 = vector.load %arg11[%c0_8, %c0_9] : memref<18x18xf32, #tpu.memory_space<vmem>>, vector<18x18xf32>
    %13 = vector.extract_strided_slice %11 {offsets = [0, 0], sizes = [18, 32], strides = [1, 1]} : vector<18x384xf32> to vector<18x32xf32>
    %14 = vector.extract_strided_slice %11 {offsets = [0, 128], sizes = [18, 32], strides = [1, 1]} : vector<18x384xf32> to vector<18x32xf32>
    %15 = vector.extract_strided_slice %11 {offsets = [0, 256], sizes = [18, 32], strides = [1, 1]} : vector<18x384xf32> to vector<18x32xf32>
    %16 = arith.truncf %13 : vector<18x32xf32> to vector<18x32xbf16>
    %17 = arith.truncf %14 : vector<18x32xf32> to vector<18x32xbf16>
    %cst_10 = arith.constant dense<0.000000e+00> : vector<18x18xf32>
    %18 = tpu.matmul %16, %17, %cst_10 {dimension_numbers = #tpu.dot_dimension_numbers<[1], [1], [0], [0], [0, 0, 1, 0], [], []>} : vector<18x32xbf16>, vector<18x32xbf16>, vector<18x18xf32> -> vector<18x18xf32>
    %19 = arith.addf %18, %12 : vector<18x18xf32>
    %cst_11 = arith.constant dense<0xFF800000> : vector<18xf32>
    %20 = vector.multi_reduction <maximumf>, %19, %cst_11 [1] : vector<18x18xf32> to vector<18xf32>
    %21 = vector.shape_cast %20 : vector<18xf32> to vector<18x1xf32>
    %22 = vector.broadcast %21 : vector<18x1xf32> to vector<18x18xf32>
    %23 = arith.subf %19, %22 : vector<18x18xf32>
    %24 = math.exp %23 : vector<18x18xf32>
    %cst_12 = arith.constant dense<0.000000e+00> : vector<18xf32>
    %25 = vector.multi_reduction <add>, %24, %cst_12 [1] : vector<18x18xf32> to vector<18xf32>
    %26 = vector.shape_cast %25 : vector<18xf32> to vector<18x1xf32>
    %27 = tpu.reciprocal %26 {approx = true} : vector<18x1xf32> -> vector<18x1xf32>
    %28 = vector.broadcast %27 : vector<18x1xf32> to vector<18x18xf32>
    %29 = arith.mulf %24, %28 : vector<18x18xf32>
    %30 = arith.truncf %29 : vector<18x18xf32> to vector<18x18xbf16>
    %31 = arith.truncf %15 : vector<18x32xf32> to vector<18x32xbf16>
    %cst_13 = arith.constant dense<0.000000e+00> : vector<18x32xf32>
    %32 = tpu.matmul %30, %31, %cst_13 {dimension_numbers = #tpu.dot_dimension_numbers<[1], [0], [0], [1], [0, 0, 1, 1], [], []>} : vector<18x18xbf16>, vector<18x32xbf16>, vector<18x32xf32> -> vector<18x32xf32>
    %33 = vector.extract_strided_slice %11 {offsets = [0, 32], sizes = [18, 32], strides = [1, 1]} : vector<18x384xf32> to vector<18x32xf32>
    %34 = vector.extract_strided_slice %11 {offsets = [0, 160], sizes = [18, 32], strides = [1, 1]} : vector<18x384xf32> to vector<18x32xf32>
    %35 = vector.extract_strided_slice %11 {offsets = [0, 288], sizes = [18, 32], strides = [1, 1]} : vector<18x384xf32> to vector<18x32xf32>
    %36 = arith.truncf %33 : vector<18x32xf32> to vector<18x32xbf16>
    %37 = arith.truncf %34 : vector<18x32xf32> to vector<18x32xbf16>
    %cst_14 = arith.constant dense<0.000000e+00> : vector<18x18xf32>
    %38 = tpu.matmul %36, %37, %cst_14 {dimension_numbers = #tpu.dot_dimension_numbers<[1], [1], [0], [0], [0, 0, 1, 0], [], []>} : vector<18x32xbf16>, vector<18x32xbf16>, vector<18x18xf32> -> vector<18x18xf32>
    %39 = arith.addf %38, %12 : vector<18x18xf32>
    %cst_15 = arith.constant dense<0xFF800000> : vector<18xf32>
    %40 = vector.multi_reduction <maximumf>, %39, %cst_15 [1] : vector<18x18xf32> to vector<18xf32>
    %41 = vector.shape_cast %40 : vector<18xf32> to vector<18x1xf32>
    %42 = vector.broadcast %41 : vector<18x1xf32> to vector<18x18xf32>
    %43 = arith.subf %39, %42 : vector<18x18xf32>
    %44 = math.exp %43 : vector<18x18xf32>
    %cst_16 = arith.constant dense<0.000000e+00> : vector<18xf32>
    %45 = vector.multi_reduction <add>, %44, %cst_16 [1] : vector<18x18xf32> to vector<18xf32>
    %46 = vector.shape_cast %45 : vector<18xf32> to vector<18x1xf32>
    %47 = tpu.reciprocal %46 {approx = true} : vector<18x1xf32> -> vector<18x1xf32>
    %48 = vector.broadcast %47 : vector<18x1xf32> to vector<18x18xf32>
    %49 = arith.mulf %44, %48 : vector<18x18xf32>
    %50 = arith.truncf %49 : vector<18x18xf32> to vector<18x18xbf16>
    %51 = arith.truncf %35 : vector<18x32xf32> to vector<18x32xbf16>
    %cst_17 = arith.constant dense<0.000000e+00> : vector<18x32xf32>
    %52 = tpu.matmul %50, %51, %cst_17 {dimension_numbers = #tpu.dot_dimension_numbers<[1], [0], [0], [1], [0, 0, 1, 1], [], []>} : vector<18x18xbf16>, vector<18x32xbf16>, vector<18x32xf32> -> vector<18x32xf32>
    %53 = vector.extract_strided_slice %11 {offsets = [0, 64], sizes = [18, 32], strides = [1, 1]} : vector<18x384xf32> to vector<18x32xf32>
    %54 = vector.extract_strided_slice %11 {offsets = [0, 192], sizes = [18, 32], strides = [1, 1]} : vector<18x384xf32> to vector<18x32xf32>
    %55 = vector.extract_strided_slice %11 {offsets = [0, 320], sizes = [18, 32], strides = [1, 1]} : vector<18x384xf32> to vector<18x32xf32>
    %56 = arith.truncf %53 : vector<18x32xf32> to vector<18x32xbf16>
    %57 = arith.truncf %54 : vector<18x32xf32> to vector<18x32xbf16>
    %cst_18 = arith.constant dense<0.000000e+00> : vector<18x18xf32>
    %58 = tpu.matmul %56, %57, %cst_18 {dimension_numbers = #tpu.dot_dimension_numbers<[1], [1], [0], [0], [0, 0, 1, 0], [], []>} : vector<18x32xbf16>, vector<18x32xbf16>, vector<18x18xf32> -> vector<18x18xf32>
    %59 = arith.addf %58, %12 : vector<18x18xf32>
    %cst_19 = arith.constant dense<0xFF800000> : vector<18xf32>
    %60 = vector.multi_reduction <maximumf>, %59, %cst_19 [1] : vector<18x18xf32> to vector<18xf32>
    %61 = vector.shape_cast %60 : vector<18xf32> to vector<18x1xf32>
    %62 = vector.broadcast %61 : vector<18x1xf32> to vector<18x18xf32>
    %63 = arith.subf %59, %62 : vector<18x18xf32>
    %64 = math.exp %63 : vector<18x18xf32>
    %cst_20 = arith.constant dense<0.000000e+00> : vector<18xf32>
    %65 = vector.multi_reduction <add>, %64, %cst_20 [1] : vector<18x18xf32> to vector<18xf32>
    %66 = vector.shape_cast %65 : vector<18xf32> to vector<18x1xf32>
    %67 = tpu.reciprocal %66 {approx = true} : vector<18x1xf32> -> vector<18x1xf32>
    %68 = vector.broadcast %67 : vector<18x1xf32> to vector<18x18xf32>
    %69 = arith.mulf %64, %68 : vector<18x18xf32>
    %70 = arith.truncf %69 : vector<18x18xf32> to vector<18x18xbf16>
    %71 = arith.truncf %55 : vector<18x32xf32> to vector<18x32xbf16>
    %cst_21 = arith.constant dense<0.000000e+00> : vector<18x32xf32>
    %72 = tpu.matmul %70, %71, %cst_21 {dimension_numbers = #tpu.dot_dimension_numbers<[1], [0], [0], [1], [0, 0, 1, 1], [], []>} : vector<18x18xbf16>, vector<18x32xbf16>, vector<18x32xf32> -> vector<18x32xf32>
    %73 = vector.extract_strided_slice %11 {offsets = [0, 96], sizes = [18, 32], strides = [1, 1]} : vector<18x384xf32> to vector<18x32xf32>
    %74 = vector.extract_strided_slice %11 {offsets = [0, 224], sizes = [18, 32], strides = [1, 1]} : vector<18x384xf32> to vector<18x32xf32>
    %75 = vector.extract_strided_slice %11 {offsets = [0, 352], sizes = [18, 32], strides = [1, 1]} : vector<18x384xf32> to vector<18x32xf32>
    %76 = arith.truncf %73 : vector<18x32xf32> to vector<18x32xbf16>
    %77 = arith.truncf %74 : vector<18x32xf32> to vector<18x32xbf16>
    %cst_22 = arith.constant dense<0.000000e+00> : vector<18x18xf32>
    %78 = tpu.matmul %76, %77, %cst_22 {dimension_numbers = #tpu.dot_dimension_numbers<[1], [1], [0], [0], [0, 0, 1, 0], [], []>} : vector<18x32xbf16>, vector<18x32xbf16>, vector<18x18xf32> -> vector<18x18xf32>
    %79 = arith.addf %78, %12 : vector<18x18xf32>
    %cst_23 = arith.constant dense<0xFF800000> : vector<18xf32>
    %80 = vector.multi_reduction <maximumf>, %79, %cst_23 [1] : vector<18x18xf32> to vector<18xf32>
    %81 = vector.shape_cast %80 : vector<18xf32> to vector<18x1xf32>
    %82 = vector.broadcast %81 : vector<18x1xf32> to vector<18x18xf32>
    %83 = arith.subf %79, %82 : vector<18x18xf32>
    %84 = math.exp %83 : vector<18x18xf32>
    %cst_24 = arith.constant dense<0.000000e+00> : vector<18xf32>
    %85 = vector.multi_reduction <add>, %84, %cst_24 [1] : vector<18x18xf32> to vector<18xf32>
    %86 = vector.shape_cast %85 : vector<18xf32> to vector<18x1xf32>
    %87 = tpu.reciprocal %86 {approx = true} : vector<18x1xf32> -> vector<18x1xf32>
    %88 = vector.broadcast %87 : vector<18x1xf32> to vector<18x18xf32>
    %89 = arith.mulf %84, %88 : vector<18x18xf32>
    %90 = arith.truncf %89 : vector<18x18xf32> to vector<18x18xbf16>
    %91 = arith.truncf %75 : vector<18x32xf32> to vector<18x32xbf16>
    %cst_25 = arith.constant dense<0.000000e+00> : vector<18x32xf32>
    %92 = tpu.matmul %90, %91, %cst_25 {dimension_numbers = #tpu.dot_dimension_numbers<[1], [0], [0], [1], [0, 0, 1, 1], [], []>} : vector<18x18xbf16>, vector<18x32xbf16>, vector<18x32xf32> -> vector<18x32xf32>
    %93 = tpu.concatenate %32, %52, %72, %92 in 1 : vector<18x32xf32>, vector<18x32xf32>, vector<18x32xf32>, vector<18x32xf32> -> vector<18x128xf32>
    %94 = arith.truncf %93 : vector<18x128xf32> to vector<18x128xbf16>
    %c0_26 = arith.constant 0 : index
    %c0_27 = arith.constant 0 : index
    %c0_28 = arith.constant 0 : index
    %95 = vector.load %arg14[%c0_26, %c0_27, %c0_28] : memref<1x128x128xbf16, #tpu.memory_space<vmem>>, vector<1x128x128xbf16>
    %96 = vector.shape_cast %95 : vector<1x128x128xbf16> to vector<128x128xbf16>
    %cst_29 = arith.constant dense<0.000000e+00> : vector<18x128xf32>
    %97 = tpu.matmul %94, %96, %cst_29 {dimension_numbers = #tpu.dot_dimension_numbers<[1], [0], [0], [1], [0, 0, 1, 1], [], []>} : vector<18x128xbf16>, vector<128x128xbf16>, vector<18x128xf32> -> vector<18x128xf32>
    %c0_30 = arith.constant 0 : index
    %c0_31 = arith.constant 0 : index
    %c0_32 = arith.constant 0 : index
    %98 = vector.load %arg15[%c0_30, %c0_31, %c0_32] : memref<1x1x128xf32, #tpu.memory_space<vmem>>, vector<1x1x128xf32>
    %99 = vector.shape_cast %98 : vector<1x1x128xf32> to vector<1x128xf32>
    %100 = vector.broadcast %99 : vector<1x128xf32> to vector<18x128xf32>
    %101 = arith.addf %97, %100 : vector<18x128xf32>
    %102 = arith.addf %3, %101 : vector<18x128xf32>
    %c0_33 = arith.constant 0 : index
    %c0_34 = arith.constant 0 : index
    %c0_35 = arith.constant 0 : index
    %103 = vector.load %arg16[%c0_33, %c0_34, %c0_35] : memref<1x1x128xf32, #tpu.memory_space<vmem>>, vector<1x1x128xf32>
    %104 = vector.shape_cast %103 : vector<1x1x128xf32> to vector<1x128xf32>
    %c0_36 = arith.constant 0 : index
    %c0_37 = arith.constant 0 : index
    %c0_38 = arith.constant 0 : index
    %105 = vector.load %arg17[%c0_36, %c0_37, %c0_38] : memref<1x1x128xf32, #tpu.memory_space<vmem>>, vector<1x1x128xf32>
    %106 = vector.shape_cast %105 : vector<1x1x128xf32> to vector<1x128xf32>
    %cst_39 = arith.constant dense<0.000000e+00> : vector<18xf32>
    %107 = vector.multi_reduction <add>, %102, %cst_39 [1] : vector<18x128xf32> to vector<18xf32>
    %108 = vector.shape_cast %107 : vector<18xf32> to vector<18x1xf32>
    %cst_40 = arith.constant 1.280000e+02 : f32
    %109 = vector.broadcast %cst_40 : f32 to vector<18x1xf32>
    %110 = arith.divf %108, %109 : vector<18x1xf32>
    %111 = vector.broadcast %110 : vector<18x1xf32> to vector<18x128xf32>
    %112 = arith.subf %102, %111 : vector<18x128xf32>
    %113 = arith.mulf %112, %112 : vector<18x128xf32>
    %cst_41 = arith.constant dense<0.000000e+00> : vector<18xf32>
    %114 = vector.multi_reduction <add>, %113, %cst_41 [1] : vector<18x128xf32> to vector<18xf32>
    %115 = vector.shape_cast %114 : vector<18xf32> to vector<18x1xf32>
    %cst_42 = arith.constant 1.280000e+02 : f32
    %116 = vector.broadcast %cst_42 : f32 to vector<18x1xf32>
    %117 = arith.divf %115, %116 : vector<18x1xf32>
    %cst_43 = arith.constant 9.99999974E-6 : f32
    %118 = vector.broadcast %cst_43 : f32 to vector<18x1xf32>
    %119 = arith.addf %117, %118 : vector<18x1xf32>
    %120 = math.rsqrt %119 : vector<18x1xf32>
    %121 = vector.broadcast %120 : vector<18x1xf32> to vector<18x128xf32>
    %122 = arith.mulf %112, %121 : vector<18x128xf32>
    %123 = vector.broadcast %104 : vector<1x128xf32> to vector<18x128xf32>
    %124 = arith.mulf %122, %123 : vector<18x128xf32>
    %125 = vector.broadcast %106 : vector<1x128xf32> to vector<18x128xf32>
    %126 = arith.addf %124, %125 : vector<18x128xf32>
    %127 = arith.truncf %126 : vector<18x128xf32> to vector<18x128xbf16>
    %c0_44 = arith.constant 0 : index
    %c0_45 = arith.constant 0 : index
    %c0_46 = arith.constant 0 : index
    %128 = vector.load %arg18[%c0_44, %c0_45, %c0_46] : memref<1x128x512xbf16, #tpu.memory_space<vmem>>, vector<1x128x512xbf16>
    %129 = vector.shape_cast %128 : vector<1x128x512xbf16> to vector<128x512xbf16>
    %cst_47 = arith.constant dense<0.000000e+00> : vector<18x512xf32>
    %130 = tpu.matmul %127, %129, %cst_47 {dimension_numbers = #tpu.dot_dimension_numbers<[1], [0], [0], [1], [0, 0, 1, 1], [], []>} : vector<18x128xbf16>, vector<128x512xbf16>, vector<18x512xf32> -> vector<18x512xf32>
    %c0_48 = arith.constant 0 : index
    %c0_49 = arith.constant 0 : index
    %c0_50 = arith.constant 0 : index
    %131 = vector.load %arg19[%c0_48, %c0_49, %c0_50] : memref<1x1x512xf32, #tpu.memory_space<vmem>>, vector<1x1x512xf32>
    %132 = vector.shape_cast %131 : vector<1x1x512xf32> to vector<1x512xf32>
    %133 = vector.broadcast %132 : vector<1x512xf32> to vector<18x512xf32>
    %134 = arith.addf %130, %133 : vector<18x512xf32>
    %cst_51 = arith.constant 0.000000e+00 : f32
    %135 = vector.broadcast %cst_51 : f32 to vector<18x512xf32>
    %136 = arith.maximumf %134, %135 : vector<18x512xf32>
    %137 = arith.truncf %136 : vector<18x512xf32> to vector<18x512xbf16>
    %c0_52 = arith.constant 0 : index
    %c0_53 = arith.constant 0 : index
    %c0_54 = arith.constant 0 : index
    %138 = vector.load %arg20[%c0_52, %c0_53, %c0_54] : memref<1x512x128xbf16, #tpu.memory_space<vmem>>, vector<1x512x128xbf16>
    %139 = vector.shape_cast %138 : vector<1x512x128xbf16> to vector<512x128xbf16>
    %cst_55 = arith.constant dense<0.000000e+00> : vector<18x128xf32>
    %140 = tpu.matmul %137, %139, %cst_55 {dimension_numbers = #tpu.dot_dimension_numbers<[1], [0], [0], [1], [0, 0, 1, 1], [], []>} : vector<18x512xbf16>, vector<512x128xbf16>, vector<18x128xf32> -> vector<18x128xf32>
    %c0_56 = arith.constant 0 : index
    %c0_57 = arith.constant 0 : index
    %c0_58 = arith.constant 0 : index
    %141 = vector.load %arg21[%c0_56, %c0_57, %c0_58] : memref<1x1x128xf32, #tpu.memory_space<vmem>>, vector<1x1x128xf32>
    %142 = vector.shape_cast %141 : vector<1x1x128xf32> to vector<1x128xf32>
    %143 = vector.broadcast %142 : vector<1x128xf32> to vector<18x128xf32>
    %144 = arith.addf %140, %143 : vector<18x128xf32>
    %145 = arith.addf %126, %144 : vector<18x128xf32>
    %c0_59 = arith.constant 0 : index
    %c0_60 = arith.constant 0 : index
    %c0_61 = arith.constant 0 : index
    %146 = vector.load %arg22[%c0_59, %c0_60, %c0_61] : memref<1x1x128xf32, #tpu.memory_space<vmem>>, vector<1x1x128xf32>
    %147 = vector.shape_cast %146 : vector<1x1x128xf32> to vector<1x128xf32>
    %c0_62 = arith.constant 0 : index
    %c0_63 = arith.constant 0 : index
    %c0_64 = arith.constant 0 : index
    %148 = vector.load %arg23[%c0_62, %c0_63, %c0_64] : memref<1x1x128xf32, #tpu.memory_space<vmem>>, vector<1x1x128xf32>
    %149 = vector.shape_cast %148 : vector<1x1x128xf32> to vector<1x128xf32>
    %cst_65 = arith.constant dense<0.000000e+00> : vector<18xf32>
    %150 = vector.multi_reduction <add>, %145, %cst_65 [1] : vector<18x128xf32> to vector<18xf32>
    %151 = vector.shape_cast %150 : vector<18xf32> to vector<18x1xf32>
    %cst_66 = arith.constant 1.280000e+02 : f32
    %152 = vector.broadcast %cst_66 : f32 to vector<18x1xf32>
    %153 = arith.divf %151, %152 : vector<18x1xf32>
    %154 = vector.broadcast %153 : vector<18x1xf32> to vector<18x128xf32>
    %155 = arith.subf %145, %154 : vector<18x128xf32>
    %156 = arith.mulf %155, %155 : vector<18x128xf32>
    %cst_67 = arith.constant dense<0.000000e+00> : vector<18xf32>
    %157 = vector.multi_reduction <add>, %156, %cst_67 [1] : vector<18x128xf32> to vector<18xf32>
    %158 = vector.shape_cast %157 : vector<18xf32> to vector<18x1xf32>
    %cst_68 = arith.constant 1.280000e+02 : f32
    %159 = vector.broadcast %cst_68 : f32 to vector<18x1xf32>
    %160 = arith.divf %158, %159 : vector<18x1xf32>
    %cst_69 = arith.constant 9.99999974E-6 : f32
    %161 = vector.broadcast %cst_69 : f32 to vector<18x1xf32>
    %162 = arith.addf %160, %161 : vector<18x1xf32>
    %163 = math.rsqrt %162 : vector<18x1xf32>
    %164 = vector.broadcast %163 : vector<18x1xf32> to vector<18x128xf32>
    %165 = arith.mulf %155, %164 : vector<18x128xf32>
    %166 = vector.broadcast %147 : vector<1x128xf32> to vector<18x128xf32>
    %167 = arith.mulf %165, %166 : vector<18x128xf32>
    %168 = vector.broadcast %149 : vector<1x128xf32> to vector<18x128xf32>
    %169 = arith.addf %167, %168 : vector<18x128xf32>
    %c3_i32 = arith.constant 3 : i32
    %170 = arith.cmpi slt, %arg0, %c3_i32 : i32
    %171 = arith.extui %170 : i1 to i32
    %c0_i32_70 = arith.constant 0 : i32
    %172 = arith.cmpi ne, %171, %c0_i32_70 : i32
    scf.if %172 {
      %c0_73 = arith.constant 0 : index
      %c0_74 = arith.constant 0 : index
      %176 = vector.load %arg29[%c0_73, %c0_74] : memref<18x128xf32, #tpu.memory_space<vmem>>, vector<18x128xf32>
      tpu.vector_store %arg29[%c0_73, %c0_74], %169 {strides = array<i32>} : memref<18x128xf32, #tpu.memory_space<vmem>>, vector<18x128xf32>,
    } else {
    }
    %c3_i32_71 = arith.constant 3 : i32
    %173 = arith.cmpi eq, %arg0, %c3_i32_71 : i32
    %174 = arith.extui %173 : i1 to i32
    %c0_i32_72 = arith.constant 0 : i32
    %175 = arith.cmpi ne, %174, %c0_i32_72 : i32
    scf.if %175 {
      %176 = vector.extract_strided_slice %169 {offsets = [16, 0], sizes = [2, 128], strides = [1, 1]} : vector<18x128xf32> to vector<2x128xf32>
      %177 = arith.truncf %176 : vector<2x128xf32> to vector<2x128xbf16>
      %c0_73 = arith.constant 0 : index
      %c0_74 = arith.constant 0 : index
      %178 = vector.load %arg24[%c0_73, %c0_74] : memref<128x64xbf16, #tpu.memory_space<vmem>>, vector<128x64xbf16>
      %cst_75 = arith.constant dense<0.000000e+00> : vector<2x64xf32>
      %179 = tpu.matmul %177, %178, %cst_75 {dimension_numbers = #tpu.dot_dimension_numbers<[1], [0], [0], [1], [0, 0, 1, 1], [], []>} : vector<2x128xbf16>, vector<128x64xbf16>, vector<2x64xf32> -> vector<2x64xf32>
      %c0_76 = arith.constant 0 : index
      %c0_77 = arith.constant 0 : index
      %180 = vector.load %arg25[%c0_76, %c0_77] : memref<1x64xf32, #tpu.memory_space<vmem>>, vector<1x64xf32>
      %181 = vector.broadcast %180 : vector<1x64xf32> to vector<2x64xf32>
      %182 = arith.addf %179, %181 : vector<2x64xf32>
      %cst_78 = arith.constant 0.000000e+00 : f32
      %183 = vector.broadcast %cst_78 : f32 to vector<2x64xf32>
      %184 = arith.maximumf %182, %183 : vector<2x64xf32>
      %185 = arith.truncf %184 : vector<2x64xf32> to vector<2x64xbf16>
      %c0_79 = arith.constant 0 : index
      %c0_80 = arith.constant 0 : index
      %186 = vector.load %arg26[%c0_79, %c0_80] : memref<64x128xbf16, #tpu.memory_space<vmem>>, vector<64x128xbf16>
      %cst_81 = arith.constant dense<0.000000e+00> : vector<2x128xf32>
      %187 = tpu.matmul %185, %186, %cst_81 {dimension_numbers = #tpu.dot_dimension_numbers<[1], [0], [0], [1], [0, 0, 1, 1], [], []>} : vector<2x64xbf16>, vector<64x128xbf16>, vector<2x128xf32> -> vector<2x128xf32>
      %c0_82 = arith.constant 0 : index
      %c0_83 = arith.constant 0 : index
      %188 = vector.load %arg27[%c0_82, %c0_83] : memref<1x128xf32, #tpu.memory_space<vmem>>, vector<1x128xf32>
      %189 = vector.broadcast %188 : vector<1x128xf32> to vector<2x128xf32>
      %190 = arith.addf %187, %189 : vector<2x128xf32>
      %c0_84 = arith.constant 0 : index
      %c0_85 = arith.constant 0 : index
      %191 = vector.load %arg28[%c0_84, %c0_85] : memref<2x128xf32, #tpu.memory_space<vmem>>, vector<2x128xf32>
      tpu.vector_store %arg28[%c0_84, %c0_85], %190 {strides = array<i32>} : memref<2x128xf32, #tpu.memory_space<vmem>>, vector<2x128xf32>,
    } else {
    }
    return
  }
  func.func @transform_0(%arg0: i32) -> (i32, i32) {
    %c0_i32 = arith.constant 0 : i32
    %c0_i32_0 = arith.constant 0 : i32
    %c0_i32_1 = arith.constant 0 : i32
    return %c0_i32, %c0_i32_0 : i32, i32
  }
  func.func @transform_1(%arg0: i32) -> (i32, i32) {
    %c0_i32 = arith.constant 0 : i32
    %c0_i32_0 = arith.constant 0 : i32
    %c0_i32_1 = arith.constant 0 : i32
    return %c0_i32, %c0_i32_0 : i32, i32
  }
  func.func @transform_2(%arg0: i32) -> (i32, i32) {
    %c0_i32 = arith.constant 0 : i32
    %c0_i32_0 = arith.constant 0 : i32
    %c0_i32_1 = arith.constant 0 : i32
    return %c0_i32, %c0_i32_0 : i32, i32
  }
  func.func @transform_3(%arg0: i32) -> (i32, i32) {
    %c0_i32 = arith.constant 0 : i32
    %c0_i32_0 = arith.constant 0 : i32
    %c0_i32_1 = arith.constant 0 : i32
    return %c0_i32, %c0_i32_0 : i32, i32
  }
  func.func @transform_4(%arg0: i32) -> (i32, i32) {
    %c0_i32 = arith.constant 0 : i32
    %c0_i32_0 = arith.constant 0 : i32
    %c0_i32_1 = arith.constant 0 : i32
    return %c0_i32, %c0_i32_0 : i32, i32
  }
  func.func @transform_5(%arg0: i32) -> (i32, i32) {
    %c0_i32 = arith.constant 0 : i32
    %c0_i32_0 = arith.constant 0 : i32
    %c0_i32_1 = arith.constant 0 : i32
    return %c0_i32, %c0_i32_0 : i32, i32
  }
  func.func @transform_6(%arg0: i32) -> (i32, i32) {
    %c0_i32 = arith.constant 0 : i32
    %c0_i32_0 = arith.constant 0 : i32
    %c0_i32_1 = arith.constant 0 : i32
    return %c0_i32, %c0_i32_0 : i32, i32
  }
  func.func @transform_7(%arg0: i32) -> (i32, i32) {
    %c0_i32 = arith.constant 0 : i32
    %c0_i32_0 = arith.constant 0 : i32
    %c0_i32_1 = arith.constant 0 : i32
    return %c0_i32, %c0_i32_0 : i32, i32
  }
  func.func @transform_8(%arg0: i32) -> (i32, i32) {
    %c0_i32 = arith.constant 0 : i32
    %c0_i32_0 = arith.constant 0 : i32
    %c0_i32_1 = arith.constant 0 : i32
    return %c0_i32, %c0_i32_0 : i32, i32
  }
  func.func @transform_9(%arg0: i32) -> (i32, i32) {
    %c0_i32 = arith.constant 0 : i32
    %c0_i32_0 = arith.constant 0 : i32
    %c0_i32_1 = arith.constant 0 : i32
    return %c0_i32, %c0_i32_0 : i32, i32
  }
  func.func @transform_10(%arg0: i32) -> (i32, i32) {
    %c0_i32 = arith.constant 0 : i32
    %c0_i32_0 = arith.constant 0 : i32
    %c0_i32_1 = arith.constant 0 : i32
    return %c0_i32, %c0_i32_0 : i32, i32
  }
  func.func @transform_11(%arg0: i32) -> (i32, i32, i32) {
    %c0_i32 = arith.constant 0 : i32
    %c0_i32_0 = arith.constant 0 : i32
    %c0_i32_1 = arith.constant 0 : i32
    return %arg0, %c0_i32, %c0_i32_0 : i32, i32, i32
  }
  func.func @transform_12(%arg0: i32) -> (i32, i32, i32) {
    %c0_i32 = arith.constant 0 : i32
    %c0_i32_0 = arith.constant 0 : i32
    %c0_i32_1 = arith.constant 0 : i32
    return %arg0, %c0_i32, %c0_i32_0 : i32, i32, i32
  }
  func.func @transform_13(%arg0: i32) -> (i32, i32, i32) {
    %c0_i32 = arith.constant 0 : i32
    %c0_i32_0 = arith.constant 0 : i32
    %c0_i32_1 = arith.constant 0 : i32
    return %arg0, %c0_i32, %c0_i32_0 : i32, i32, i32
  }
  func.func @transform_14(%arg0: i32) -> (i32, i32, i32) {
    %c0_i32 = arith.constant 0 : i32
    %c0_i32_0 = arith.constant 0 : i32
    %c0_i32_1 = arith.constant 0 : i32
    return %arg0, %c0_i32, %c0_i32_0 : i32, i32, i32
  }
  func.func @transform_15(%arg0: i32) -> (i32, i32, i32) {
    %c0_i32 = arith.constant 0 : i32
    %c0_i32_0 = arith.constant 0 : i32
    %c0_i32_1 = arith.constant 0 : i32
    return %arg0, %c0_i32, %c0_i32_0 : i32, i32, i32
  }
  func.func @transform_16(%arg0: i32) -> (i32, i32, i32) {
    %c0_i32 = arith.constant 0 : i32
    %c0_i32_0 = arith.constant 0 : i32
    %c0_i32_1 = arith.constant 0 : i32
    return %arg0, %c0_i32, %c0_i32_0 : i32, i32, i32
  }
  func.func @transform_17(%arg0: i32) -> (i32, i32, i32) {
    %c0_i32 = arith.constant 0 : i32
    %c0_i32_0 = arith.constant 0 : i32
    %c0_i32_1 = arith.constant 0 : i32
    return %arg0, %c0_i32, %c0_i32_0 : i32, i32, i32
  }
  func.func @transform_18(%arg0: i32) -> (i32, i32, i32) {
    %c0_i32 = arith.constant 0 : i32
    %c0_i32_0 = arith.constant 0 : i32
    %c0_i32_1 = arith.constant 0 : i32
    return %arg0, %c0_i32, %c0_i32_0 : i32, i32, i32
  }
  func.func @transform_19(%arg0: i32) -> (i32, i32, i32) {
    %c0_i32 = arith.constant 0 : i32
    %c0_i32_0 = arith.constant 0 : i32
    %c0_i32_1 = arith.constant 0 : i32
    return %arg0, %c0_i32, %c0_i32_0 : i32, i32, i32
  }
  func.func @transform_20(%arg0: i32) -> (i32, i32, i32) {
    %c0_i32 = arith.constant 0 : i32
    %c0_i32_0 = arith.constant 0 : i32
    %c0_i32_1 = arith.constant 0 : i32
    return %arg0, %c0_i32, %c0_i32_0 : i32, i32, i32
  }
  func.func @transform_21(%arg0: i32) -> (i32, i32, i32) {
    %c0_i32 = arith.constant 0 : i32
    %c0_i32_0 = arith.constant 0 : i32
    %c0_i32_1 = arith.constant 0 : i32
    return %arg0, %c0_i32, %c0_i32_0 : i32, i32, i32
  }
  func.func @transform_22(%arg0: i32) -> (i32, i32, i32) {
    %c0_i32 = arith.constant 0 : i32
    %c0_i32_0 = arith.constant 0 : i32
    %c0_i32_1 = arith.constant 0 : i32
    return %arg0, %c0_i32, %c0_i32_0 : i32, i32, i32
  }
  func.func @transform_23(%arg0: i32) -> (i32, i32) {
    %c0_i32 = arith.constant 0 : i32
    %c0_i32_0 = arith.constant 0 : i32
    %c0_i32_1 = arith.constant 0 : i32
    return %c0_i32, %c0_i32_0 : i32, i32
  }
  func.func @transform_24(%arg0: i32) -> (i32, i32) {
    %c0_i32 = arith.constant 0 : i32
    %c0_i32_0 = arith.constant 0 : i32
    %c0_i32_1 = arith.constant 0 : i32
    return %c0_i32, %c0_i32_0 : i32, i32
  }
  func.func @transform_25(%arg0: i32) -> (i32, i32) {
    %c0_i32 = arith.constant 0 : i32
    %c0_i32_0 = arith.constant 0 : i32
    %c0_i32_1 = arith.constant 0 : i32
    return %c0_i32, %c0_i32_0 : i32, i32
  }
  func.func @transform_26(%arg0: i32) -> (i32, i32) {
    %c0_i32 = arith.constant 0 : i32
    %c0_i32_0 = arith.constant 0 : i32
    %c0_i32_1 = arith.constant 0 : i32
    return %c0_i32, %c0_i32_0 : i32, i32
  }
  func.func @transform_27(%arg0: i32) -> (i32, i32) {
    %c0_i32 = arith.constant 0 : i32
    %c0_i32_0 = arith.constant 0 : i32
    %c0_i32_1 = arith.constant 0 : i32
    return %c0_i32, %c0_i32_0 : i32, i32
  }
}

</mosaic_0001>

<llo_original>
// kernel: forward.1
$region0: #{forward.1}
  #allocation0 [shape = 'u32[]', space=smem, size = 0x4, offset = 0x4, fixed_abs, tag = 'smem constant byte address 0x4 - core index']
  #allocation1 [shape = 'u32[144,128]{1,0:T(1,128)}', space=vmem, size = 0x12000, scoped, tag = 'internal scratch']
  #allocation2 [shape = 'f32[18,128]{1,0:T(8,128)}', space=vmem, size = 0x3000, scoped, tag = 'scratch operand']
  %s0 = inlined_call_operand.vmem [shape: f32[256,4], index: 0, kind: input, shape index: {}]
  %s1 = inlined_call_operand.vmem [shape: bf16[4,32], index: 1, kind: input, shape index: {}]
  %s2 = inlined_call_operand.vmem [shape: f32[1,32], index: 2, kind: input, shape index: {}]
  %s3 = inlined_call_operand.vmem [shape: bf16[32,64], index: 3, kind: input, shape index: {}]
  %s4 = inlined_call_operand.vmem [shape: f32[1,64], index: 4, kind: input, shape index: {}]
  %s5 = inlined_call_operand.vmem [shape: bf16[64,128], index: 5, kind: input, shape index: {}]
  %s6 = inlined_call_operand.vmem [shape: bf16[64,128], index: 6, kind: input, shape index: {}]
  %s7 = inlined_call_operand.vmem [shape: f32[1,128], index: 7, kind: input, shape index: {}]
  %s8 = inlined_call_operand.vmem [shape: f32[2,128], index: 8, kind: input, shape index: {}]
  %s9 = inlined_call_operand.vmem [shape: f32[16,128], index: 9, kind: input, shape index: {}]
  %s10 = inlined_call_operand.vmem [shape: f32[18,18], index: 10, kind: input, shape index: {}]
  %s11 = inlined_call_operand.hbm [shape: bf16[4,128,384], index: 11, kind: input, shape index: {}]
  %s12 = inlined_call_operand.vmem [shape: f32[4,1,384], index: 12, kind: input, shape index: {}]
  %s13 = inlined_call_operand.vmem [shape: bf16[4,128,128], index: 13, kind: input, shape index: {}]
  %s14 = inlined_call_operand.vmem [shape: f32[4,1,128], index: 14, kind: input, shape index: {}]
  %s15 = inlined_call_operand.vmem [shape: f32[4,1,128], index: 15, kind: input, shape index: {}]
  %s16 = inlined_call_operand.vmem [shape: f32[4,1,128], index: 16, kind: input, shape index: {}]
  %s17 = inlined_call_operand.hbm [shape: bf16[4,128,512], index: 17, kind: input, shape index: {}]
  %s18 = inlined_call_operand.vmem [shape: f32[4,1,512], index: 18, kind: input, shape index: {}]
  %s19 = inlined_call_operand.hbm [shape: bf16[4,512,128], index: 19, kind: input, shape index: {}]
  %s20 = inlined_call_operand.vmem [shape: f32[4,1,128], index: 20, kind: input, shape index: {}]
  %s21 = inlined_call_operand.vmem [shape: f32[4,1,128], index: 21, kind: input, shape index: {}]
  %s22 = inlined_call_operand.vmem [shape: f32[4,1,128], index: 22, kind: input, shape index: {}]
  %s23 = inlined_call_operand.vmem [shape: bf16[128,64], index: 23, kind: input, shape index: {}]
  %s24 = inlined_call_operand.vmem [shape: f32[1,64], index: 24, kind: input, shape index: {}]
  %s25 = inlined_call_operand.vmem [shape: bf16[64,128], index: 25, kind: input, shape index: {}]
  %s26 = inlined_call_operand.vmem [shape: f32[1,128], index: 26, kind: input, shape index: {}]
  %s27 = inlined_call_operand.hbm [shape: f32[2,128], index: 27, kind: output, shape index: {}]
  %s28 = sld [smem:[#allocation0]]
  $region165: #{forward.1} parent=0
    _
  %s30 = ssub.s32 1, %s28
  %s31 = scalar_select 0, %s30, %s28
  $region1: #{forward.1} parent=0
    #allocation3 [shape = 'u8[196608]{0}', space=vmem, size = 0x30000, scoped, tag = 'input window, operand 11']
    #allocation4 [shape = 's32[2]{0}', space=sflag, size = 0x8, scoped, tag = 'scoped memory for forward.1']
    #allocation5 [shape = 's32[2]{0}', space=sflag, size = 0x8, scoped, tag = 'scoped memory for forward.1']
    #allocation6 [shape = 'u8[262144]{0}', space=vmem, size = 0x40000, scoped, tag = 'input window, operand 17']
    #allocation7 [shape = 's32[2]{0}', space=sflag, size = 0x8, scoped, tag = 'scoped memory for forward.1']
    #allocation8 [shape = 'u8[262144]{0}', space=vmem, size = 0x40000, scoped, tag = 'input window, operand 19']
    #allocation9 [shape = 'u8[1024]{0}', space=vmem, size = 0x400, scoped, tag = 'output window, operand 0, single buffered']
    %32 = vsyncpa [#allocation4], 0
    %s33 = scalar_lea.sflag [#allocation4], 1
    %34 = vsyncpa %s33, 0
    %35 = vsyncpa [#allocation7], 0
    %s36 = scalar_lea.sflag [#allocation7], 1
    %37 = vsyncpa %s36, 0
    %38 = vsyncpa [#allocation5], 0
    loop: start=0, step=1, limit=6
    $region2: #{forward.1} parent=1 // loop_pre_header
      _
    $region3: #{forward.1} parent=1 // loop_header
      %s40 = sphi 0, %s44
      %p41 = scmp.ge.s32.totalorder %s40, 6
      %s48 = sphi 0, %s48
      %s50 = sphi 0, %s48
      %s51 = sphi 0, %s50
      %s65 = sphi 0, %s51
      %s69 = sphi 0, %s69
      %s71 = sphi 0, %s69
      %s72 = sphi 0, %s71
      %s86 = sphi 0, %s72
      %s90 = sphi 0, %s90
      %s92 = sphi 0, %s90
      %s93 = sphi 0, %s92
      %s107 = sphi 0, %s93
      %s111 = sphi 0, %s111
      %s113 = sphi 0, %s111
      %s114 = sphi 0, %s113
      %s128 = sphi 0, %s114
      %s132 = sphi 0, %s132
      %s134 = sphi 0, %s132
      %s135 = sphi 0, %s134
      %s149 = sphi 0, %s135
      %s153 = sphi 0, %s153
      %s155 = sphi 0, %s153
      %s156 = sphi 0, %s155
      %s170 = sphi 0, %s156
      %s174 = sphi 0, %s174
      %s176 = sphi 0, %s174
      %s177 = sphi 0, %s176
      %s191 = sphi 0, %s177
      %s195 = sphi 0, %s195
      %s197 = sphi 0, %s195
      %s198 = sphi 0, %s197
      %s212 = sphi 0, %s198
      %s216 = sphi 0, %s216
      %s218 = sphi 0, %s216
      %s219 = sphi 0, %s218
      %s233 = sphi 0, %s219
      %s237 = sphi 0, %s237
      %s239 = sphi 0, %s237
      %s240 = sphi 0, %s239
      %s254 = sphi 0, %s240
      %s258 = sphi 0, %s258
      %s260 = sphi 0, %s258
      %s261 = sphi 0, %s260
      %s275 = sphi 0, %s261
      %s281 = sphi 0, %s283
      %s284 = sphi 0, %s281
      %s285 = sphi 0, %s284
      %s301 = sphi 0, %s285
      %s307 = sphi 0, %s309
      %s310 = sphi 0, %s307
      %s311 = sphi 0, %s310
      %s327 = sphi 0, %s311
      %s333 = sphi 0, %s335
      %s336 = sphi 0, %s333
      %s337 = sphi 0, %s336
      %s353 = sphi 0, %s337
      %s359 = sphi 0, %s361
      %s362 = sphi 0, %s359
      %s363 = sphi 0, %s362
      %s379 = sphi 0, %s363
      %s385 = sphi 0, %s387
      %s388 = sphi 0, %s385
      %s389 = sphi 0, %s388
      %s405 = sphi 0, %s389
      %s411 = sphi 0, %s413
      %s414 = sphi 0, %s411
      %s415 = sphi 0, %s414
      %s431 = sphi 0, %s415
      %s437 = sphi 0, %s439
      %s440 = sphi 0, %s437
      %s441 = sphi 0, %s440
      %s457 = sphi 0, %s441
      %s463 = sphi 0, %s465
      %s466 = sphi 0, %s463
      %s467 = sphi 0, %s466
      %s483 = sphi 0, %s467
      %s489 = sphi 0, %s491
      %s492 = sphi 0, %s489
      %s493 = sphi 0, %s492
      %s509 = sphi 0, %s493
      %s515 = sphi 0, %s517
      %s518 = sphi 0, %s515
      %s519 = sphi 0, %s518
      %s535 = sphi 0, %s519
      %s541 = sphi 0, %s543
      %s544 = sphi 0, %s541
      %s545 = sphi 0, %s544
      %s561 = sphi 0, %s545
      %s567 = sphi 0, %s569
      %s570 = sphi 0, %s567
      %s571 = sphi 0, %s570
      %s587 = sphi 0, %s571
      %s591 = sphi 0, %s591
      %s593 = sphi 0, %s591
      %s594 = sphi 0, %s593
      %s608 = sphi 0, %s594
      %s612 = sphi 0, %s612
      %s614 = sphi 0, %s612
      %s615 = sphi 0, %s614
      %s629 = sphi 0, %s615
      %s633 = sphi 0, %s633
      %s635 = sphi 0, %s633
      %s636 = sphi 0, %s635
      %s650 = sphi 0, %s636
      %s654 = sphi 0, %s654
      %s656 = sphi 0, %s654
      %s657 = sphi 0, %s656
      %s671 = sphi 0, %s657
      %s675 = sphi 0, %s675
      %s677 = sphi 0, %s675
      %s678 = sphi 0, %s677
      %s692 = sphi 0, %s678
    $region4: #{forward.1} parent=1 // loop_header_branch
      %43 = sbr.rel (%p41) target = $region8
    $region5: #{forward.1} parent=1 // loop_body
      %s45 = ssub.s32 %s40, 1
      %s46 = ssub.s32 %s40, 2
      %s47 = sadd.s32 %s40, 1
      %s49 = sadd.s32 %s48, 1
      %p52 = scmp.eq.s32.totalorder %s40, 3
      %p53 = scmp.ne.s32.totalorder %s48, %s50
      %p54 = scmp.eq.s32.totalorder %s40, 0
      %p55 = por %p53, %p54
      %p56 = scmp.ne.s32.totalorder %s48, %s50
      %p57 = scmp.eq.s32.totalorder %s45, 3
      %p58 = por %p56, %p57
      %p59 = scmp.ne.s32.totalorder %s50, %s51
      %p60 = scmp.eq.s32.totalorder %s45, 0
      %p61 = por %p59, %p60
      %p62 = scmp.ne.s32.totalorder %s50, %s51
      %p63 = scmp.eq.s32.totalorder %s46, 3
      %p64 = por %p62, %p63
      %p66 = scmp.ne.s32.totalorder %s51, %s65
      %p67 = scmp.eq.s32.totalorder %s46, 0
      %p68 = por %p66, %p67
      %s70 = sadd.s32 %s69, 1
      %p73 = scmp.eq.s32.totalorder %s40, 3
      %p74 = scmp.ne.s32.totalorder %s69, %s71
      %p75 = scmp.eq.s32.totalorder %s40, 0
      %p76 = por %p74, %p75
      %p77 = scmp.ne.s32.totalorder %s69, %s71
      %p78 = scmp.eq.s32.totalorder %s45, 3
      %p79 = por %p77, %p78
      %p80 = scmp.ne.s32.totalorder %s71, %s72
      %p81 = scmp.eq.s32.totalorder %s45, 0
      %p82 = por %p80, %p81
      %p83 = scmp.ne.s32.totalorder %s71, %s72
      %p84 = scmp.eq.s32.totalorder %s46, 3
      %p85 = por %p83, %p84
      %p87 = scmp.ne.s32.totalorder %s72, %s86
      %p88 = scmp.eq.s32.totalorder %s46, 0
      %p89 = por %p87, %p88
      %s91 = sadd.s32 %s90, 1
      %p94 = scmp.eq.s32.totalorder %s40, 3
      %p95 = scmp.ne.s32.totalorder %s90, %s92
      %p96 = scmp.eq.s32.totalorder %s40, 0
      %p97 = por %p95, %p96
      %p98 = scmp.ne.s32.totalorder %s90, %s92
      %p99 = scmp.eq.s32.totalorder %s45, 3
      %p100 = por %p98, %p99
      %p101 = scmp.ne.s32.totalorder %s92, %s93
      %p102 = scmp.eq.s32.totalorder %s45, 0
      %p103 = por %p101, %p102
      %p104 = scmp.ne.s32.totalorder %s92, %s93
      %p105 = scmp.eq.s32.totalorder %s46, 3
      %p106 = por %p104, %p105
      %p108 = scmp.ne.s32.totalorder %s93, %s107
      %p109 = scmp.eq.s32.totalorder %s46, 0
      %p110 = por %p108, %p109
      %s112 = sadd.s32 %s111, 1
      %p115 = scmp.eq.s32.totalorder %s40, 3
      %p116 = scmp.ne.s32.totalorder %s111, %s113
      %p117 = scmp.eq.s32.totalorder %s40, 0
      %p118 = por %p116, %p117
      %p119 = scmp.ne.s32.totalorder %s111, %s113
      %p120 = scmp.eq.s32.totalorder %s45, 3
      %p121 = por %p119, %p120
      %p122 = scmp.ne.s32.totalorder %s113, %s114
      %p123 = scmp.eq.s32.totalorder %s45, 0
      %p124 = por %p122, %p123
      %p125 = scmp.ne.s32.totalorder %s113, %s114
      %p126 = scmp.eq.s32.totalorder %s46, 3
      %p127 = por %p125, %p126
      %p129 = scmp.ne.s32.totalorder %s114, %s128
      %p130 = scmp.eq.s32.totalorder %s46, 0
      %p131 = por %p129, %p130
      %s133 = sadd.s32 %s132, 1
      %p136 = scmp.eq.s32.totalorder %s40, 3
      %p137 = scmp.ne.s32.totalorder %s132, %s134
      %p138 = scmp.eq.s32.totalorder %s40, 0
      %p139 = por %p137, %p138
      %p140 = scmp.ne.s32.totalorder %s132, %s134
      %p141 = scmp.eq.s32.totalorder %s45, 3
      %p142 = por %p140, %p141
      %p143 = scmp.ne.s32.totalorder %s134, %s135
      %p144 = scmp.eq.s32.totalorder %s45, 0
      %p145 = por %p143, %p144
      %p146 = scmp.ne.s32.totalorder %s134, %s135
      %p147 = scmp.eq.s32.totalorder %s46, 3
      %p148 = por %p146, %p147
      %p150 = scmp.ne.s32.totalorder %s135, %s149
      %p151 = scmp.eq.s32.totalorder %s46, 0
      %p152 = por %p150, %p151
      %s154 = sadd.s32 %s153, 1
      %p157 = scmp.eq.s32.totalorder %s40, 3
      %p158 = scmp.ne.s32.totalorder %s153, %s155
      %p159 = scmp.eq.s32.totalorder %s40, 0
      %p160 = por %p158, %p159
      %p161 = scmp.ne.s32.totalorder %s153, %s155
      %p162 = scmp.eq.s32.totalorder %s45, 3
      %p163 = por %p161, %p162
      %p164 = scmp.ne.s32.totalorder %s155, %s156
      %p165 = scmp.eq.s32.totalorder %s45, 0
      %p166 = por %p164, %p165
      %p167 = scmp.ne.s32.totalorder %s155, %s156
      %p168 = scmp.eq.s32.totalorder %s46, 3
      %p169 = por %p167, %p168
      %p171 = scmp.ne.s32.totalorder %s156, %s170
      %p172 = scmp.eq.s32.totalorder %s46, 0
      %p173 = por %p171, %p172
      %s175 = sadd.s32 %s174, 1
      %p178 = scmp.eq.s32.totalorder %s40, 3
      %p179 = scmp.ne.s32.totalorder %s174, %s176
      %p180 = scmp.eq.s32.totalorder %s40, 0
      %p181 = por %p179, %p180
      %p182 = scmp.ne.s32.totalorder %s174, %s176
      %p183 = scmp.eq.s32.totalorder %s45, 3
      %p184 = por %p182, %p183
      %p185 = scmp.ne.s32.totalorder %s176, %s177
      %p186 = scmp.eq.s32.totalorder %s45, 0
      %p187 = por %p185, %p186
      %p188 = scmp.ne.s32.totalorder %s176, %s177
      %p189 = scmp.eq.s32.totalorder %s46, 3
      %p190 = por %p188, %p189
      %p192 = scmp.ne.s32.totalorder %s177, %s191
      %p193 = scmp.eq.s32.totalorder %s46, 0
      %p194 = por %p192, %p193
      %s196 = sadd.s32 %s195, 1
      %p199 = scmp.eq.s32.totalorder %s40, 3
      %p200 = scmp.ne.s32.totalorder %s195, %s197
      %p201 = scmp.eq.s32.totalorder %s40, 0
      %p202 = por %p200, %p201
      %p203 = scmp.ne.s32.totalorder %s195, %s197
      %p204 = scmp.eq.s32.totalorder %s45, 3
      %p205 = por %p203, %p204
      %p206 = scmp.ne.s32.totalorder %s197, %s198
      %p207 = scmp.eq.s32.totalorder %s45, 0
      %p208 = por %p206, %p207
      %p209 = scmp.ne.s32.totalorder %s197, %s198
      %p210 = scmp.eq.s32.totalorder %s46, 3
      %p211 = por %p209, %p210
      %p213 = scmp.ne.s32.totalorder %s198, %s212
      %p214 = scmp.eq.s32.totalorder %s46, 0
      %p215 = por %p213, %p214
      %s217 = sadd.s32 %s216, 1
      %p220 = scmp.eq.s32.totalorder %s40, 3
      %p221 = scmp.ne.s32.totalorder %s216, %s218
      %p222 = scmp.eq.s32.totalorder %s40, 0
      %p223 = por %p221, %p222
      %p224 = scmp.ne.s32.totalorder %s216, %s218
      %p225 = scmp.eq.s32.totalorder %s45, 3
      %p226 = por %p224, %p225
      %p227 = scmp.ne.s32.totalorder %s218, %s219
      %p228 = scmp.eq.s32.totalorder %s45, 0
      %p229 = por %p227, %p228
      %p230 = scmp.ne.s32.totalorder %s218, %s219
      %p231 = scmp.eq.s32.totalorder %s46, 3
      %p232 = por %p230, %p231
      %p234 = scmp.ne.s32.totalorder %s219, %s233
      %p235 = scmp.eq.s32.totalorder %s46, 0
      %p236 = por %p234, %p235
      %s238 = sadd.s32 %s237, 1
      %p241 = scmp.eq.s32.totalorder %s40, 3
      %p242 = scmp.ne.s32.totalorder %s237, %s239
      %p243 = scmp.eq.s32.totalorder %s40, 0
      %p244 = por %p242, %p243
      %p245 = scmp.ne.s32.totalorder %s237, %s239
      %p246 = scmp.eq.s32.totalorder %s45, 3
      %p247 = por %p245, %p246
      %p248 = scmp.ne.s32.totalorder %s239, %s240
      %p249 = scmp.eq.s32.totalorder %s45, 0
      %p250 = por %p248, %p249
      %p251 = scmp.ne.s32.totalorder %s239, %s240
      %p252 = scmp.eq.s32.totalorder %s46, 3
      %p253 = por %p251, %p252
      %p255 = scmp.ne.s32.totalorder %s240, %s254
      %p256 = scmp.eq.s32.totalorder %s46, 0
      %p257 = por %p255, %p256
      %s259 = sadd.s32 %s258, 1
      %p262 = scmp.eq.s32.totalorder %s40, 3
      %p263 = scmp.ne.s32.totalorder %s258, %s260
      %p264 = scmp.eq.s32.totalorder %s40, 0
      %p265 = por %p263, %p264
      %p266 = scmp.ne.s32.totalorder %s258, %s260
      %p267 = scmp.eq.s32.totalorder %s45, 3
      %p268 = por %p266, %p267
      %p269 = scmp.ne.s32.totalorder %s260, %s261
      %p270 = scmp.eq.s32.totalorder %s45, 0
      %p271 = por %p269, %p270
      %p272 = scmp.ne.s32.totalorder %s260, %s261
      %p273 = scmp.eq.s32.totalorder %s46, 3
      %p274 = por %p272, %p273
      %p276 = scmp.ne.s32.totalorder %s261, %s275
      %p277 = scmp.eq.s32.totalorder %s46, 0
      %p278 = por %p276, %p277
      %s279 = ssub.s32 %s40, %s47
      %p280 = scmp.eq.s32.totalorder %s279, 0
      %s282 = sadd.s32 %s281, 1
      %s283 = scalar_select %p280, %s281, %s282
      %p286 = pneg %p280
      %p287 = scmp.eq.s32.totalorder %s40, 3
      %p288 = por %p286, %p287
      %p289 = scmp.ne.s32.totalorder %s281, %s284
      %p290 = scmp.eq.s32.totalorder %s40, 0
      %p291 = por %p289, %p290
      %p292 = scmp.ne.s32.totalorder %s281, %s284
      %p293 = scmp.eq.s32.totalorder %s45, 3
      %p294 = por %p292, %p293
      %p295 = scmp.ne.s32.totalorder %s284, %s285
      %p296 = scmp.eq.s32.totalorder %s45, 0
      %p297 = por %p295, %p296
      %p298 = scmp.ne.s32.totalorder %s284, %s285
      %p299 = scmp.eq.s32.totalorder %s46, 3
      %p300 = por %p298, %p299
      %p302 = scmp.ne.s32.totalorder %s285, %s301
      %p303 = scmp.eq.s32.totalorder %s46, 0
      %p304 = por %p302, %p303
      %s305 = ssub.s32 %s40, %s47
      %p306 = scmp.eq.s32.totalorder %s305, 0
      %s308 = sadd.s32 %s307, 1
      %s309 = scalar_select %p306, %s307, %s308
      %p312 = pneg %p306
      %p313 = scmp.eq.s32.totalorder %s40, 3
      %p314 = por %p312, %p313
      %p315 = scmp.ne.s32.totalorder %s307, %s310
      %p316 = scmp.eq.s32.totalorder %s40, 0
      %p317 = por %p315, %p316
      %p318 = scmp.ne.s32.totalorder %s307, %s310
      %p319 = scmp.eq.s32.totalorder %s45, 3
      %p320 = por %p318, %p319
      %p321 = scmp.ne.s32.totalorder %s310, %s311
      %p322 = scmp.eq.s32.totalorder %s45, 0
      %p323 = por %p321, %p322
      %p324 = scmp.ne.s32.totalorder %s310, %s311
      %p325 = scmp.eq.s32.totalorder %s46, 3
      %p326 = por %p324, %p325
      %p328 = scmp.ne.s32.totalorder %s311, %s327
      %p329 = scmp.eq.s32.totalorder %s46, 0
      %p330 = por %p328, %p329
      %s331 = ssub.s32 %s40, %s47
      %p332 = scmp.eq.s32.totalorder %s331, 0
      %s334 = sadd.s32 %s333, 1
      %s335 = scalar_select %p332, %s333, %s334
      %p338 = pneg %p332
      %p339 = scmp.eq.s32.totalorder %s40, 3
      %p340 = por %p338, %p339
      %p341 = scmp.ne.s32.totalorder %s333, %s336
      %p342 = scmp.eq.s32.totalorder %s40, 0
      %p343 = por %p341, %p342
      %p344 = scmp.ne.s32.totalorder %s333, %s336
      %p345 = scmp.eq.s32.totalorder %s45, 3
      %p346 = por %p344, %p345
      %p347 = scmp.ne.s32.totalorder %s336, %s337
      %p348 = scmp.eq.s32.totalorder %s45, 0
      %p349 = por %p347, %p348
      %p350 = scmp.ne.s32.totalorder %s336, %s337
      %p351 = scmp.eq.s32.totalorder %s46, 3
      %p352 = por %p350, %p351
      %p354 = scmp.ne.s32.totalorder %s337, %s353
      %p355 = scmp.eq.s32.totalorder %s46, 0
      %p356 = por %p354, %p355
      %s357 = ssub.s32 %s40, %s47
      %p358 = scmp.eq.s32.totalorder %s357, 0
      %s360 = sadd.s32 %s359, 1
      %s361 = scalar_select %p358, %s359, %s360
      %p364 = pneg %p358
      %p365 = scmp.eq.s32.totalorder %s40, 3
      %p366 = por %p364, %p365
      %p367 = scmp.ne.s32.totalorder %s359, %s362
      %p368 = scmp.eq.s32.totalorder %s40, 0
      %p369 = por %p367, %p368
      %p370 = scmp.ne.s32.totalorder %s359, %s362
      %p371 = scmp.eq.s32.totalorder %s45, 3
      %p372 = por %p370, %p371
      %p373 = scmp.ne.s32.totalorder %s362, %s363
      %p374 = scmp.eq.s32.totalorder %s45, 0
      %p375 = por %p373, %p374
      %p376 = scmp.ne.s32.totalorder %s362, %s363
      %p377 = scmp.eq.s32.totalorder %s46, 3
      %p378 = por %p376, %p377
      %p380 = scmp.ne.s32.totalorder %s363, %s379
      %p381 = scmp.eq.s32.totalorder %s46, 0
      %p382 = por %p380, %p381
      %s383 = ssub.s32 %s40, %s47
      %p384 = scmp.eq.s32.totalorder %s383, 0
      %s386 = sadd.s32 %s385, 1
      %s387 = scalar_select %p384, %s385, %s386
      %p390 = pneg %p384
      %p391 = scmp.eq.s32.totalorder %s40, 3
      %p392 = por %p390, %p391
      %p393 = scmp.ne.s32.totalorder %s385, %s388
      %p394 = scmp.eq.s32.totalorder %s40, 0
      %p395 = por %p393, %p394
      %p396 = scmp.ne.s32.totalorder %s385, %s388
      %p397 = scmp.eq.s32.totalorder %s45, 3
      %p398 = por %p396, %p397
      %p399 = scmp.ne.s32.totalorder %s388, %s389
      %p400 = scmp.eq.s32.totalorder %s45, 0
      %p401 = por %p399, %p400
      %p402 = scmp.ne.s32.totalorder %s388, %s389
      %p403 = scmp.eq.s32.totalorder %s46, 3
      %p404 = por %p402, %p403
      %p406 = scmp.ne.s32.totalorder %s389, %s405
      %p407 = scmp.eq.s32.totalorder %s46, 0
      %p408 = por %p406, %p407
      %s409 = ssub.s32 %s40, %s47
      %p410 = scmp.eq.s32.totalorder %s409, 0
      %s412 = sadd.s32 %s411, 1
      %s413 = scalar_select %p410, %s411, %s412
      %p416 = pneg %p410
      %p417 = scmp.eq.s32.totalorder %s40, 3
      %p418 = por %p416, %p417
      %p419 = scmp.ne.s32.totalorder %s411, %s414
      %p420 = scmp.eq.s32.totalorder %s40, 0
      %p421 = por %p419, %p420
      %p422 = scmp.ne.s32.totalorder %s411, %s414
      %p423 = scmp.eq.s32.totalorder %s45, 3
      %p424 = por %p422, %p423
      %p425 = scmp.ne.s32.totalorder %s414, %s415
      %p426 = scmp.eq.s32.totalorder %s45, 0
      %p427 = por %p425, %p426
      %p428 = scmp.ne.s32.totalorder %s414, %s415
      %p429 = scmp.eq.s32.totalorder %s46, 3
      %p430 = por %p428, %p429
      %p432 = scmp.ne.s32.totalorder %s415, %s431
      %p433 = scmp.eq.s32.totalorder %s46, 0
      %p434 = por %p432, %p433
      %s435 = ssub.s32 %s40, %s47
      %p436 = scmp.eq.s32.totalorder %s435, 0
      %s438 = sadd.s32 %s437, 1
      %s439 = scalar_select %p436, %s437, %s438
      %p442 = pneg %p436
      %p443 = scmp.eq.s32.totalorder %s40, 3
      %p444 = por %p442, %p443
      %p445 = scmp.ne.s32.totalorder %s437, %s440
      %p446 = scmp.eq.s32.totalorder %s40, 0
      %p447 = por %p445, %p446
      %p448 = scmp.ne.s32.totalorder %s437, %s440
      %p449 = scmp.eq.s32.totalorder %s45, 3
      %p450 = por %p448, %p449
      %p451 = scmp.ne.s32.totalorder %s440, %s441
      %p452 = scmp.eq.s32.totalorder %s45, 0
      %p453 = por %p451, %p452
      %p454 = scmp.ne.s32.totalorder %s440, %s441
      %p455 = scmp.eq.s32.totalorder %s46, 3
      %p456 = por %p454, %p455
      %p458 = scmp.ne.s32.totalorder %s441, %s457
      %p459 = scmp.eq.s32.totalorder %s46, 0
      %p460 = por %p458, %p459
      %s461 = ssub.s32 %s40, %s47
      %p462 = scmp.eq.s32.totalorder %s461, 0
      %s464 = sadd.s32 %s463, 1
      %s465 = scalar_select %p462, %s463, %s464
      %p468 = pneg %p462
      %p469 = scmp.eq.s32.totalorder %s40, 3
      %p470 = por %p468, %p469
      %p471 = scmp.ne.s32.totalorder %s463, %s466
      %p472 = scmp.eq.s32.totalorder %s40, 0
      %p473 = por %p471, %p472
      %p474 = scmp.ne.s32.totalorder %s463, %s466
      %p475 = scmp.eq.s32.totalorder %s45, 3
      %p476 = por %p474, %p475
      %p477 = scmp.ne.s32.totalorder %s466, %s467
      %p478 = scmp.eq.s32.totalorder %s45, 0
      %p479 = por %p477, %p478
      %p480 = scmp.ne.s32.totalorder %s466, %s467
      %p481 = scmp.eq.s32.totalorder %s46, 3
      %p482 = por %p480, %p481
      %p484 = scmp.ne.s32.totalorder %s467, %s483
      %p485 = scmp.eq.s32.totalorder %s46, 0
      %p486 = por %p484, %p485
      %s487 = ssub.s32 %s40, %s47
      %p488 = scmp.eq.s32.totalorder %s487, 0
      %s490 = sadd.s32 %s489, 1
      %s491 = scalar_select %p488, %s489, %s490
      %p494 = pneg %p488
      %p495 = scmp.eq.s32.totalorder %s40, 3
      %p496 = por %p494, %p495
      %p497 = scmp.ne.s32.totalorder %s489, %s492
      %p498 = scmp.eq.s32.totalorder %s40, 0
      %p499 = por %p497, %p498
      %p500 = scmp.ne.s32.totalorder %s489, %s492
      %p501 = scmp.eq.s32.totalorder %s45, 3
      %p502 = por %p500, %p501
      %p503 = scmp.ne.s32.totalorder %s492, %s493
      %p504 = scmp.eq.s32.totalorder %s45, 0
      %p505 = por %p503, %p504
      %p506 = scmp.ne.s32.totalorder %s492, %s493
      %p507 = scmp.eq.s32.totalorder %s46, 3
      %p508 = por %p506, %p507
      %p510 = scmp.ne.s32.totalorder %s493, %s509
      %p511 = scmp.eq.s32.totalorder %s46, 0
      %p512 = por %p510, %p511
      %s513 = ssub.s32 %s40, %s47
      %p514 = scmp.eq.s32.totalorder %s513, 0
      %s516 = sadd.s32 %s515, 1
      %s517 = scalar_select %p514, %s515, %s516
      %p520 = pneg %p514
      %p521 = scmp.eq.s32.totalorder %s40, 3
      %p522 = por %p520, %p521
      %p523 = scmp.ne.s32.totalorder %s515, %s518
      %p524 = scmp.eq.s32.totalorder %s40, 0
      %p525 = por %p523, %p524
      %p526 = scmp.ne.s32.totalorder %s515, %s518
      %p527 = scmp.eq.s32.totalorder %s45, 3
      %p528 = por %p526, %p527
      %p529 = scmp.ne.s32.totalorder %s518, %s519
      %p530 = scmp.eq.s32.totalorder %s45, 0
      %p531 = por %p529, %p530
      %p532 = scmp.ne.s32.totalorder %s518, %s519
      %p533 = scmp.eq.s32.totalorder %s46, 3
      %p534 = por %p532, %p533
      %p536 = scmp.ne.s32.totalorder %s519, %s535
      %p537 = scmp.eq.s32.totalorder %s46, 0
      %p538 = por %p536, %p537
      %s539 = ssub.s32 %s40, %s47
      %p540 = scmp.eq.s32.totalorder %s539, 0
      %s542 = sadd.s32 %s541, 1
      %s543 = scalar_select %p540, %s541, %s542
      %p546 = pneg %p540
      %p547 = scmp.eq.s32.totalorder %s40, 3
      %p548 = por %p546, %p547
      %p549 = scmp.ne.s32.totalorder %s541, %s544
      %p550 = scmp.eq.s32.totalorder %s40, 0
      %p551 = por %p549, %p550
      %p552 = scmp.ne.s32.totalorder %s541, %s544
      %p553 = scmp.eq.s32.totalorder %s45, 3
      %p554 = por %p552, %p553
      %p555 = scmp.ne.s32.totalorder %s544, %s545
      %p556 = scmp.eq.s32.totalorder %s45, 0
      %p557 = por %p555, %p556
      %p558 = scmp.ne.s32.totalorder %s544, %s545
      %p559 = scmp.eq.s32.totalorder %s46, 3
      %p560 = por %p558, %p559
      %p562 = scmp.ne.s32.totalorder %s545, %s561
      %p563 = scmp.eq.s32.totalorder %s46, 0
      %p564 = por %p562, %p563
      %s565 = ssub.s32 %s40, %s47
      %p566 = scmp.eq.s32.totalorder %s565, 0
      %s568 = sadd.s32 %s567, 1
      %s569 = scalar_select %p566, %s567, %s568
      %p572 = pneg %p566
      %p573 = scmp.eq.s32.totalorder %s40, 3
      %p574 = por %p572, %p573
      %p575 = scmp.ne.s32.totalorder %s567, %s570
      %p576 = scmp.eq.s32.totalorder %s40, 0
      %p577 = por %p575, %p576
      %p578 = scmp.ne.s32.totalorder %s567, %s570
      %p579 = scmp.eq.s32.totalorder %s45, 3
      %p580 = por %p578, %p579
      %p581 = scmp.ne.s32.totalorder %s570, %s571
      %p582 = scmp.eq.s32.totalorder %s45, 0
      %p583 = por %p581, %p582
      %p584 = scmp.ne.s32.totalorder %s570, %s571
      %p585 = scmp.eq.s32.totalorder %s46, 3
      %p586 = por %p584, %p585
      %p588 = scmp.ne.s32.totalorder %s571, %s587
      %p589 = scmp.eq.s32.totalorder %s46, 0
      %p590 = por %p588, %p589
      %s592 = sadd.s32 %s591, 1
      %p595 = scmp.eq.s32.totalorder %s40, 3
      %p596 = scmp.ne.s32.totalorder %s591, %s593
      %p597 = scmp.eq.s32.totalorder %s40, 0
      %p598 = por %p596, %p597
      %p599 = scmp.ne.s32.totalorder %s591, %s593
      %p600 = scmp.eq.s32.totalorder %s45, 3
      %p601 = por %p599, %p600
      %p602 = scmp.ne.s32.totalorder %s593, %s594
      %p603 = scmp.eq.s32.totalorder %s45, 0
      %p604 = por %p602, %p603
      %p605 = scmp.ne.s32.totalorder %s593, %s594
      %p606 = scmp.eq.s32.totalorder %s46, 3
      %p607 = por %p605, %p606
      %p609 = scmp.ne.s32.totalorder %s594, %s608
      %p610 = scmp.eq.s32.totalorder %s46, 0
      %p611 = por %p609, %p610
      %s613 = sadd.s32 %s612, 1
      %p616 = scmp.eq.s32.totalorder %s40, 3
      %p617 = scmp.ne.s32.totalorder %s612, %s614
      %p618 = scmp.eq.s32.totalorder %s40, 0
      %p619 = por %p617, %p618
      %p620 = scmp.ne.s32.totalorder %s612, %s614
      %p621 = scmp.eq.s32.totalorder %s45, 3
      %p622 = por %p620, %p621
      %p623 = scmp.ne.s32.totalorder %s614, %s615
      %p624 = scmp.eq.s32.totalorder %s45, 0
      %p625 = por %p623, %p624
      %p626 = scmp.ne.s32.totalorder %s614, %s615
      %p627 = scmp.eq.s32.totalorder %s46, 3
      %p628 = por %p626, %p627
      %p630 = scmp.ne.s32.totalorder %s615, %s629
      %p631 = scmp.eq.s32.totalorder %s46, 0
      %p632 = por %p630, %p631
      %s634 = sadd.s32 %s633, 1
      %p637 = scmp.eq.s32.totalorder %s40, 3
      %p638 = scmp.ne.s32.totalorder %s633, %s635
      %p639 = scmp.eq.s32.totalorder %s40, 0
      %p640 = por %p638, %p639
      %p641 = scmp.ne.s32.totalorder %s633, %s635
      %p642 = scmp.eq.s32.totalorder %s45, 3
      %p643 = por %p641, %p642
      %p644 = scmp.ne.s32.totalorder %s635, %s636
      %p645 = scmp.eq.s32.totalorder %s45, 0
      %p646 = por %p644, %p645
      %p647 = scmp.ne.s32.totalorder %s635, %s636
      %p648 = scmp.eq.s32.totalorder %s46, 3
      %p649 = por %p647, %p648
      %p651 = scmp.ne.s32.totalorder %s636, %s650
      %p652 = scmp.eq.s32.totalorder %s46, 0
      %p653 = por %p651, %p652
      %s655 = sadd.s32 %s654, 1
      %p658 = scmp.eq.s32.totalorder %s40, 3
      %p659 = scmp.ne.s32.totalorder %s654, %s656
      %p660 = scmp.eq.s32.totalorder %s40, 0
      %p661 = por %p659, %p660
      %p662 = scmp.ne.s32.totalorder %s654, %s656
      %p663 = scmp.eq.s32.totalorder %s45, 3
      %p664 = por %p662, %p663
      %p665 = scmp.ne.s32.totalorder %s656, %s657
      %p666 = scmp.eq.s32.totalorder %s45, 0
      %p667 = por %p665, %p666
      %p668 = scmp.ne.s32.totalorder %s656, %s657
      %p669 = scmp.eq.s32.totalorder %s46, 3
      %p670 = por %p668, %p669
      %p672 = scmp.ne.s32.totalorder %s657, %s671
      %p673 = scmp.eq.s32.totalorder %s46, 0
      %p674 = por %p672, %p673
      %s676 = sadd.s32 %s675, 1
      %p679 = scmp.eq.s32.totalorder %s40, 3
      %p680 = scmp.ne.s32.totalorder %s675, %s677
      %p681 = scmp.eq.s32.totalorder %s40, 0
      %p682 = por %p680, %p681
      %p683 = scmp.ne.s32.totalorder %s675, %s677
      %p684 = scmp.eq.s32.totalorder %s45, 3
      %p685 = por %p683, %p684
      %p686 = scmp.ne.s32.totalorder %s677, %s678
      %p687 = scmp.eq.s32.totalorder %s45, 0
      %p688 = por %p686, %p687
      %p689 = scmp.ne.s32.totalorder %s677, %s678
      %p690 = scmp.eq.s32.totalorder %s46, 3
      %p691 = por %p689, %p690
      %p693 = scmp.ne.s32.totalorder %s678, %s692
      %p694 = scmp.eq.s32.totalorder %s46, 0
      %p695 = por %p693, %p694
      %p696 = scmp.le.s32.totalorder 1, %s40
      %p697 = scmp.lt.s32.totalorder %s40, 5
      %p698 = pnand %p696, %p697
      %p699 = pneg %p698
      // Predicated region
      $region9: #{forward.1} parent=5 // pred_check
        _
      $region10: #{forward.1} parent=5 // pred_check_branch
        %701 = sbr.rel (%p698) target = $region12
      $region11: #{forward.1} parent=5 // pred_region
        %s702 = ssub.s32 %s40, 1
        // Predicated region
        $region13: #{forward.1} parent=11 // pred_check
          %p703 = pneg %p61
        $region14: #{forward.1} parent=11 // pred_check_branch
          %705 = sbr.rel (%p703) target = $region16
        $region15: #{forward.1} parent=11 // pred_region
          _
        $region16: #{forward.1} parent=11 // pred_fallthru
          _
        // Predicated region
        $region17: #{forward.1} parent=11 // pred_check
          %p706 = pneg %p82
        $region18: #{forward.1} parent=11 // pred_check_branch
          %708 = sbr.rel (%p706) target = $region20
        $region19: #{forward.1} parent=11 // pred_region
          _
        $region20: #{forward.1} parent=11 // pred_fallthru
          _
        // Predicated region
        $region21: #{forward.1} parent=11 // pred_check
          %p709 = pneg %p103
        $region22: #{forward.1} parent=11 // pred_check_branch
          %711 = sbr.rel (%p709) target = $region24
        $region23: #{forward.1} parent=11 // pred_region
          _
        $region24: #{forward.1} parent=11 // pred_fallthru
          _
        // Predicated region
        $region25: #{forward.1} parent=11 // pred_check
          %p712 = pneg %p124
        $region26: #{forward.1} parent=11 // pred_check_branch
          %714 = sbr.rel (%p712) target = $region28
        $region27: #{forward.1} parent=11 // pred_region
          _
        $region28: #{forward.1} parent=11 // pred_fallthru
          _
        // Predicated region
        $region29: #{forward.1} parent=11 // pred_check
          %p715 = pneg %p145
        $region30: #{forward.1} parent=11 // pred_check_branch
          %717 = sbr.rel (%p715) target = $region32
        $region31: #{forward.1} parent=11 // pred_region
          _
        $region32: #{forward.1} parent=11 // pred_fallthru
          _
        // Predicated region
        $region33: #{forward.1} parent=11 // pred_check
          %p718 = pneg %p166
        $region34: #{forward.1} parent=11 // pred_check_branch
          %720 = sbr.rel (%p718) target = $region36
        $region35: #{forward.1} parent=11 // pred_region
          _
        $region36: #{forward.1} parent=11 // pred_fallthru
          _
        // Predicated region
        $region37: #{forward.1} parent=11 // pred_check
          %p721 = pneg %p187
        $region38: #{forward.1} parent=11 // pred_check_branch
          %723 = sbr.rel (%p721) target = $region40
        $region39: #{forward.1} parent=11 // pred_region
          _
        $region40: #{forward.1} parent=11 // pred_fallthru
          _
        // Predicated region
        $region41: #{forward.1} parent=11 // pred_check
          %p724 = pneg %p208
        $region42: #{forward.1} parent=11 // pred_check_branch
          %726 = sbr.rel (%p724) target = $region44
        $region43: #{forward.1} parent=11 // pred_region
          _
        $region44: #{forward.1} parent=11 // pred_fallthru
          _
        // Predicated region
        $region45: #{forward.1} parent=11 // pred_check
          %p727 = pneg %p229
        $region46: #{forward.1} parent=11 // pred_check_branch
          %729 = sbr.rel (%p727) target = $region48
        $region47: #{forward.1} parent=11 // pred_region
          _
        $region48: #{forward.1} parent=11 // pred_fallthru
          _
        // Predicated region
        $region49: #{forward.1} parent=11 // pred_check
          %p730 = pneg %p250
        $region50: #{forward.1} parent=11 // pred_check_branch
          %732 = sbr.rel (%p730) target = $region52
        $region51: #{forward.1} parent=11 // pred_region
          _
        $region52: #{forward.1} parent=11 // pred_fallthru
          _
        // Predicated region
        $region53: #{forward.1} parent=11 // pred_check
          %p733 = pneg %p271
        $region54: #{forward.1} parent=11 // pred_check_branch
          %735 = sbr.rel (%p733) target = $region56
        $region55: #{forward.1} parent=11 // pred_region
          _
        $region56: #{forward.1} parent=11 // pred_fallthru
          _
        // Predicated region
        $region57: #{forward.1} parent=11 // pred_check
          %p736 = pneg %p604
        $region58: #{forward.1} parent=11 // pred_check_branch
          %738 = sbr.rel (%p736) target = $region60
        $region59: #{forward.1} parent=11 // pred_region
          _
        $region60: #{forward.1} parent=11 // pred_fallthru
          _
        // Predicated region
        $region61: #{forward.1} parent=11 // pred_check
          %p739 = pneg %p625
        $region62: #{forward.1} parent=11 // pred_check_branch
          %741 = sbr.rel (%p739) target = $region64
        $region63: #{forward.1} parent=11 // pred_region
          _
        $region64: #{forward.1} parent=11 // pred_fallthru
          _
        // Predicated region
        $region65: #{forward.1} parent=11 // pred_check
          %p742 = pneg %p646
        $region66: #{forward.1} parent=11 // pred_check_branch
          %744 = sbr.rel (%p742) target = $region68
        $region67: #{forward.1} parent=11 // pred_region
          _
        $region68: #{forward.1} parent=11 // pred_fallthru
          _
        // Predicated region
        $region69: #{forward.1} parent=11 // pred_check
          %p745 = pneg %p667
        $region70: #{forward.1} parent=11 // pred_check_branch
          %747 = sbr.rel (%p745) target = $region72
        $region71: #{forward.1} parent=11 // pred_region
          _
        $region72: #{forward.1} parent=11 // pred_fallthru
          _
      $region12: #{forward.1} parent=5 // pred_fallthru
        _
      %p748 = scmp.lt.s32.totalorder %s40, 4
      // Predicated region
      $region73: #{forward.1} parent=5 // pred_check
        %p749 = pneg %p748
      $region74: #{forward.1} parent=5 // pred_check_branch
        %751 = sbr.rel (%p749) target = $region76
      $region75: #{forward.1} parent=5 // pred_region
        // Predicated region
        $region77: #{forward.1} parent=75 // pred_check
          %p752 = pneg %p291
        $region78: #{forward.1} parent=75 // pred_check_branch
          %754 = sbr.rel (%p752) target = $region80
        $region79: #{forward.1} parent=75 // pred_region
          %s755 = sand.u32 %s281, 1
          %s756 = scalar_lea.sflag [#allocation4], %s755
          %s757 = sand.u32 %s281, 1
          %s758 = smul.addr %s757, 192
          %s759 = scalar_lea.vmem [#allocation3], %s758
          %s761 = ssub.s32 3072, 3072
          %762 = vsyncadd %s756, %s761
          %s763 = smul.addr %s40, 48
          %s764 = smul.addr %s763, 64
          %s765 = scalar_lea.hbm %s11, %s764
          %s766 = sshll.u32 %s759, 4
          %s767 = int_to_ptr.vmem [resolvable:$true] %s766
          %772 = dma.hbm_to_vmem [thread:$0]  %s765, 3072, %s767, %s756, 192, 192, 12
        $region80: #{forward.1} parent=75 // pred_fallthru
          _
        // Predicated region
        $region81: #{forward.1} parent=75 // pred_check
          %p773 = pneg %p317
        $region82: #{forward.1} parent=75 // pred_check_branch
          %775 = sbr.rel (%p773) target = $region84
        $region83: #{forward.1} parent=75 // pred_region
          %p776 = scmp.lt.s32.totalorder %s40, 3
          %s777 = scalar_select %p776, %s40, 3
          %s778 = smul.addr %s777, 3
          %s779 = scalar_lea.vmem %s12, %s778
        $region84: #{forward.1} parent=75 // pred_fallthru
          _
        // Predicated region
        $region85: #{forward.1} parent=75 // pred_check
          %p780 = pneg %p343
        $region86: #{forward.1} parent=75 // pred_check_branch
          %782 = sbr.rel (%p780) target = $region88
        $region87: #{forward.1} parent=75 // pred_region
          %p783 = scmp.lt.s32.totalorder %s40, 3
          %s784 = scalar_select %p783, %s40, 3
          %s785 = smul.addr %s784, 16
          %s786 = smul.addr %s785, 4
          %s787 = scalar_lea.vmem %s13, %s786
        $region88: #{forward.1} parent=75 // pred_fallthru
          _
        // Predicated region
        $region89: #{forward.1} parent=75 // pred_check
          %p788 = pneg %p369
        $region90: #{forward.1} parent=75 // pred_check_branch
          %790 = sbr.rel (%p788) target = $region92
        $region91: #{forward.1} parent=75 // pred_region
          %p791 = scmp.lt.s32.totalorder %s40, 3
          %s792 = scalar_select %p791, %s40, 3
          %s793 = scalar_lea.vmem %s14, %s792
        $region92: #{forward.1} parent=75 // pred_fallthru
          _
        // Predicated region
        $region93: #{forward.1} parent=75 // pred_check
          %p794 = pneg %p395
        $region94: #{forward.1} parent=75 // pred_check_branch
          %796 = sbr.rel (%p794) target = $region96
        $region95: #{forward.1} parent=75 // pred_region
          %p797 = scmp.lt.s32.totalorder %s40, 3
          %s798 = scalar_select %p797, %s40, 3
          %s799 = scalar_lea.vmem %s15, %s798
        $region96: #{forward.1} parent=75 // pred_fallthru
          _
        // Predicated region
        $region97: #{forward.1} parent=75 // pred_check
          %p800 = pneg %p421
        $region98: #{forward.1} parent=75 // pred_check_branch
          %802 = sbr.rel (%p800) target = $region100
        $region99: #{forward.1} parent=75 // pred_region
          %p803 = scmp.lt.s32.totalorder %s40, 3
          %s804 = scalar_select %p803, %s40, 3
          %s805 = scalar_lea.vmem %s16, %s804
        $region100: #{forward.1} parent=75 // pred_fallthru
          _
        // Predicated region
        $region101: #{forward.1} parent=75 // pred_check
          %p806 = pneg %p447
        $region102: #{forward.1} parent=75 // pred_check_branch
          %808 = sbr.rel (%p806) target = $region104
        $region103: #{forward.1} parent=75 // pred_region
          %s809 = sand.u32 %s40, 1
          %s810 = scalar_lea.sflag [#allocation7], %s809
          %s811 = sand.u32 %s437, 1
          %s812 = smul.addr %s811, 256
          %s813 = scalar_lea.vmem [#allocation6], %s812
          %s815 = ssub.s32 4096, 4096
          %816 = vsyncadd %s810, %s815
          %s817 = smul.addr %s40, 64
          %s818 = smul.addr %s817, 64
          %s819 = scalar_lea.hbm %s17, %s818
          %s820 = sshll.u32 %s813, 4
          %s821 = int_to_ptr.vmem [resolvable:$true] %s820
          %826 = dma.hbm_to_vmem [thread:$0]  %s819, 4096, %s821, %s810, 256, 256, 16
        $region104: #{forward.1} parent=75 // pred_fallthru
          _
        // Predicated region
        $region105: #{forward.1} parent=75 // pred_check
          %p827 = pneg %p473
        $region106: #{forward.1} parent=75 // pred_check_branch
          %829 = sbr.rel (%p827) target = $region108
        $region107: #{forward.1} parent=75 // pred_region
          %p830 = scmp.lt.s32.totalorder %s40, 3
          %s831 = scalar_select %p830, %s40, 3
          %s832 = smul.addr %s831, 4
          %s833 = scalar_lea.vmem %s18, %s832
        $region108: #{forward.1} parent=75 // pred_fallthru
          _
        // Predicated region
        $region109: #{forward.1} parent=75 // pred_check
          %p834 = pneg %p499
        $region110: #{forward.1} parent=75 // pred_check_branch
          %836 = sbr.rel (%p834) target = $region112
        $region111: #{forward.1} parent=75 // pred_region
          %s837 = sand.u32 %s40, 1
          %s838 = scalar_lea.sflag [#allocation7], %s837
          %s839 = sand.u32 %s489, 1
          %s840 = smul.addr %s839, 256
          %s841 = scalar_lea.vmem [#allocation8], %s840
          %s843 = ssub.s32 4096, 4096
          %844 = vsyncadd %s838, %s843
          %s845 = smul.addr %s40, 64
          %s846 = smul.addr %s845, 64
          %s847 = scalar_lea.hbm %s19, %s846
          %s848 = sshll.u32 %s841, 4
          %s849 = int_to_ptr.vmem [resolvable:$true] %s848
          %854 = dma.hbm_to_vmem [thread:$0]  %s847, 4096, %s849, %s838, 64, 64, 4
        $region112: #{forward.1} parent=75 // pred_fallthru
          _
        // Predicated region
        $region113: #{forward.1} parent=75 // pred_check
          %p855 = pneg %p525
        $region114: #{forward.1} parent=75 // pred_check_branch
          %857 = sbr.rel (%p855) target = $region116
        $region115: #{forward.1} parent=75 // pred_region
          %p858 = scmp.lt.s32.totalorder %s40, 3
          %s859 = scalar_select %p858, %s40, 3
          %s860 = scalar_lea.vmem %s20, %s859
        $region116: #{forward.1} parent=75 // pred_fallthru
          _
        // Predicated region
        $region117: #{forward.1} parent=75 // pred_check
          %p861 = pneg %p551
        $region118: #{forward.1} parent=75 // pred_check_branch
          %863 = sbr.rel (%p861) target = $region120
        $region119: #{forward.1} parent=75 // pred_region
          %p864 = scmp.lt.s32.totalorder %s40, 3
          %s865 = scalar_select %p864, %s40, 3
          %s866 = scalar_lea.vmem %s21, %s865
        $region120: #{forward.1} parent=75 // pred_fallthru
          _
        // Predicated region
        $region121: #{forward.1} parent=75 // pred_check
          %p867 = pneg %p577
        $region122: #{forward.1} parent=75 // pred_check_branch
          %869 = sbr.rel (%p867) target = $region124
        $region123: #{forward.1} parent=75 // pred_region
          %p870 = scmp.lt.s32.totalorder %s40, 3
          %s871 = scalar_select %p870, %s40, 3
          %s872 = scalar_lea.vmem %s22, %s871
        $region124: #{forward.1} parent=75 // pred_fallthru
          _
      $region76: #{forward.1} parent=5 // pred_fallthru
        _
      %p873 = scmp.le.s32.totalorder 1, %s40
      %p874 = scmp.lt.s32.totalorder %s40, 5
      %p875 = pnand %p873, %p874
      %p876 = pneg %p875
      // Predicated region
      $region125: #{forward.1} parent=5 // pred_check
        _
      $region126: #{forward.1} parent=5 // pred_check_branch
        %878 = sbr.rel (%p875) target = $region128
      $region127: #{forward.1} parent=5 // pred_region
        %s879 = ssub.s32 %s40, 1
        %s880 = sand.u32 %s284, 1
        %s881 = scalar_lea.sflag [#allocation4], %s880
        %s882 = sand.u32 %s284, 1
        %s883 = smul.addr %s882, 192
        %s884 = scalar_lea.vmem [#allocation3], %s883
        // Predicated region
        $region129: #{forward.1} parent=127 // pred_check
          %p885 = pneg %p297
        $region130: #{forward.1} parent=127 // pred_check_branch
          %887 = sbr.rel (%p885) target = $region132
        $region131: #{forward.1} parent=127 // pred_region
          %888 = dma.done %s881, 3072
        $region132: #{forward.1} parent=127 // pred_fallthru
          _
        %s889 = sand.u32 %s45, 1
        %s890 = scalar_lea.sflag [#allocation7], %s889
        %s891 = sand.u32 %s440, 1
        %s892 = smul.addr %s891, 256
        %s893 = scalar_lea.vmem [#allocation6], %s892
        // Predicated region
        $region133: #{forward.1} parent=127 // pred_check
          %p894 = pneg %p453
        $region134: #{forward.1} parent=127 // pred_check_branch
          %896 = sbr.rel (%p894) target = $region136
        $region135: #{forward.1} parent=127 // pred_region
          %897 = dma.done %s890, 4096
        $region136: #{forward.1} parent=127 // pred_fallthru
          _
        %s898 = sand.u32 %s45, 1
        %s899 = scalar_lea.sflag [#allocation7], %s898
        %s900 = sand.u32 %s492, 1
        %s901 = smul.addr %s900, 256
        %s902 = scalar_lea.vmem [#allocation8], %s901
        // Predicated region
        $region137: #{forward.1} parent=127 // pred_check
          %p903 = pneg %p505
        $region138: #{forward.1} parent=127 // pred_check_branch
          %905 = sbr.rel (%p903) target = $region140
        $region139: #{forward.1} parent=127 // pred_region
          %906 = dma.done %s899, 4096
        $region140: #{forward.1} parent=127 // pred_fallthru
          _
        %p907 = pneg %p61
        %p908 = pneg %p58
        %p909 = pneg %p82
        %p910 = pneg %p79
        %p911 = pneg %p103
        %p912 = pneg %p100
        %p913 = pneg %p124
        %p914 = pneg %p121
        %p915 = pneg %p145
        %p916 = pneg %p142
        %p917 = pneg %p166
        %p918 = pneg %p163
        %p919 = pneg %p187
        %p920 = pneg %p184
        %p921 = pneg %p208
        %p922 = pneg %p205
        %p923 = pneg %p229
        %p924 = pneg %p226
        %p925 = pneg %p250
        %p926 = pneg %p247
        %p927 = pneg %p271
        %p928 = pneg %p268
        %s929 = sand.u32 %s284, 1
        %s930 = scalar_lea.sflag [#allocation4], %s929
        %s931 = sand.u32 %s284, 1
        %s932 = smul.addr %s931, 192
        %s933 = scalar_lea.vmem [#allocation3], %s932
        %p934 = pneg %p297
        %p935 = pneg %p294
        %p936 = scmp.lt.s32.totalorder %s45, 3
        %s937 = scalar_select %p936, %s45, 3
        %s938 = smul.addr %s937, 3
        %s939 = scalar_lea.vmem %s12, %s938
        %p940 = pneg %p323
        %p941 = pneg %p320
        %p942 = scmp.lt.s32.totalorder %s45, 3
        %s943 = scalar_select %p942, %s45, 3
        %s944 = smul.addr %s943, 16
        %s945 = smul.addr %s944, 4
        %s946 = scalar_lea.vmem %s13, %s945
        %p947 = pneg %p349
        %p948 = pneg %p346
        %p949 = scmp.lt.s32.totalorder %s45, 3
        %s950 = scalar_select %p949, %s45, 3
        %s951 = scalar_lea.vmem %s14, %s950
        %p952 = pneg %p375
        %p953 = pneg %p372
        %p954 = scmp.lt.s32.totalorder %s45, 3
        %s955 = scalar_select %p954, %s45, 3
        %s956 = scalar_lea.vmem %s15, %s955
        %p957 = pneg %p401
        %p958 = pneg %p398
        %p959 = scmp.lt.s32.totalorder %s45, 3
        %s960 = scalar_select %p959, %s45, 3
        %s961 = scalar_lea.vmem %s16, %s960
        %p962 = pneg %p427
        %p963 = pneg %p424
        %s964 = sand.u32 %s45, 1
        %s965 = scalar_lea.sflag [#allocation7], %s964
        %s966 = sand.u32 %s440, 1
        %s967 = smul.addr %s966, 256
        %s968 = scalar_lea.vmem [#allocation6], %s967
        %p969 = pneg %p453
        %p970 = pneg %p450
        %p971 = scmp.lt.s32.totalorder %s45, 3
        %s972 = scalar_select %p971, %s45, 3
        %s973 = smul.addr %s972, 4
        %s974 = scalar_lea.vmem %s18, %s973
        %p975 = pneg %p479
        %p976 = pneg %p476
        %s977 = sand.u32 %s45, 1
        %s978 = scalar_lea.sflag [#allocation7], %s977
        %s979 = sand.u32 %s492, 1
        %s980 = smul.addr %s979, 256
        %s981 = scalar_lea.vmem [#allocation8], %s980
        %p982 = pneg %p505
        %p983 = pneg %p502
        %p984 = scmp.lt.s32.totalorder %s45, 3
        %s985 = scalar_select %p984, %s45, 3
        %s986 = scalar_lea.vmem %s20, %s985
        %p987 = pneg %p531
        %p988 = pneg %p528
        %p989 = scmp.lt.s32.totalorder %s45, 3
        %s990 = scalar_select %p989, %s45, 3
        %s991 = scalar_lea.vmem %s21, %s990
        %p992 = pneg %p557
        %p993 = pneg %p554
        %p994 = scmp.lt.s32.totalorder %s45, 3
        %s995 = scalar_select %p994, %s45, 3
        %s996 = scalar_lea.vmem %s22, %s995
        %p997 = pneg %p583
        %p998 = pneg %p580
        %p999 = pneg %p604
        %p1000 = pneg %p601
        %p1001 = pneg %p625
        %p1002 = pneg %p622
        %p1003 = pneg %p646
        %p1004 = pneg %p643
        %p1005 = pneg %p667
        %p1006 = pneg %p664
        %p1007 = pneg %p688
        %p1008 = pneg %p685
        %p1009 = scmp.lt.s32.totalorder %s45, 3
        %s1010 = scalar_select %p1009, %s45, 3
        %s1011 = smul.addr %s1010, 3
        %s1012 = scalar_lea.vmem %s12, %s1011
        %p1013 = scmp.lt.s32.totalorder %s45, 3
        %s1014 = scalar_select %p1013, %s45, 3
        %s1015 = smul.addr %s1014, 16
        %s1016 = smul.addr %s1015, 4
        %s1017 = scalar_lea.vmem %s13, %s1016
        %p1018 = scmp.lt.s32.totalorder %s45, 3
        %s1019 = scalar_select %p1018, %s45, 3
        %s1020 = scalar_lea.vmem %s14, %s1019
        %p1021 = scmp.lt.s32.totalorder %s45, 3
        %s1022 = scalar_select %p1021, %s45, 3
        %s1023 = scalar_lea.vmem %s15, %s1022
        %p1024 = scmp.lt.s32.totalorder %s45, 3
        %s1025 = scalar_select %p1024, %s45, 3
        %s1026 = scalar_lea.vmem %s16, %s1025
        %p1027 = scmp.lt.s32.totalorder %s45, 3
        %s1028 = scalar_select %p1027, %s45, 3
        %s1029 = smul.addr %s1028, 4
        %s1030 = scalar_lea.vmem %s18, %s1029
        %p1031 = scmp.lt.s32.totalorder %s45, 3
        %s1032 = scalar_select %p1031, %s45, 3
        %s1033 = scalar_lea.vmem %s20, %s1032
        %p1034 = scmp.lt.s32.totalorder %s45, 3
        %s1035 = scalar_select %p1034, %s45, 3
        %s1036 = scalar_lea.vmem %s21, %s1035
        %p1037 = scmp.lt.s32.totalorder %s45, 3
        %s1038 = scalar_select %p1037, %s45, 3
        %s1039 = scalar_lea.vmem %s22, %s1038
        %p1041 = scmp.eq.s32.totalorder %s45, 0
        // Predicated region
        $region141: #{forward.1} parent=127 // pred_check
          %p1042 = pneg %p1041
        $region142: #{forward.1} parent=127 // pred_check_branch
          %1044 = sbr.rel (%p1042) target = $region144
        $region143: #{forward.1} parent=127 // pred_region
          %v1045 = vld [vmem:[%s0] sm:$0xff]
          %v1046 = vld [vmem:[%s0 + $0x8] sm:$0xff]
          %v1047 = vld [vmem:[%s0 + $0x10] sm:$0xff]
          %v1048 = vld [vmem:[%s0 + $0x18] sm:$0xff]
          %v1049 = vld [vmem:[%s0 + $0x20] sm:$0xff]
          %v1050 = vld [vmem:[%s0 + $0x28] sm:$0xff]
          %v1051 = vld [vmem:[%s0 + $0x30] sm:$0xff]
          %v1052 = vld [vmem:[%s0 + $0x38] sm:$0xff]
          %v1053 = vld [vmem:[%s0 + $0x40] sm:$0xff]
          %v1054 = vld [vmem:[%s0 + $0x48] sm:$0xff]
          %v1055 = vld [vmem:[%s0 + $0x50] sm:$0xff]
          %v1056 = vld [vmem:[%s0 + $0x58] sm:$0xff]
          %v1057 = vld [vmem:[%s0 + $0x60] sm:$0xff]
          %v1058 = vld [vmem:[%s0 + $0x68] sm:$0xff]
          %v1059 = vld [vmem:[%s0 + $0x70] sm:$0xff]
          %v1060 = vld [vmem:[%s0 + $0x78] sm:$0xff]
          %v1061 = vld [vmem:[%s0 + $0x80] sm:$0xff]
          %v1062 = vld [vmem:[%s0 + $0x88] sm:$0xff]
          %v1063 = vld [vmem:[%s0 + $0x90] sm:$0xff]
          %v1064 = vld [vmem:[%s0 + $0x98] sm:$0xff]
          %v1065 = vld [vmem:[%s0 + $0xa0] sm:$0xff]
          %v1066 = vld [vmem:[%s0 + $0xa8] sm:$0xff]
          %v1067 = vld [vmem:[%s0 + $0xb0] sm:$0xff]
          %v1068 = vld [vmem:[%s0 + $0xb8] sm:$0xff]
          %v1069 = vld [vmem:[%s0 + $0xc0] sm:$0xff]
          %v1070 = vld [vmem:[%s0 + $0xc8] sm:$0xff]
          %v1071 = vld [vmem:[%s0 + $0xd0] sm:$0xff]
          %v1072 = vld [vmem:[%s0 + $0xd8] sm:$0xff]
          %v1073 = vld [vmem:[%s0 + $0xe0] sm:$0xff]
          %v1074 = vld [vmem:[%s0 + $0xe8] sm:$0xff]
          %v1075 = vld [vmem:[%s0 + $0xf0] sm:$0xff]
          %v1076 = vld [vmem:[%s0 + $0xf8] sm:$0xff]
          %v1077 = vpack.c.bf16 %v1046, %v1045
          %v1078 = vpack.c.bf16 %v1048, %v1047
          %v1079 = vpack.c.bf16 %v1050, %v1049
          %v1080 = vpack.c.bf16 %v1052, %v1051
          %v1081 = vpack.c.bf16 %v1054, %v1053
          %v1082 = vpack.c.bf16 %v1056, %v1055
          %v1083 = vpack.c.bf16 %v1058, %v1057
          %v1084 = vpack.c.bf16 %v1060, %v1059
          %v1085 = vpack.c.bf16 %v1062, %v1061
          %v1086 = vpack.c.bf16 %v1064, %v1063
          %v1087 = vpack.c.bf16 %v1066, %v1065
          %v1088 = vpack.c.bf16 %v1068, %v1067
          %v1089 = vpack.c.bf16 %v1070, %v1069
          %v1090 = vpack.c.bf16 %v1072, %v1071
          %v1091 = vpack.c.bf16 %v1074, %v1073
          %v1092 = vpack.c.bf16 %v1076, %v1075
          %v1093 = vld [vmem:[%s1] sm:$0x3]
          %v1094 = vld [vmem:[%s2] sm:$0x1]
          %v1096 = vlaneseq
          %v1097 = vshrl.u32 %v1096, 7
          %v1098 = vsub.s32 0, %v1097
          %v1099 = vrot.slane %v1094, %v1098
          %vm1101 = vcmask 31744
          %v1103 = vsel %vm1101, %v1077, 0
          %v1106 = vsel %vm1101, %v1078, 0
          %v1109 = vsel %vm1101, %v1079, 0
          %v1112 = vsel %vm1101, %v1080, 0
          %v1115 = vsel %vm1101, %v1081, 0
          %v1118 = vsel %vm1101, %v1082, 0
          %v1121 = vsel %vm1101, %v1083, 0
          %v1124 = vsel %vm1101, %v1084, 0
          %v1127 = vsel %vm1101, %v1085, 0
          %v1130 = vsel %vm1101, %v1086, 0
          %v1133 = vsel %vm1101, %v1087, 0
          %v1136 = vsel %vm1101, %v1088, 0
          %v1139 = vsel %vm1101, %v1089, 0
          %v1142 = vsel %vm1101, %v1090, 0
          %v1145 = vsel %vm1101, %v1091, 0
          %v1148 = vsel %vm1101, %v1092, 0
          %vm1150 = vcmask 1041408
          %v1152 = vsel %vm1150, %v1093, 0
          %1154 = vmatprep.subr.bf16.mxu0 0
          %1155 = vmatpush1.bf16.msra.mxu0 0
          %1156 = vmatprep.subr.bf16.mxu0 0
          %1157 = vmatpush1.bf16.msra.mxu0 0
          %1158 = vmatprep.subr.bf16.mxu0 0
          %1159 = vmatpush1.bf16.msra.mxu0 0
          %1160 = vmatprep.subr.bf16.mxu0 0
          %1161 = vmatpush1.bf16.msra.mxu0 0
          %1162 = vmatprep.subr.bf16.mxu0 0
          %1163 = vmatpush1.bf16.msra.mxu0 0
          %1164 = vmatprep.subr.bf16.mxu0 0
          %1165 = vmatpush1.bf16.msra.mxu0 0
          %1166 = vmatprep.subr.bf16.mxu0 0
          %1167 = vmatpush1.bf16.msra.mxu0 0
          %1168 = vmatprep.subr.bf16.mxu0 0
          %1169 = vmatpush1.bf16.msra.mxu0 %v1152
          %1170 = vmatprep.subr.bf16.mxu0 0
          %1171 = vmatpush2.bf16.msra.mxu0 0
          %1172 = vmatprep.subr.bf16.mxu0 0
          %1173 = vmatpush2.bf16.msra.mxu0 0
          %1174 = vmatprep.subr.bf16.mxu0 0
          %1175 = vmatpush2.bf16.msra.mxu0 0
          %1176 = vmatprep.subr.bf16.mxu0 0
          %1177 = vmatpush2.bf16.msra.mxu0 0
          %1178 = vmatprep.subr.bf16.mxu0 0
          %1179 = vmatpush2.bf16.msra.mxu0 0
          %1180 = vmatprep.subr.bf16.mxu0 0
          %1181 = vmatpush2.bf16.msra.mxu0 0
          %1182 = vmatprep.subr.bf16.mxu0 0
          %1183 = vmatpush2.bf16.msra.mxu0 0
          %1184 = vmatprep.subr.bf16.mxu0 0
          %1185 = vmatpush2.bf16.msra.mxu0 0
          %1186 = vmatprep.mubr.bf16.mxu0 0
          %1187 = vmatmul.mubr.bf16.gmra.mxu0 %v1103
          %v1188 = vpop.f32.mrf.mxu0
          %v1189 = vadd.f32 %v1099, %v1188
          %v1190 = vpop.f32.mrf.mxu0
          %v1191 = vpop.f32.mrf.mxu0
          %v1192 = vadd.f32 %v1099, %v1191
          %v1193 = vpop.f32.mrf.mxu0
          %1194 = vmatprep.mubr.bf16.mxu0 0
          %1195 = vmatmul.mubr.bf16.gmra.mxu0 %v1106
          %v1196 = vpop.f32.mrf.mxu0
          %v1197 = vadd.f32 %v1099, %v1196
          %v1198 = vpop.f32.mrf.mxu0
          %v1199 = vpop.f32.mrf.mxu0
          %v1200 = vadd.f32 %v1099, %v1199
          %v1201 = vpop.f32.mrf.mxu0
          %1202 = vmatprep.mubr.bf16.mxu0 0
          %1203 = vmatmul.mubr.bf16.gmra.mxu0 %v1109
          %v1204 = vpop.f32.mrf.mxu0
          %v1205 = vadd.f32 %v1099, %v1204
          %v1206 = vpop.f32.mrf.mxu0
          %v1207 = vpop.f32.mrf.mxu0
          %v1208 = vadd.f32 %v1099, %v1207
          %v1209 = vpop.f32.mrf.mxu0
          %1210 = vmatprep.mubr.bf16.mxu0 0
          %1211 = vmatmul.mubr.bf16.gmra.mxu0 %v1112
          %v1212 = vpop.f32.mrf.mxu0
          %v1213 = vadd.f32 %v1099, %v1212
          %v1214 = vpop.f32.mrf.mxu0
          %v1215 = vpop.f32.mrf.mxu0
          %v1216 = vadd.f32 %v1099, %v1215
          %v1217 = vpop.f32.mrf.mxu0
          %1218 = vmatprep.mubr.bf16.mxu0 0
          %1219 = vmatmul.mubr.bf16.gmra.mxu0 %v1115
          %v1220 = vpop.f32.mrf.mxu0
          %v1221 = vadd.f32 %v1099, %v1220
          %v1222 = vpop.f32.mrf.mxu0
          %v1223 = vpop.f32.mrf.mxu0
          %v1224 = vadd.f32 %v1099, %v1223
          %v1225 = vpop.f32.mrf.mxu0
          %1226 = vmatprep.mubr.bf16.mxu0 0
          %1227 = vmatmul.mubr.bf16.gmra.mxu0 %v1118
          %v1228 = vpop.f32.mrf.mxu0
          %v1229 = vadd.f32 %v1099, %v1228
          %v1230 = vpop.f32.mrf.mxu0
          %v1231 = vpop.f32.mrf.mxu0
          %v1232 = vadd.f32 %v1099, %v1231
          %v1233 = vpop.f32.mrf.mxu0
          %1234 = vmatprep.mubr.bf16.mxu0 0
          %1235 = vmatmul.mubr.bf16.gmra.mxu0 %v1121
          %v1236 = vpop.f32.mrf.mxu0
          %v1237 = vadd.f32 %v1099, %v1236
          %v1238 = vpop.f32.mrf.mxu0
          %v1239 = vpop.f32.mrf.mxu0
          %v1240 = vadd.f32 %v1099, %v1239
          %v1241 = vpop.f32.mrf.mxu0
          %1242 = vmatprep.mubr.bf16.mxu0 0
          %1243 = vmatmul.mubr.bf16.gmra.mxu0 %v1124
          %v1244 = vpop.f32.mrf.mxu0
          %v1245 = vadd.f32 %v1099, %v1244
          %v1246 = vpop.f32.mrf.mxu0
          %v1247 = vpop.f32.mrf.mxu0
          %v1248 = vadd.f32 %v1099, %v1247
          %v1249 = vpop.f32.mrf.mxu0
          %1250 = vmatprep.mubr.bf16.mxu0 0
          %1251 = vmatmul.mubr.bf16.gmra.mxu0 %v1127
          %v1252 = vpop.f32.mrf.mxu0
          %v1253 = vadd.f32 %v1099, %v1252
          %v1254 = vpop.f32.mrf.mxu0
          %v1255 = vpop.f32.mrf.mxu0
          %v1256 = vadd.f32 %v1099, %v1255
          %v1257 = vpop.f32.mrf.mxu0
          %1258 = vmatprep.mubr.bf16.mxu0 0
          %1259 = vmatmul.mubr.bf16.gmra.mxu0 %v1130
          %v1260 = vpop.f32.mrf.mxu0
          %v1261 = vadd.f32 %v1099, %v1260
          %v1262 = vpop.f32.mrf.mxu0
          %v1263 = vpop.f32.mrf.mxu0
          %v1264 = vadd.f32 %v1099, %v1263
          %v1265 = vpop.f32.mrf.mxu0
          %1266 = vmatprep.mubr.bf16.mxu0 0
          %1267 = vmatmul.mubr.bf16.gmra.mxu0 %v1133
          %v1268 = vpop.f32.mrf.mxu0
          %v1269 = vadd.f32 %v1099, %v1268
          %v1270 = vpop.f32.mrf.mxu0
          %v1271 = vpop.f32.mrf.mxu0
          %v1272 = vadd.f32 %v1099, %v1271
          %v1273 = vpop.f32.mrf.mxu0
          %1274 = vmatprep.mubr.bf16.mxu0 0
          %1275 = vmatmul.mubr.bf16.gmra.mxu0 %v1136
          %v1276 = vpop.f32.mrf.mxu0
          %v1277 = vadd.f32 %v1099, %v1276
          %v1278 = vpop.f32.mrf.mxu0
          %v1279 = vpop.f32.mrf.mxu0
          %v1280 = vadd.f32 %v1099, %v1279
          %v1281 = vpop.f32.mrf.mxu0
          %1282 = vmatprep.mubr.bf16.mxu0 0
          %1283 = vmatmul.mubr.bf16.gmra.mxu0 %v1139
          %v1284 = vpop.f32.mrf.mxu0
          %v1285 = vadd.f32 %v1099, %v1284
          %v1286 = vpop.f32.mrf.mxu0
          %v1287 = vpop.f32.mrf.mxu0
          %v1288 = vadd.f32 %v1099, %v1287
          %v1289 = vpop.f32.mrf.mxu0
          %1290 = vmatprep.mubr.bf16.mxu0 0
          %1291 = vmatmul.mubr.bf16.gmra.mxu0 %v1142
          %v1292 = vpop.f32.mrf.mxu0
          %v1293 = vadd.f32 %v1099, %v1292
          %v1294 = vpop.f32.mrf.mxu0
          %v1295 = vpop.f32.mrf.mxu0
          %v1296 = vadd.f32 %v1099, %v1295
          %v1297 = vpop.f32.mrf.mxu0
          %1298 = vmatprep.mubr.bf16.mxu0 0
          %1299 = vmatmul.mubr.bf16.gmra.mxu0 %v1145
          %v1300 = vpop.f32.mrf.mxu0
          %v1301 = vadd.f32 %v1099, %v1300
          %v1302 = vpop.f32.mrf.mxu0
          %v1303 = vpop.f32.mrf.mxu0
          %v1304 = vadd.f32 %v1099, %v1303
          %v1305 = vpop.f32.mrf.mxu0
          %1306 = vmatprep.mubr.bf16.mxu0 0
          %1307 = vmatmul.mubr.bf16.gmra.mxu0 %v1148
          %v1308 = vpop.f32.mrf.mxu0
          %v1309 = vadd.f32 %v1099, %v1308
          %v1310 = vpop.f32.mrf.mxu0
          %v1311 = vpop.f32.mrf.mxu0
          %v1312 = vadd.f32 %v1099, %v1311
          %v1313 = vpop.f32.mrf.mxu0
          %1314 = vdwg.mxu0
          %v1315 = vmax.f32 %v1189, 0.0
          %v1316 = vmax.f32 %v1192, 0.0
          %v1317 = vmax.f32 %v1197, 0.0
          %v1318 = vmax.f32 %v1200, 0.0
          %v1319 = vmax.f32 %v1205, 0.0
          %v1320 = vmax.f32 %v1208, 0.0
          %v1321 = vmax.f32 %v1213, 0.0
          %v1322 = vmax.f32 %v1216, 0.0
          %v1323 = vmax.f32 %v1221, 0.0
          %v1324 = vmax.f32 %v1224, 0.0
          %v1325 = vmax.f32 %v1229, 0.0
          %v1326 = vmax.f32 %v1232, 0.0
          %v1327 = vmax.f32 %v1237, 0.0
          %v1328 = vmax.f32 %v1240, 0.0
          %v1329 = vmax.f32 %v1245, 0.0
          %v1330 = vmax.f32 %v1248, 0.0
          %v1331 = vmax.f32 %v1253, 0.0
          %v1332 = vmax.f32 %v1256, 0.0
          %v1333 = vmax.f32 %v1261, 0.0
          %v1334 = vmax.f32 %v1264, 0.0
          %v1335 = vmax.f32 %v1269, 0.0
          %v1336 = vmax.f32 %v1272, 0.0
          %v1337 = vmax.f32 %v1277, 0.0
          %v1338 = vmax.f32 %v1280, 0.0
          %v1339 = vmax.f32 %v1285, 0.0
          %v1340 = vmax.f32 %v1288, 0.0
          %v1341 = vmax.f32 %v1293, 0.0
          %v1342 = vmax.f32 %v1296, 0.0
          %v1343 = vmax.f32 %v1301, 0.0
          %v1344 = vmax.f32 %v1304, 0.0
          %v1345 = vmax.f32 %v1309, 0.0
          %v1346 = vmax.f32 %v1312, 0.0
          %v1347 = vpack.c.bf16 %v1316, %v1315
          %v1348 = vpack.c.bf16 %v1318, %v1317
          %v1349 = vpack.c.bf16 %v1320, %v1319
          %v1350 = vpack.c.bf16 %v1322, %v1321
          %v1351 = vpack.c.bf16 %v1324, %v1323
          %v1352 = vpack.c.bf16 %v1326, %v1325
          %v1353 = vpack.c.bf16 %v1328, %v1327
          %v1354 = vpack.c.bf16 %v1330, %v1329
          %v1355 = vpack.c.bf16 %v1332, %v1331
          %v1356 = vpack.c.bf16 %v1334, %v1333
          %v1357 = vpack.c.bf16 %v1336, %v1335
          %v1358 = vpack.c.bf16 %v1338, %v1337
          %v1359 = vpack.c.bf16 %v1340, %v1339
          %v1360 = vpack.c.bf16 %v1342, %v1341
          %v1361 = vpack.c.bf16 %v1344, %v1343
          %v1362 = vpack.c.bf16 %v1346, %v1345
          %v1363 = vld [vmem:[%s3] sm:$0xf]
          %v1364 = vld [vmem:[%s3 + $0x4] sm:$0xf]
          %v1365 = vld [vmem:[%s3 + $0x8] sm:$0xf]
          %v1366 = vld [vmem:[%s3 + $0xc] sm:$0xf]
          %v1367 = vld [vmem:[%s4] sm:$0x1]
          %v1369 = vlaneseq
          %v1370 = vshrl.u32 %v1369, 7
          %v1371 = vsub.s32 0, %v1370
          %v1372 = vrot.slane %v1367, %v1371
          %v1378 = vunpack.c.l.b16 %v1363
          %v1379 = vunpack.c.l.b16 %v1364
          %v1380 = vunpack.c.l.b16 %v1365
          %v1381 = vunpack.c.l.b16 %v1366
          %v1382 = vpack.c.b16 %v1379, %v1378
          %v1383 = vpack.c.b16 %v1381, %v1380
          %vm1386 = vcmask 261120
          %v1388 = vsel %vm1386, %v1347, 0
          %v1391 = vsel %vm1386, %v1348, 0
          %v1394 = vsel %vm1386, %v1349, 0
          %v1397 = vsel %vm1386, %v1350, 0
          %v1400 = vsel %vm1386, %v1351, 0
          %v1403 = vsel %vm1386, %v1352, 0
          %v1406 = vsel %vm1386, %v1353, 0
          %v1409 = vsel %vm1386, %v1354, 0
          %v1412 = vsel %vm1386, %v1355, 0
          %v1415 = vsel %vm1386, %v1356, 0
          %v1418 = vsel %vm1386, %v1357, 0
          %v1421 = vsel %vm1386, %v1358, 0
          %v1424 = vsel %vm1386, %v1359, 0
          %v1427 = vsel %vm1386, %v1360, 0
          %v1430 = vsel %vm1386, %v1361, 0
          %v1433 = vsel %vm1386, %v1362, 0
          %1435 = vmatprep.subr.bf16.mxu0 0
          %1436 = vmatpush1.bf16.msra.mxu0 0
          %1437 = vmatprep.subr.bf16.mxu0 0
          %1438 = vmatpush1.bf16.msra.mxu0 0
          %1439 = vmatprep.subr.bf16.mxu0 0
          %1440 = vmatpush1.bf16.msra.mxu0 0
          %1441 = vmatprep.subr.bf16.mxu0 0
          %1442 = vmatpush1.bf16.msra.mxu0 0
          %1443 = vmatprep.subr.bf16.mxu0 0
          %1444 = vmatpush1.bf16.msra.mxu0 0
          %1445 = vmatprep.subr.bf16.mxu0 0
          %1446 = vmatpush1.bf16.msra.mxu0 0
          %1447 = vmatprep.subr.bf16.mxu0 0
          %1448 = vmatpush1.bf16.msra.mxu0 %v1383
          %1449 = vmatprep.subr.bf16.mxu0 0
          %1450 = vmatpush1.bf16.msra.mxu0 %v1382
          %1451 = vmatprep.subr.bf16.mxu0 0
          %1452 = vmatpush2.bf16.msra.mxu0 0
          %1453 = vmatprep.subr.bf16.mxu0 0
          %1454 = vmatpush2.bf16.msra.mxu0 0
          %1455 = vmatprep.subr.bf16.mxu0 0
          %1456 = vmatpush2.bf16.msra.mxu0 0
          %1457 = vmatprep.subr.bf16.mxu0 0
          %1458 = vmatpush2.bf16.msra.mxu0 0
          %1459 = vmatprep.subr.bf16.mxu0 0
          %1460 = vmatpush2.bf16.msra.mxu0 0
          %1461 = vmatprep.subr.bf16.mxu0 0
          %1462 = vmatpush2.bf16.msra.mxu0 0
          %1463 = vmatprep.subr.bf16.mxu0 0
          %1464 = vmatpush2.bf16.msra.mxu0 0
          %1465 = vmatprep.subr.bf16.mxu0 0
          %1466 = vmatpush2.bf16.msra.mxu0 0
          %1467 = vmatprep.mubr.bf16.mxu0 0
          %1468 = vmatmul.mubr.bf16.gmra.mxu0 %v1388
          %v1469 = vpop.f32.mrf.mxu0
          %v1470 = vadd.f32 %v1372, %v1469
          %v1471 = vpop.f32.mrf.mxu0
          %v1472 = vpop.f32.mrf.mxu0
          %v1473 = vadd.f32 %v1372, %v1472
          %v1474 = vpop.f32.mrf.mxu0
          %1475 = vmatprep.mubr.bf16.mxu0 0
          %1476 = vmatmul.mubr.bf16.gmra.mxu0 %v1391
          %v1477 = vpop.f32.mrf.mxu0
          %v1478 = vadd.f32 %v1372, %v1477
          %v1479 = vpop.f32.mrf.mxu0
          %v1480 = vpop.f32.mrf.mxu0
          %v1481 = vadd.f32 %v1372, %v1480
          %v1482 = vpop.f32.mrf.mxu0
          %1483 = vmatprep.mubr.bf16.mxu0 0
          %1484 = vmatmul.mubr.bf16.gmra.mxu0 %v1394
          %v1485 = vpop.f32.mrf.mxu0
          %v1486 = vadd.f32 %v1372, %v1485
          %v1487 = vpop.f32.mrf.mxu0
          %v1488 = vpop.f32.mrf.mxu0
          %v1489 = vadd.f32 %v1372, %v1488
          %v1490 = vpop.f32.mrf.mxu0
          %1491 = vmatprep.mubr.bf16.mxu0 0
          %1492 = vmatmul.mubr.bf16.gmra.mxu0 %v1397
          %v1493 = vpop.f32.mrf.mxu0
          %v1494 = vadd.f32 %v1372, %v1493
          %v1495 = vpop.f32.mrf.mxu0
          %v1496 = vpop.f32.mrf.mxu0
          %v1497 = vadd.f32 %v1372, %v1496
          %v1498 = vpop.f32.mrf.mxu0
          %1499 = vmatprep.mubr.bf16.mxu0 0
          %1500 = vmatmul.mubr.bf16.gmra.mxu0 %v1400
          %v1501 = vpop.f32.mrf.mxu0
          %v1502 = vadd.f32 %v1372, %v1501
          %v1503 = vpop.f32.mrf.mxu0
          %v1504 = vpop.f32.mrf.mxu0
          %v1505 = vadd.f32 %v1372, %v1504
          %v1506 = vpop.f32.mrf.mxu0
          %1507 = vmatprep.mubr.bf16.mxu0 0
          %1508 = vmatmul.mubr.bf16.gmra.mxu0 %v1403
          %v1509 = vpop.f32.mrf.mxu0
          %v1510 = vadd.f32 %v1372, %v1509
          %v1511 = vpop.f32.mrf.mxu0
          %v1512 = vpop.f32.mrf.mxu0
          %v1513 = vadd.f32 %v1372, %v1512
          %v1514 = vpop.f32.mrf.mxu0
          %1515 = vmatprep.mubr.bf16.mxu0 0
          %1516 = vmatmul.mubr.bf16.gmra.mxu0 %v1406
          %v1517 = vpop.f32.mrf.mxu0
          %v1518 = vadd.f32 %v1372, %v1517
          %v1519 = vpop.f32.mrf.mxu0
          %v1520 = vpop.f32.mrf.mxu0
          %v1521 = vadd.f32 %v1372, %v1520
          %v1522 = vpop.f32.mrf.mxu0
          %1523 = vmatprep.mubr.bf16.mxu0 0
          %1524 = vmatmul.mubr.bf16.gmra.mxu0 %v1409
          %v1525 = vpop.f32.mrf.mxu0
          %v1526 = vadd.f32 %v1372, %v1525
          %v1527 = vpop.f32.mrf.mxu0
          %v1528 = vpop.f32.mrf.mxu0
          %v1529 = vadd.f32 %v1372, %v1528
          %v1530 = vpop.f32.mrf.mxu0
          %1531 = vmatprep.mubr.bf16.mxu0 0
          %1532 = vmatmul.mubr.bf16.gmra.mxu0 %v1412
          %v1533 = vpop.f32.mrf.mxu0
          %v1534 = vadd.f32 %v1372, %v1533
          %v1535 = vpop.f32.mrf.mxu0
          %v1536 = vpop.f32.mrf.mxu0
          %v1537 = vadd.f32 %v1372, %v1536
          %v1538 = vpop.f32.mrf.mxu0
          %1539 = vmatprep.mubr.bf16.mxu0 0
          %1540 = vmatmul.mubr.bf16.gmra.mxu0 %v1415
          %v1541 = vpop.f32.mrf.mxu0
          %v1542 = vadd.f32 %v1372, %v1541
          %v1543 = vpop.f32.mrf.mxu0
          %v1544 = vpop.f32.mrf.mxu0
          %v1545 = vadd.f32 %v1372, %v1544
          %v1546 = vpop.f32.mrf.mxu0
          %1547 = vmatprep.mubr.bf16.mxu0 0
          %1548 = vmatmul.mubr.bf16.gmra.mxu0 %v1418
          %v1549 = vpop.f32.mrf.mxu0
          %v1550 = vadd.f32 %v1372, %v1549
          %v1551 = vpop.f32.mrf.mxu0
          %v1552 = vpop.f32.mrf.mxu0
          %v1553 = vadd.f32 %v1372, %v1552
          %v1554 = vpop.f32.mrf.mxu0
          %1555 = vmatprep.mubr.bf16.mxu0 0
          %1556 = vmatmul.mubr.bf16.gmra.mxu0 %v1421
          %v1557 = vpop.f32.mrf.mxu0
          %v1558 = vadd.f32 %v1372, %v1557
          %v1559 = vpop.f32.mrf.mxu0
          %v1560 = vpop.f32.mrf.mxu0
          %v1561 = vadd.f32 %v1372, %v1560
          %v1562 = vpop.f32.mrf.mxu0
          %1563 = vmatprep.mubr.bf16.mxu0 0
          %1564 = vmatmul.mubr.bf16.gmra.mxu0 %v1424
          %v1565 = vpop.f32.mrf.mxu0
          %v1566 = vadd.f32 %v1372, %v1565
          %v1567 = vpop.f32.mrf.mxu0
          %v1568 = vpop.f32.mrf.mxu0
          %v1569 = vadd.f32 %v1372, %v1568
          %v1570 = vpop.f32.mrf.mxu0
          %1571 = vmatprep.mubr.bf16.mxu0 0
          %1572 = vmatmul.mubr.bf16.gmra.mxu0 %v1427
          %v1573 = vpop.f32.mrf.mxu0
          %v1574 = vadd.f32 %v1372, %v1573
          %v1575 = vpop.f32.mrf.mxu0
          %v1576 = vpop.f32.mrf.mxu0
          %v1577 = vadd.f32 %v1372, %v1576
          %v1578 = vpop.f32.mrf.mxu0
          %1579 = vmatprep.mubr.bf16.mxu0 0
          %1580 = vmatmul.mubr.bf16.gmra.mxu0 %v1430
          %v1581 = vpop.f32.mrf.mxu0
          %v1582 = vadd.f32 %v1372, %v1581
          %v1583 = vpop.f32.mrf.mxu0
          %v1584 = vpop.f32.mrf.mxu0
          %v1585 = vadd.f32 %v1372, %v1584
          %v1586 = vpop.f32.mrf.mxu0
          %1587 = vmatprep.mubr.bf16.mxu0 0
          %1588 = vmatmul.mubr.bf16.gmra.mxu0 %v1433
          %v1589 = vpop.f32.mrf.mxu0
          %v1590 = vadd.f32 %v1372, %v1589
          %v1591 = vpop.f32.mrf.mxu0
          %v1592 = vpop.f32.mrf.mxu0
          %v1593 = vadd.f32 %v1372, %v1592
          %v1594 = vpop.f32.mrf.mxu0
          %1595 = vdwg.mxu0
          %vm1596 = vcmask 523264
          %v1597 = vsel %vm1596, %v1470, 0.0
          %v1598 = vsel %vm1596, %v1473, 0.0
          %v1599 = vadd.f32 %v1597, %v1598
          %v1600 = vrot.slane %v1599, 4
          %v1601 = vadd.f32 %v1599, %v1600
          %v1602 = vrot.slane %v1601, 2
          %v1603 = vadd.f32 %v1601, %v1602
          %v1604 = vrot.slane %v1603, 1
          %v1605 = vadd.f32 %v1603, %v1604
          %v1606 = vsel %vm1596, %v1478, 0.0
          %v1607 = vsel %vm1596, %v1481, 0.0
          %v1608 = vadd.f32 %v1606, %v1607
          %v1609 = vrot.slane %v1608, 4
          %v1610 = vadd.f32 %v1608, %v1609
          %v1611 = vrot.slane %v1610, 2
          %v1612 = vadd.f32 %v1610, %v1611
          %v1613 = vrot.slane %v1612, 1
          %v1614 = vadd.f32 %v1612, %v1613
          %v1615 = vsel %vm1596, %v1486, 0.0
          %v1616 = vsel %vm1596, %v1489, 0.0
          %v1617 = vadd.f32 %v1615, %v1616
          %v1618 = vrot.slane %v1617, 4
          %v1619 = vadd.f32 %v1617, %v1618
          %v1620 = vrot.slane %v1619, 2
          %v1621 = vadd.f32 %v1619, %v1620
          %v1622 = vrot.slane %v1621, 1
          %v1623 = vadd.f32 %v1621, %v1622
          %v1624 = vsel %vm1596, %v1494, 0.0
          %v1625 = vsel %vm1596, %v1497, 0.0
          %v1626 = vadd.f32 %v1624, %v1625
          %v1627 = vrot.slane %v1626, 4
          %v1628 = vadd.f32 %v1626, %v1627
          %v1629 = vrot.slane %v1628, 2
          %v1630 = vadd.f32 %v1628, %v1629
          %v1631 = vrot.slane %v1630, 1
          %v1632 = vadd.f32 %v1630, %v1631
          %v1633 = vsel %vm1596, %v1502, 0.0
          %v1634 = vsel %vm1596, %v1505, 0.0
          %v1635 = vadd.f32 %v1633, %v1634
          %v1636 = vrot.slane %v1635, 4
          %v1637 = vadd.f32 %v1635, %v1636
          %v1638 = vrot.slane %v1637, 2
          %v1639 = vadd.f32 %v1637, %v1638
          %v1640 = vrot.slane %v1639, 1
          %v1641 = vadd.f32 %v1639, %v1640
          %v1642 = vsel %vm1596, %v1510, 0.0
          %v1643 = vsel %vm1596, %v1513, 0.0
          %v1644 = vadd.f32 %v1642, %v1643
          %v1645 = vrot.slane %v1644, 4
          %v1646 = vadd.f32 %v1644, %v1645
          %v1647 = vrot.slane %v1646, 2
          %v1648 = vadd.f32 %v1646, %v1647
          %v1649 = vrot.slane %v1648, 1
          %v1650 = vadd.f32 %v1648, %v1649
          %v1651 = vsel %vm1596, %v1518, 0.0
          %v1652 = vsel %vm1596, %v1521, 0.0
          %v1653 = vadd.f32 %v1651, %v1652
          %v1654 = vrot.slane %v1653, 4
          %v1655 = vadd.f32 %v1653, %v1654
          %v1656 = vrot.slane %v1655, 2
          %v1657 = vadd.f32 %v1655, %v1656
          %v1658 = vrot.slane %v1657, 1
          %v1659 = vadd.f32 %v1657, %v1658
          %v1660 = vsel %vm1596, %v1526, 0.0
          %v1661 = vsel %vm1596, %v1529, 0.0
          %v1662 = vadd.f32 %v1660, %v1661
          %v1663 = vrot.slane %v1662, 4
          %v1664 = vadd.f32 %v1662, %v1663
          %v1665 = vrot.slane %v1664, 2
          %v1666 = vadd.f32 %v1664, %v1665
          %v1667 = vrot.slane %v1666, 1
          %v1668 = vadd.f32 %v1666, %v1667
          %v1669 = vsel %vm1596, %v1534, 0.0
          %v1670 = vsel %vm1596, %v1537, 0.0
          %v1671 = vadd.f32 %v1669, %v1670
          %v1672 = vrot.slane %v1671, 4
          %v1673 = vadd.f32 %v1671, %v1672
          %v1674 = vrot.slane %v1673, 2
          %v1675 = vadd.f32 %v1673, %v1674
          %v1676 = vrot.slane %v1675, 1
          %v1677 = vadd.f32 %v1675, %v1676
          %v1678 = vsel %vm1596, %v1542, 0.0
          %v1679 = vsel %vm1596, %v1545, 0.0
          %v1680 = vadd.f32 %v1678, %v1679
          %v1681 = vrot.slane %v1680, 4
          %v1682 = vadd.f32 %v1680, %v1681
          %v1683 = vrot.slane %v1682, 2
          %v1684 = vadd.f32 %v1682, %v1683
          %v1685 = vrot.slane %v1684, 1
          %v1686 = vadd.f32 %v1684, %v1685
          %v1687 = vsel %vm1596, %v1550, 0.0
          %v1688 = vsel %vm1596, %v1553, 0.0
          %v1689 = vadd.f32 %v1687, %v1688
          %v1690 = vrot.slane %v1689, 4
          %v1691 = vadd.f32 %v1689, %v1690
          %v1692 = vrot.slane %v1691, 2
          %v1693 = vadd.f32 %v1691, %v1692
          %v1694 = vrot.slane %v1693, 1
          %v1695 = vadd.f32 %v1693, %v1694
          %v1696 = vsel %vm1596, %v1558, 0.0
          %v1697 = vsel %vm1596, %v1561, 0.0
          %v1698 = vadd.f32 %v1696, %v1697
          %v1699 = vrot.slane %v1698, 4
          %v1700 = vadd.f32 %v1698, %v1699
          %v1701 = vrot.slane %v1700, 2
          %v1702 = vadd.f32 %v1700, %v1701
          %v1703 = vrot.slane %v1702, 1
          %v1704 = vadd.f32 %v1702, %v1703
          %v1705 = vsel %vm1596, %v1566, 0.0
          %v1706 = vsel %vm1596, %v1569, 0.0
          %v1707 = vadd.f32 %v1705, %v1706
          %v1708 = vrot.slane %v1707, 4
          %v1709 = vadd.f32 %v1707, %v1708
          %v1710 = vrot.slane %v1709, 2
          %v1711 = vadd.f32 %v1709, %v1710
          %v1712 = vrot.slane %v1711, 1
          %v1713 = vadd.f32 %v1711, %v1712
          %v1714 = vsel %vm1596, %v1574, 0.0
          %v1715 = vsel %vm1596, %v1577, 0.0
          %v1716 = vadd.f32 %v1714, %v1715
          %v1717 = vrot.slane %v1716, 4
          %v1718 = vadd.f32 %v1716, %v1717
          %v1719 = vrot.slane %v1718, 2
          %v1720 = vadd.f32 %v1718, %v1719
          %v1721 = vrot.slane %v1720, 1
          %v1722 = vadd.f32 %v1720, %v1721
          %v1723 = vsel %vm1596, %v1582, 0.0
          %v1724 = vsel %vm1596, %v1585, 0.0
          %v1725 = vadd.f32 %v1723, %v1724
          %v1726 = vrot.slane %v1725, 4
          %v1727 = vadd.f32 %v1725, %v1726
          %v1728 = vrot.slane %v1727, 2
          %v1729 = vadd.f32 %v1727, %v1728
          %v1730 = vrot.slane %v1729, 1
          %v1731 = vadd.f32 %v1729, %v1730
          %v1732 = vsel %vm1596, %v1590, 0.0
          %v1733 = vsel %vm1596, %v1593, 0.0
          %v1734 = vadd.f32 %v1732, %v1733
          %v1735 = vrot.slane %v1734, 4
          %v1736 = vadd.f32 %v1734, %v1735
          %v1737 = vrot.slane %v1736, 2
          %v1738 = vadd.f32 %v1736, %v1737
          %v1739 = vrot.slane %v1738, 1
          %v1740 = vadd.f32 %v1738, %v1739
          %v1741 = vrcp.pop 16.0
          %v1742 = vmul.f32 %v1605, %v1741
          %v1743 = vmul.f32 %v1614, %v1741
          %v1744 = vmul.f32 %v1623, %v1741
          %v1745 = vmul.f32 %v1632, %v1741
          %v1746 = vmul.f32 %v1641, %v1741
          %v1747 = vmul.f32 %v1650, %v1741
          %v1748 = vmul.f32 %v1659, %v1741
          %v1749 = vmul.f32 %v1668, %v1741
          %v1750 = vmul.f32 %v1677, %v1741
          %v1751 = vmul.f32 %v1686, %v1741
          %v1752 = vmul.f32 %v1695, %v1741
          %v1753 = vmul.f32 %v1704, %v1741
          %v1754 = vmul.f32 %v1713, %v1741
          %v1755 = vmul.f32 %v1722, %v1741
          %v1756 = vmul.f32 %v1731, %v1741
          %v1757 = vmul.f32 %v1740, %v1741
          %v1758 = vsub.f32 %v1470, %v1742
          %v1759 = vsub.f32 %v1473, %v1742
          %v1760 = vsub.f32 %v1478, %v1743
          %v1761 = vsub.f32 %v1481, %v1743
          %v1762 = vsub.f32 %v1486, %v1744
          %v1763 = vsub.f32 %v1489, %v1744
          %v1764 = vsub.f32 %v1494, %v1745
          %v1765 = vsub.f32 %v1497, %v1745
          %v1766 = vsub.f32 %v1502, %v1746
          %v1767 = vsub.f32 %v1505, %v1746
          %v1768 = vsub.f32 %v1510, %v1747
          %v1769 = vsub.f32 %v1513, %v1747
          %v1770 = vsub.f32 %v1518, %v1748
          %v1771 = vsub.f32 %v1521, %v1748
          %v1772 = vsub.f32 %v1526, %v1749
          %v1773 = vsub.f32 %v1529, %v1749
          %v1774 = vsub.f32 %v1534, %v1750
          %v1775 = vsub.f32 %v1537, %v1750
          %v1776 = vsub.f32 %v1542, %v1751
          %v1777 = vsub.f32 %v1545, %v1751
          %v1778 = vsub.f32 %v1550, %v1752
          %v1779 = vsub.f32 %v1553, %v1752
          %v1780 = vsub.f32 %v1558, %v1753
          %v1781 = vsub.f32 %v1561, %v1753
          %v1782 = vsub.f32 %v1566, %v1754
          %v1783 = vsub.f32 %v1569, %v1754
          %v1784 = vsub.f32 %v1574, %v1755
          %v1785 = vsub.f32 %v1577, %v1755
          %v1786 = vsub.f32 %v1582, %v1756
          %v1787 = vsub.f32 %v1585, %v1756
          %v1788 = vsub.f32 %v1590, %v1757
          %v1789 = vsub.f32 %v1593, %v1757
          %v1790 = vmul.f32 %v1758, %v1758
          %v1791 = vmul.f32 %v1759, %v1759
          %v1792 = vmul.f32 %v1760, %v1760
          %v1793 = vmul.f32 %v1761, %v1761
          %v1794 = vmul.f32 %v1762, %v1762
          %v1795 = vmul.f32 %v1763, %v1763
          %v1796 = vmul.f32 %v1764, %v1764
          %v1797 = vmul.f32 %v1765, %v1765
          %v1798 = vmul.f32 %v1766, %v1766
          %v1799 = vmul.f32 %v1767, %v1767
          %v1800 = vmul.f32 %v1768, %v1768
          %v1801 = vmul.f32 %v1769, %v1769
          %v1802 = vmul.f32 %v1770, %v1770
          %v1803 = vmul.f32 %v1771, %v1771
          %v1804 = vmul.f32 %v1772, %v1772
          %v1805 = vmul.f32 %v1773, %v1773
          %v1806 = vmul.f32 %v1774, %v1774
          %v1807 = vmul.f32 %v1775, %v1775
          %v1808 = vmul.f32 %v1776, %v1776
          %v1809 = vmul.f32 %v1777, %v1777
          %v1810 = vmul.f32 %v1778, %v1778
          %v1811 = vmul.f32 %v1779, %v1779
          %v1812 = vmul.f32 %v1780, %v1780
          %v1813 = vmul.f32 %v1781, %v1781
          %v1814 = vmul.f32 %v1782, %v1782
          %v1815 = vmul.f32 %v1783, %v1783
          %v1816 = vmul.f32 %v1784, %v1784
          %v1817 = vmul.f32 %v1785, %v1785
          %v1818 = vmul.f32 %v1786, %v1786
          %v1819 = vmul.f32 %v1787, %v1787
          %v1820 = vmul.f32 %v1788, %v1788
          %v1821 = vmul.f32 %v1789, %v1789
          %v1822 = vsel %vm1596, %v1790, 0.0
          %v1823 = vsel %vm1596, %v1791, 0.0
          %v1824 = vadd.f32 %v1822, %v1823
          %v1825 = vrot.slane %v1824, 4
          %v1826 = vadd.f32 %v1824, %v1825
          %v1827 = vrot.slane %v1826, 2
          %v1828 = vadd.f32 %v1826, %v1827
          %v1829 = vrot.slane %v1828, 1
          %v1830 = vadd.f32 %v1828, %v1829
          %v1831 = vsel %vm1596, %v1792, 0.0
          %v1832 = vsel %vm1596, %v1793, 0.0
          %v1833 = vadd.f32 %v1831, %v1832
          %v1834 = vrot.slane %v1833, 4
          %v1835 = vadd.f32 %v1833, %v1834
          %v1836 = vrot.slane %v1835, 2
          %v1837 = vadd.f32 %v1835, %v1836
          %v1838 = vrot.slane %v1837, 1
          %v1839 = vadd.f32 %v1837, %v1838
          %v1840 = vsel %vm1596, %v1794, 0.0
          %v1841 = vsel %vm1596, %v1795, 0.0
          %v1842 = vadd.f32 %v1840, %v1841
          %v1843 = vrot.slane %v1842, 4
          %v1844 = vadd.f32 %v1842, %v1843
          %v1845 = vrot.slane %v1844, 2
          %v1846 = vadd.f32 %v1844, %v1845
          %v1847 = vrot.slane %v1846, 1
          %v1848 = vadd.f32 %v1846, %v1847
          %v1849 = vsel %vm1596, %v1796, 0.0
          %v1850 = vsel %vm1596, %v1797, 0.0
          %v1851 = vadd.f32 %v1849, %v1850
          %v1852 = vrot.slane %v1851, 4
          %v1853 = vadd.f32 %v1851, %v1852
          %v1854 = vrot.slane %v1853, 2
          %v1855 = vadd.f32 %v1853, %v1854
          %v1856 = vrot.slane %v1855, 1
          %v1857 = vadd.f32 %v1855, %v1856
          %v1858 = vsel %vm1596, %v1798, 0.0
          %v1859 = vsel %vm1596, %v1799, 0.0
          %v1860 = vadd.f32 %v1858, %v1859
          %v1861 = vrot.slane %v1860, 4
          %v1862 = vadd.f32 %v1860, %v1861
          %v1863 = vrot.slane %v1862, 2
          %v1864 = vadd.f32 %v1862, %v1863
          %v1865 = vrot.slane %v1864, 1
          %v1866 = vadd.f32 %v1864, %v1865
          %v1867 = vsel %vm1596, %v1800, 0.0
          %v1868 = vsel %vm1596, %v1801, 0.0
          %v1869 = vadd.f32 %v1867, %v1868
          %v1870 = vrot.slane %v1869, 4
          %v1871 = vadd.f32 %v1869, %v1870
          %v1872 = vrot.slane %v1871, 2
          %v1873 = vadd.f32 %v1871, %v1872
          %v1874 = vrot.slane %v1873, 1
          %v1875 = vadd.f32 %v1873, %v1874
          %v1876 = vsel %vm1596, %v1802, 0.0
          %v1877 = vsel %vm1596, %v1803, 0.0
          %v1878 = vadd.f32 %v1876, %v1877
          %v1879 = vrot.slane %v1878, 4
          %v1880 = vadd.f32 %v1878, %v1879
          %v1881 = vrot.slane %v1880, 2
          %v1882 = vadd.f32 %v1880, %v1881
          %v1883 = vrot.slane %v1882, 1
          %v1884 = vadd.f32 %v1882, %v1883
          %v1885 = vsel %vm1596, %v1804, 0.0
          %v1886 = vsel %vm1596, %v1805, 0.0
          %v1887 = vadd.f32 %v1885, %v1886
          %v1888 = vrot.slane %v1887, 4
          %v1889 = vadd.f32 %v1887, %v1888
          %v1890 = vrot.slane %v1889, 2
          %v1891 = vadd.f32 %v1889, %v1890
          %v1892 = vrot.slane %v1891, 1
          %v1893 = vadd.f32 %v1891, %v1892
          %v1894 = vsel %vm1596, %v1806, 0.0
          %v1895 = vsel %vm1596, %v1807, 0.0
          %v1896 = vadd.f32 %v1894, %v1895
          %v1897 = vrot.slane %v1896, 4
          %v1898 = vadd.f32 %v1896, %v1897
          %v1899 = vrot.slane %v1898, 2
          %v1900 = vadd.f32 %v1898, %v1899
          %v1901 = vrot.slane %v1900, 1
          %v1902 = vadd.f32 %v1900, %v1901
          %v1903 = vsel %vm1596, %v1808, 0.0
          %v1904 = vsel %vm1596, %v1809, 0.0
          %v1905 = vadd.f32 %v1903, %v1904
          %v1906 = vrot.slane %v1905, 4
          %v1907 = vadd.f32 %v1905, %v1906
          %v1908 = vrot.slane %v1907, 2
          %v1909 = vadd.f32 %v1907, %v1908
          %v1910 = vrot.slane %v1909, 1
          %v1911 = vadd.f32 %v1909, %v1910
          %v1912 = vsel %vm1596, %v1810, 0.0
          %v1913 = vsel %vm1596, %v1811, 0.0
          %v1914 = vadd.f32 %v1912, %v1913
          %v1915 = vrot.slane %v1914, 4
          %v1916 = vadd.f32 %v1914, %v1915
          %v1917 = vrot.slane %v1916, 2
          %v1918 = vadd.f32 %v1916, %v1917
          %v1919 = vrot.slane %v1918, 1
          %v1920 = vadd.f32 %v1918, %v1919
          %v1921 = vsel %vm1596, %v1812, 0.0
          %v1922 = vsel %vm1596, %v1813, 0.0
          %v1923 = vadd.f32 %v1921, %v1922
          %v1924 = vrot.slane %v1923, 4
          %v1925 = vadd.f32 %v1923, %v1924
          %v1926 = vrot.slane %v1925, 2
          %v1927 = vadd.f32 %v1925, %v1926
          %v1928 = vrot.slane %v1927, 1
          %v1929 = vadd.f32 %v1927, %v1928
          %v1930 = vsel %vm1596, %v1814, 0.0
          %v1931 = vsel %vm1596, %v1815, 0.0
          %v1932 = vadd.f32 %v1930, %v1931
          %v1933 = vrot.slane %v1932, 4
          %v1934 = vadd.f32 %v1932, %v1933
          %v1935 = vrot.slane %v1934, 2
          %v1936 = vadd.f32 %v1934, %v1935
          %v1937 = vrot.slane %v1936, 1
          %v1938 = vadd.f32 %v1936, %v1937
          %v1939 = vsel %vm1596, %v1816, 0.0
          %v1940 = vsel %vm1596, %v1817, 0.0
          %v1941 = vadd.f32 %v1939, %v1940
          %v1942 = vrot.slane %v1941, 4
          %v1943 = vadd.f32 %v1941, %v1942
          %v1944 = vrot.slane %v1943, 2
          %v1945 = vadd.f32 %v1943, %v1944
          %v1946 = vrot.slane %v1945, 1
          %v1947 = vadd.f32 %v1945, %v1946
          %v1948 = vsel %vm1596, %v1818, 0.0
          %v1949 = vsel %vm1596, %v1819, 0.0
          %v1950 = vadd.f32 %v1948, %v1949
          %v1951 = vrot.slane %v1950, 4
          %v1952 = vadd.f32 %v1950, %v1951
          %v1953 = vrot.slane %v1952, 2
          %v1954 = vadd.f32 %v1952, %v1953
          %v1955 = vrot.slane %v1954, 1
          %v1956 = vadd.f32 %v1954, %v1955
          %v1957 = vsel %vm1596, %v1820, 0.0
          %v1958 = vsel %vm1596, %v1821, 0.0
          %v1959 = vadd.f32 %v1957, %v1958
          %v1960 = vrot.slane %v1959, 4
          %v1961 = vadd.f32 %v1959, %v1960
          %v1962 = vrot.slane %v1961, 2
          %v1963 = vadd.f32 %v1961, %v1962
          %v1964 = vrot.slane %v1963, 1
          %v1965 = vadd.f32 %v1963, %v1964
          %v1966 = vmul.f32 %v1830, 0.06666667
          %v1967 = vmul.f32 %v1839, 0.06666667
          %v1968 = vmul.f32 %v1848, 0.06666667
          %v1969 = vmul.f32 %v1857, 0.06666667
          %v1970 = vmul.f32 %v1866, 0.06666667
          %v1971 = vmul.f32 %v1875, 0.06666667
          %v1972 = vmul.f32 %v1884, 0.06666667
          %v1973 = vmul.f32 %v1893, 0.06666667
          %v1974 = vmul.f32 %v1902, 0.06666667
          %v1975 = vmul.f32 %v1911, 0.06666667
          %v1976 = vmul.f32 %v1920, 0.06666667
          %v1977 = vmul.f32 %v1929, 0.06666667
          %v1978 = vmul.f32 %v1938, 0.06666667
          %v1979 = vmul.f32 %v1947, 0.06666667
          %v1980 = vmul.f32 %v1956, 0.06666667
          %v1981 = vmul.f32 %v1965, 0.06666667
          %v1982 = vrsqrt.pop %v1966
          %v1983 = vmul.f32 %v1966, %v1982
          %vm1984 = vcmp.eq.f32.partialorder %v1966, inf
          %v1985 = vsel %vm1984, %v1966, %v1983
          %vm1986 = vcmp.eq.f32.partialorder %v1966, 0.0
          %v1987 = vand.u32 %v1966, 2147483648
          %v1988 = vsel %vm1986, %v1987, %v1985
          %v1989 = vrsqrt.pop %v1967
          %v1990 = vmul.f32 %v1967, %v1989
          %vm1991 = vcmp.eq.f32.partialorder %v1967, inf
          %v1992 = vsel %vm1991, %v1967, %v1990
          %vm1993 = vcmp.eq.f32.partialorder %v1967, 0.0
          %v1994 = vand.u32 %v1967, 2147483648
          %v1995 = vsel %vm1993, %v1994, %v1992
          %v1996 = vrsqrt.pop %v1968
          %v1997 = vmul.f32 %v1968, %v1996
          %vm1998 = vcmp.eq.f32.partialorder %v1968, inf
          %v1999 = vsel %vm1998, %v1968, %v1997
          %vm2000 = vcmp.eq.f32.partialorder %v1968, 0.0
          %v2001 = vand.u32 %v1968, 2147483648
          %v2002 = vsel %vm2000, %v2001, %v1999
          %v2003 = vrsqrt.pop %v1969
          %v2004 = vmul.f32 %v1969, %v2003
          %vm2005 = vcmp.eq.f32.partialorder %v1969, inf
          %v2006 = vsel %vm2005, %v1969, %v2004
          %vm2007 = vcmp.eq.f32.partialorder %v1969, 0.0
          %v2008 = vand.u32 %v1969, 2147483648
          %v2009 = vsel %vm2007, %v2008, %v2006
          %v2010 = vrsqrt.pop %v1970
          %v2011 = vmul.f32 %v1970, %v2010
          %vm2012 = vcmp.eq.f32.partialorder %v1970, inf
          %v2013 = vsel %vm2012, %v1970, %v2011
          %vm2014 = vcmp.eq.f32.partialorder %v1970, 0.0
          %v2015 = vand.u32 %v1970, 2147483648
          %v2016 = vsel %vm2014, %v2015, %v2013
          %v2017 = vrsqrt.pop %v1971
          %v2018 = vmul.f32 %v1971, %v2017
          %vm2019 = vcmp.eq.f32.partialorder %v1971, inf
          %v2020 = vsel %vm2019, %v1971, %v2018
          %vm2021 = vcmp.eq.f32.partialorder %v1971, 0.0
          %v2022 = vand.u32 %v1971, 2147483648
          %v2023 = vsel %vm2021, %v2022, %v2020
          %v2024 = vrsqrt.pop %v1972
          %v2025 = vmul.f32 %v1972, %v2024
          %vm2026 = vcmp.eq.f32.partialorder %v1972, inf
          %v2027 = vsel %vm2026, %v1972, %v2025
          %vm2028 = vcmp.eq.f32.partialorder %v1972, 0.0
          %v2029 = vand.u32 %v1972, 2147483648
          %v2030 = vsel %vm2028, %v2029, %v2027
          %v2031 = vrsqrt.pop %v1973
          %v2032 = vmul.f32 %v1973, %v2031
          %vm2033 = vcmp.eq.f32.partialorder %v1973, inf
          %v2034 = vsel %vm2033, %v1973, %v2032
          %vm2035 = vcmp.eq.f32.partialorder %v1973, 0.0
          %v2036 = vand.u32 %v1973, 2147483648
          %v2037 = vsel %vm2035, %v2036, %v2034
          %v2038 = vrsqrt.pop %v1974
          %v2039 = vmul.f32 %v1974, %v2038
          %vm2040 = vcmp.eq.f32.partialorder %v1974, inf
          %v2041 = vsel %vm2040, %v1974, %v2039
          %vm2042 = vcmp.eq.f32.partialorder %v1974, 0.0
          %v2043 = vand.u32 %v1974, 2147483648
          %v2044 = vsel %vm2042, %v2043, %v2041
          %v2045 = vrsqrt.pop %v1975
          %v2046 = vmul.f32 %v1975, %v2045
          %vm2047 = vcmp.eq.f32.partialorder %v1975, inf
          %v2048 = vsel %vm2047, %v1975, %v2046
          %vm2049 = vcmp.eq.f32.partialorder %v1975, 0.0
          %v2050 = vand.u32 %v1975, 2147483648
          %v2051 = vsel %vm2049, %v2050, %v2048
          %v2052 = vrsqrt.pop %v1976
          %v2053 = vmul.f32 %v1976, %v2052
          %vm2054 = vcmp.eq.f32.partialorder %v1976, inf
          %v2055 = vsel %vm2054, %v1976, %v2053
          %vm2056 = vcmp.eq.f32.partialorder %v1976, 0.0
          %v2057 = vand.u32 %v1976, 2147483648
          %v2058 = vsel %vm2056, %v2057, %v2055
          %v2059 = vrsqrt.pop %v1977
          %v2060 = vmul.f32 %v1977, %v2059
          %vm2061 = vcmp.eq.f32.partialorder %v1977, inf
          %v2062 = vsel %vm2061, %v1977, %v2060
          %vm2063 = vcmp.eq.f32.partialorder %v1977, 0.0
          %v2064 = vand.u32 %v1977, 2147483648
          %v2065 = vsel %vm2063, %v2064, %v2062
          %v2066 = vrsqrt.pop %v1978
          %v2067 = vmul.f32 %v1978, %v2066
          %vm2068 = vcmp.eq.f32.partialorder %v1978, inf
          %v2069 = vsel %vm2068, %v1978, %v2067
          %vm2070 = vcmp.eq.f32.partialorder %v1978, 0.0
          %v2071 = vand.u32 %v1978, 2147483648
          %v2072 = vsel %vm2070, %v2071, %v2069
          %v2073 = vrsqrt.pop %v1979
          %v2074 = vmul.f32 %v1979, %v2073
          %vm2075 = vcmp.eq.f32.partialorder %v1979, inf
          %v2076 = vsel %vm2075, %v1979, %v2074
          %vm2077 = vcmp.eq.f32.partialorder %v1979, 0.0
          %v2078 = vand.u32 %v1979, 2147483648
          %v2079 = vsel %vm2077, %v2078, %v2076
          %v2080 = vrsqrt.pop %v1980
          %v2081 = vmul.f32 %v1980, %v2080
          %vm2082 = vcmp.eq.f32.partialorder %v1980, inf
          %v2083 = vsel %vm2082, %v1980, %v2081
          %vm2084 = vcmp.eq.f32.partialorder %v1980, 0.0
          %v2085 = vand.u32 %v1980, 2147483648
          %v2086 = vsel %vm2084, %v2085, %v2083
          %v2087 = vrsqrt.pop %v1981
          %v2088 = vmul.f32 %v1981, %v2087
          %vm2089 = vcmp.eq.f32.partialorder %v1981, inf
          %v2090 = vsel %vm2089, %v1981, %v2088
          %vm2091 = vcmp.eq.f32.partialorder %v1981, 0.0
          %v2092 = vand.u32 %v1981, 2147483648
          %v2093 = vsel %vm2091, %v2092, %v2090
          %v2094 = vpack.c.bf16 %v1742, %v1742
          %v2095 = vpack.c.bf16 %v1743, %v1743
          %v2096 = vpack.c.bf16 %v1744, %v1744
          %v2097 = vpack.c.bf16 %v1745, %v1745
          %v2098 = vpack.c.bf16 %v1746, %v1746
          %v2099 = vpack.c.bf16 %v1747, %v1747
          %v2100 = vpack.c.bf16 %v1748, %v1748
          %v2101 = vpack.c.bf16 %v1749, %v1749
          %v2102 = vpack.c.bf16 %v1750, %v1750
          %v2103 = vpack.c.bf16 %v1751, %v1751
          %v2104 = vpack.c.bf16 %v1752, %v1752
          %v2105 = vpack.c.bf16 %v1753, %v1753
          %v2106 = vpack.c.bf16 %v1754, %v1754
          %v2107 = vpack.c.bf16 %v1755, %v1755
          %v2108 = vpack.c.bf16 %v1756, %v1756
          %v2109 = vpack.c.bf16 %v1757, %v1757
          %v2110 = vld [vmem:[%s5] sm:$0xf]
          %v2111 = vld [vmem:[%s5 + $0x4] sm:$0xf]
          %v2112 = vld [vmem:[%s5 + $0x8] sm:$0xf]
          %v2113 = vld [vmem:[%s5 + $0xc] sm:$0xf]
          %v2114 = vld [vmem:[%s5 + $0x10] sm:$0xf]
          %v2115 = vld [vmem:[%s5 + $0x14] sm:$0xf]
          %v2116 = vld [vmem:[%s5 + $0x18] sm:$0xf]
          %v2117 = vld [vmem:[%s5 + $0x1c] sm:$0xf]
          %v2118 = vpack.c.bf16 %v1988, %v1988
          %v2119 = vpack.c.bf16 %v1995, %v1995
          %v2120 = vpack.c.bf16 %v2002, %v2002
          %v2121 = vpack.c.bf16 %v2009, %v2009
          %v2122 = vpack.c.bf16 %v2016, %v2016
          %v2123 = vpack.c.bf16 %v2023, %v2023
          %v2124 = vpack.c.bf16 %v2030, %v2030
          %v2125 = vpack.c.bf16 %v2037, %v2037
          %v2126 = vpack.c.bf16 %v2044, %v2044
          %v2127 = vpack.c.bf16 %v2051, %v2051
          %v2128 = vpack.c.bf16 %v2058, %v2058
          %v2129 = vpack.c.bf16 %v2065, %v2065
          %v2130 = vpack.c.bf16 %v2072, %v2072
          %v2131 = vpack.c.bf16 %v2079, %v2079
          %v2132 = vpack.c.bf16 %v2086, %v2086
          %v2133 = vpack.c.bf16 %v2093, %v2093
          %v2134 = vld [vmem:[%s6] sm:$0xf]
          %v2135 = vld [vmem:[%s6 + $0x4] sm:$0xf]
          %v2136 = vld [vmem:[%s6 + $0x8] sm:$0xf]
          %v2137 = vld [vmem:[%s6 + $0xc] sm:$0xf]
          %v2138 = vld [vmem:[%s6 + $0x10] sm:$0xf]
          %v2139 = vld [vmem:[%s6 + $0x14] sm:$0xf]
          %v2140 = vld [vmem:[%s6 + $0x18] sm:$0xf]
          %v2141 = vld [vmem:[%s6 + $0x1c] sm:$0xf]
          %v2158 = vunpack.c.l.b16 %v2118
          %v2159 = vunpack.c.l.b16 %v2119
          %v2160 = vunpack.c.l.b16 %v2120
          %v2161 = vunpack.c.l.b16 %v2121
          %v2162 = vunpack.c.l.b16 %v2122
          %v2163 = vunpack.c.l.b16 %v2123
          %v2164 = vunpack.c.l.b16 %v2124
          %v2165 = vunpack.c.l.b16 %v2125
          %v2166 = vunpack.c.l.b16 %v2126
          %v2167 = vunpack.c.l.b16 %v2127
          %v2168 = vunpack.c.l.b16 %v2128
          %v2169 = vunpack.c.l.b16 %v2129
          %v2170 = vunpack.c.l.b16 %v2130
          %v2171 = vunpack.c.l.b16 %v2131
          %v2172 = vunpack.c.l.b16 %v2132
          %v2173 = vunpack.c.l.b16 %v2133
          %vm2174 = vcmask 1041409
          %v2175 = vsel %vm2174, %v2159, %v2158
          %vm2176 = vcmask 1042434
          %v2177 = vsel %vm2176, %v2160, %v2175
          %vm2178 = vcmask 1043459
          %v2179 = vsel %vm2178, %v2161, %v2177
          %vm2180 = vcmask 1044484
          %v2181 = vsel %vm2180, %v2162, %v2179
          %vm2182 = vcmask 1045509
          %v2183 = vsel %vm2182, %v2163, %v2181
          %vm2184 = vcmask 1046534
          %v2185 = vsel %vm2184, %v2164, %v2183
          %vm2186 = vcmask 1047559
          %v2187 = vsel %vm2186, %v2165, %v2185
          %v2188 = vsel %vm2174, %v2167, %v2166
          %v2189 = vsel %vm2176, %v2168, %v2188
          %v2190 = vsel %vm2178, %v2169, %v2189
          %v2191 = vsel %vm2180, %v2170, %v2190
          %v2192 = vsel %vm2182, %v2171, %v2191
          %v2193 = vsel %vm2184, %v2172, %v2192
          %v2194 = vsel %vm2186, %v2173, %v2193
          %v2195 = vpack.c.b16 %v2194, %v2187
          %v2204 = vunpack.c.l.b16 %v2134
          %v2205 = vunpack.c.l.b16 %v2135
          %v2206 = vunpack.c.l.b16 %v2136
          %v2207 = vunpack.c.l.b16 %v2137
          %v2208 = vunpack.c.l.b16 %v2138
          %v2209 = vunpack.c.l.b16 %v2139
          %v2210 = vunpack.c.l.b16 %v2140
          %v2211 = vunpack.c.l.b16 %v2141
          %v2212 = vpack.c.b16 %v2205, %v2204
          %v2213 = vpack.c.b16 %v2207, %v2206
          %v2214 = vpack.c.b16 %v2209, %v2208
          %v2215 = vpack.c.b16 %v2211, %v2210
          %v2221 = vsel %vm1596, %v2195, 0
          %2223 = vmatprep.subr.bf16.mxu0 0
          %2224 = vmatpush1.bf16.msra.mxu0 0
          %2225 = vmatprep.subr.bf16.mxu0 0
          %2226 = vmatpush1.bf16.msra.mxu0 0
          %2227 = vmatprep.subr.bf16.mxu0 0
          %2228 = vmatpush1.bf16.msra.mxu0 0
          %2229 = vmatprep.subr.bf16.mxu0 0
          %2230 = vmatpush1.bf16.msra.mxu0 0
          %2231 = vmatprep.subr.bf16.mxu0 0
          %2232 = vmatpush1.bf16.msra.mxu0 %v2215
          %2233 = vmatprep.subr.bf16.mxu0 0
          %2234 = vmatpush1.bf16.msra.mxu0 %v2214
          %2235 = vmatprep.subr.bf16.mxu0 0
          %2236 = vmatpush1.bf16.msra.mxu0 %v2213
          %2237 = vmatprep.subr.bf16.mxu0 0
          %2238 = vmatpush1.bf16.msra.mxu0 %v2212
          %2239 = vmatprep.subr.bf16.mxu0 0
          %2240 = vmatpush2.bf16.msra.mxu0 0
          %2241 = vmatprep.subr.bf16.mxu0 0
          %2242 = vmatpush2.bf16.msra.mxu0 0
          %2243 = vmatprep.subr.bf16.mxu0 0
          %2244 = vmatpush2.bf16.msra.mxu0 0
          %2245 = vmatprep.subr.bf16.mxu0 0
          %2246 = vmatpush2.bf16.msra.mxu0 0
          %2247 = vmatprep.subr.bf16.mxu0 0
          %2248 = vmatpush2.bf16.msra.mxu0 0
          %2249 = vmatprep.subr.bf16.mxu0 0
          %2250 = vmatpush2.bf16.msra.mxu0 0
          %2251 = vmatprep.subr.bf16.mxu0 0
          %2252 = vmatpush2.bf16.msra.mxu0 0
          %2253 = vmatprep.subr.bf16.mxu0 0
          %2254 = vmatpush2.bf16.msra.mxu0 0
          %2255 = vmatprep.mubr.bf16.mxu0 0
          %2256 = vmatmul.mubr.bf16.gmra.mxu0 %v2221
          %v2257 = vpop.f32.mrf.mxu0
          %v2258 = vadd.f32 0.0, %v2257
          %v2259 = vpop.f32.mrf.mxu0
          %v2260 = vpop.f32.mrf.mxu0
          %v2261 = vadd.f32 0.0, %v2260
          %v2262 = vpop.f32.mrf.mxu0
          %2263 = vdwg.mxu0
          %v2280 = vunpack.c.l.b16 %v2094
          %v2281 = vunpack.c.l.b16 %v2095
          %v2282 = vunpack.c.l.b16 %v2096
          %v2283 = vunpack.c.l.b16 %v2097
          %v2284 = vunpack.c.l.b16 %v2098
          %v2285 = vunpack.c.l.b16 %v2099
          %v2286 = vunpack.c.l.b16 %v2100
          %v2287 = vunpack.c.l.b16 %v2101
          %v2288 = vunpack.c.l.b16 %v2102
          %v2289 = vunpack.c.l.b16 %v2103
          %v2290 = vunpack.c.l.b16 %v2104
          %v2291 = vunpack.c.l.b16 %v2105
          %v2292 = vunpack.c.l.b16 %v2106
          %v2293 = vunpack.c.l.b16 %v2107
          %v2294 = vunpack.c.l.b16 %v2108
          %v2295 = vunpack.c.l.b16 %v2109
          %v2296 = vsel %vm2174, %v2281, %v2280
          %v2297 = vsel %vm2176, %v2282, %v2296
          %v2298 = vsel %vm2178, %v2283, %v2297
          %v2299 = vsel %vm2180, %v2284, %v2298
          %v2300 = vsel %vm2182, %v2285, %v2299
          %v2301 = vsel %vm2184, %v2286, %v2300
          %v2302 = vsel %vm2186, %v2287, %v2301
          %v2303 = vsel %vm2174, %v2289, %v2288
          %v2304 = vsel %vm2176, %v2290, %v2303
          %v2305 = vsel %vm2178, %v2291, %v2304
          %v2306 = vsel %vm2180, %v2292, %v2305
          %v2307 = vsel %vm2182, %v2293, %v2306
          %v2308 = vsel %vm2184, %v2294, %v2307
          %v2309 = vsel %vm2186, %v2295, %v2308
          %v2310 = vpack.c.b16 %v2309, %v2302
          %v2319 = vunpack.c.l.b16 %v2110
          %v2320 = vunpack.c.l.b16 %v2111
          %v2321 = vunpack.c.l.b16 %v2112
          %v2322 = vunpack.c.l.b16 %v2113
          %v2323 = vunpack.c.l.b16 %v2114
          %v2324 = vunpack.c.l.b16 %v2115
          %v2325 = vunpack.c.l.b16 %v2116
          %v2326 = vunpack.c.l.b16 %v2117
          %v2327 = vpack.c.b16 %v2320, %v2319
          %v2328 = vpack.c.b16 %v2322, %v2321
          %v2329 = vpack.c.b16 %v2324, %v2323
          %v2330 = vpack.c.b16 %v2326, %v2325
          %v2336 = vsel %vm1596, %v2310, 0
          %2338 = vmatprep.subr.bf16.mxu0 0
          %2339 = vmatpush1.bf16.msra.mxu0 0
          %2340 = vmatprep.subr.bf16.mxu0 0
          %2341 = vmatpush1.bf16.msra.mxu0 0
          %2342 = vmatprep.subr.bf16.mxu0 0
          %2343 = vmatpush1.bf16.msra.mxu0 0
          %2344 = vmatprep.subr.bf16.mxu0 0
          %2345 = vmatpush1.bf16.msra.mxu0 0
          %2346 = vmatprep.subr.bf16.mxu0 0
          %2347 = vmatpush1.bf16.msra.mxu0 %v2330
          %2348 = vmatprep.subr.bf16.mxu0 0
          %2349 = vmatpush1.bf16.msra.mxu0 %v2329
          %2350 = vmatprep.subr.bf16.mxu0 0
          %2351 = vmatpush1.bf16.msra.mxu0 %v2328
          %2352 = vmatprep.subr.bf16.mxu0 0
          %2353 = vmatpush1.bf16.msra.mxu0 %v2327
          %2354 = vmatprep.subr.bf16.mxu0 0
          %2355 = vmatpush2.bf16.msra.mxu0 0
          %2356 = vmatprep.subr.bf16.mxu0 0
          %2357 = vmatpush2.bf16.msra.mxu0 0
          %2358 = vmatprep.subr.bf16.mxu0 0
          %2359 = vmatpush2.bf16.msra.mxu0 0
          %2360 = vmatprep.subr.bf16.mxu0 0
          %2361 = vmatpush2.bf16.msra.mxu0 0
          %2362 = vmatprep.subr.bf16.mxu0 0
          %2363 = vmatpush2.bf16.msra.mxu0 0
          %2364 = vmatprep.subr.bf16.mxu0 0
          %2365 = vmatpush2.bf16.msra.mxu0 0
          %2366 = vmatprep.subr.bf16.mxu0 0
          %2367 = vmatpush2.bf16.msra.mxu0 0
          %2368 = vmatprep.subr.bf16.mxu0 0
          %2369 = vmatpush2.bf16.msra.mxu0 0
          %2370 = vmatprep.mubr.bf16.mxu0 0
          %2371 = vmatmul.mubr.bf16.gmra.mxu0 %v2336
          %v2372 = vpop.f32.mrf.mxu0
          %v2373 = vadd.f32 %v2258, %v2372
          %v2374 = vpop.f32.mrf.mxu0
          %v2375 = vpop.f32.mrf.mxu0
          %v2376 = vadd.f32 %v2261, %v2375
          %v2377 = vpop.f32.mrf.mxu0
          %2378 = vdwg.mxu0
          %v2379 = vld [vmem:[%s7] sm:$0x1]
          %v2381 = vlaneseq
          %v2382 = vshrl.u32 %v2381, 7
          %v2383 = vsub.s32 0, %v2382
          %v2384 = vrot.slane %v2379, %v2383
          %v2386 = vadd.f32 %v2373, %v2384
          %v2387 = vadd.f32 %v2376, %v2384
          %v2388 = vld [vmem:[%s9] sm:$0xff]
          %v2389 = vld [vmem:[%s9 + $0x8] sm:$0xff]
          %v2390 = vadd.f32 %v2386, %v2388
          %v2391 = vadd.f32 %v2387, %v2389
          %2392 = vst [vmem:[#allocation2] sm:$0xff] %v2390
          %2393 = vst [vmem:[#allocation2 + $0x8] sm:$0xff] %v2391
          %v2394 = vld [vmem:[%s8] sm:$0x3]
          %2395 = vst [vmem:[#allocation2 + $0x10] sm:$0x3] %v2394
        $region144: #{forward.1} parent=127 // pred_fallthru
          _
        %v2396 = vld [vmem:[#allocation2] sm:$0xff]
        %v2397 = vld [vmem:[#allocation2 + $0x8] sm:$0xff]
        %v2398 = vld [vmem:[#allocation2 + $0x10] sm:$0x3]
        %v2399 = vpack.c.bf16 %v2397, %v2396
        %v2400 = vpack.c.bf16 %v2398, %v2398
        %v2401 = vld [vmem:[%s884] sm:$0xff]
        %v2402 = vld [vmem:[%s884 + $0x8] sm:$0xf]
        %v2403 = vld [vmem:[%s884 + $0xc] sm:$0xff]
        %v2404 = vld [vmem:[%s884 + $0x14] sm:$0xf]
        %v2405 = vld [vmem:[%s884 + $0x18] sm:$0xff]
        %v2406 = vld [vmem:[%s884 + $0x20] sm:$0xf]
        %v2407 = vld [vmem:[%s884 + $0x24] sm:$0xff]
        %v2408 = vld [vmem:[%s884 + $0x2c] sm:$0xf]
        %v2409 = vld [vmem:[%s884 + $0x30] sm:$0xff]
        %v2410 = vld [vmem:[%s884 + $0x38] sm:$0xf]
        %v2411 = vld [vmem:[%s884 + $0x3c] sm:$0xff]
        %v2412 = vld [vmem:[%s884 + $0x44] sm:$0xf]
        %v2413 = vld [vmem:[%s884 + $0x48] sm:$0xff]
        %v2414 = vld [vmem:[%s884 + $0x50] sm:$0xf]
        %v2415 = vld [vmem:[%s884 + $0x54] sm:$0xff]
        %v2416 = vld [vmem:[%s884 + $0x5c] sm:$0xf]
        %v2417 = vld [vmem:[%s884 + $0x60] sm:$0xff]
        %v2418 = vld [vmem:[%s884 + $0x68] sm:$0xf]
        %v2419 = vld [vmem:[%s884 + $0x6c] sm:$0xff]
        %v2420 = vld [vmem:[%s884 + $0x74] sm:$0xf]
        %v2421 = vld [vmem:[%s884 + $0x78] sm:$0xff]
        %v2422 = vld [vmem:[%s884 + $0x80] sm:$0xf]
        %v2423 = vld [vmem:[%s884 + $0x84] sm:$0xff]
        %v2424 = vld [vmem:[%s884 + $0x8c] sm:$0xf]
        %v2425 = vld [vmem:[%s884 + $0x90] sm:$0xff]
        %v2426 = vld [vmem:[%s884 + $0x98] sm:$0xf]
        %v2427 = vld [vmem:[%s884 + $0x9c] sm:$0xff]
        %v2428 = vld [vmem:[%s884 + $0xa4] sm:$0xf]
        %v2429 = vld [vmem:[%s884 + $0xa8] sm:$0xff]
        %v2430 = vld [vmem:[%s884 + $0xb0] sm:$0xf]
        %v2431 = vld [vmem:[%s884 + $0xb4] sm:$0xff]
        %v2432 = vld [vmem:[%s884 + $0xbc] sm:$0xf]
        %v2433 = vld [vmem:[%s1012] sm:$0x7]
        %v2435 = vlaneseq
        %v2436 = vshrl.u32 %v2435, 7
        %v2437 = vsub.s32 0, %v2436
        %v2438 = vrot.slane %v2433, %v2437
        %v2439 = vlaneseq
        %v2440 = vshrl.u32 %v2439, 7
        %v2441 = vsub.s32 1, %v2440
        %v2442 = vrot.slane %v2433, %v2441
        %v2443 = vlaneseq
        %v2444 = vshrl.u32 %v2443, 7
        %v2445 = vsub.s32 2, %v2444
        %v2446 = vrot.slane %v2433, %v2445
        %v2482 = vunpack.c.l.b16 %v2401
        %v2483 = vunpack.c.h.b16 %v2401
        %v2484 = vunpack.c.l.b16 %v2402
        %v2485 = vunpack.c.l.b16 %v2403
        %v2486 = vunpack.c.h.b16 %v2403
        %v2487 = vunpack.c.l.b16 %v2404
        %v2488 = vunpack.c.l.b16 %v2405
        %v2489 = vunpack.c.h.b16 %v2405
        %v2490 = vunpack.c.l.b16 %v2406
        %v2491 = vunpack.c.l.b16 %v2407
        %v2492 = vunpack.c.h.b16 %v2407
        %v2493 = vunpack.c.l.b16 %v2408
        %v2494 = vunpack.c.l.b16 %v2409
        %v2495 = vunpack.c.h.b16 %v2409
        %v2496 = vunpack.c.l.b16 %v2410
        %v2497 = vunpack.c.l.b16 %v2411
        %v2498 = vunpack.c.h.b16 %v2411
        %v2499 = vunpack.c.l.b16 %v2412
        %v2500 = vunpack.c.l.b16 %v2413
        %v2501 = vunpack.c.h.b16 %v2413
        %v2502 = vunpack.c.l.b16 %v2414
        %v2503 = vunpack.c.l.b16 %v2415
        %v2504 = vunpack.c.h.b16 %v2415
        %v2505 = vunpack.c.l.b16 %v2416
        %v2506 = vunpack.c.l.b16 %v2417
        %v2507 = vunpack.c.h.b16 %v2417
        %v2508 = vunpack.c.l.b16 %v2418
        %v2509 = vunpack.c.l.b16 %v2419
        %v2510 = vunpack.c.h.b16 %v2419
        %v2511 = vunpack.c.l.b16 %v2420
        %v2512 = vunpack.c.l.b16 %v2421
        %v2513 = vunpack.c.h.b16 %v2421
        %v2514 = vunpack.c.l.b16 %v2422
        %v2515 = vunpack.c.l.b16 %v2423
        %v2516 = vunpack.c.h.b16 %v2423
        %v2517 = vunpack.c.l.b16 %v2424
        %v2518 = vunpack.c.l.b16 %v2425
        %v2519 = vunpack.c.h.b16 %v2425
        %v2520 = vunpack.c.l.b16 %v2426
        %v2521 = vunpack.c.l.b16 %v2427
        %v2522 = vunpack.c.h.b16 %v2427
        %v2523 = vunpack.c.l.b16 %v2428
        %v2524 = vunpack.c.l.b16 %v2429
        %v2525 = vunpack.c.h.b16 %v2429
        %v2526 = vunpack.c.l.b16 %v2430
        %v2527 = vunpack.c.l.b16 %v2431
        %v2528 = vunpack.c.h.b16 %v2431
        %v2529 = vunpack.c.l.b16 %v2432
        %v2530 = vpack.c.b16 %v2485, %v2482
        %v2531 = vpack.c.b16 %v2486, %v2483
        %v2532 = vpack.c.b16 %v2487, %v2484
        %v2533 = vpack.c.b16 %v2491, %v2488
        %v2534 = vpack.c.b16 %v2492, %v2489
        %v2535 = vpack.c.b16 %v2493, %v2490
        %v2536 = vpack.c.b16 %v2497, %v2494
        %v2537 = vpack.c.b16 %v2498, %v2495
        %v2538 = vpack.c.b16 %v2499, %v2496
        %v2539 = vpack.c.b16 %v2503, %v2500
        %v2540 = vpack.c.b16 %v2504, %v2501
        %v2541 = vpack.c.b16 %v2505, %v2502
        %v2542 = vpack.c.b16 %v2509, %v2506
        %v2543 = vpack.c.b16 %v2510, %v2507
        %v2544 = vpack.c.b16 %v2511, %v2508
        %v2545 = vpack.c.b16 %v2515, %v2512
        %v2546 = vpack.c.b16 %v2516, %v2513
        %v2547 = vpack.c.b16 %v2517, %v2514
        %v2548 = vpack.c.b16 %v2521, %v2518
        %v2549 = vpack.c.b16 %v2522, %v2519
        %v2550 = vpack.c.b16 %v2523, %v2520
        %v2551 = vpack.c.b16 %v2527, %v2524
        %v2552 = vpack.c.b16 %v2528, %v2525
        %v2553 = vpack.c.b16 %v2529, %v2526
        %2578 = vmatprep.subr.bf16.mxu0 %v2552
        %2579 = vmatpush1.bf16.msra.mxu0 %v2551
        %2580 = vmatprep.subr.bf16.mxu0 %v2549
        %2581 = vmatpush1.bf16.msra.mxu0 %v2548
        %2582 = vmatprep.subr.bf16.mxu0 %v2546
        %2583 = vmatpush1.bf16.msra.mxu0 %v2545
        %2584 = vmatprep.subr.bf16.mxu0 %v2543
        %2585 = vmatpush1.bf16.msra.mxu0 %v2542
        %2586 = vmatprep.subr.bf16.mxu0 %v2540
        %2587 = vmatpush1.bf16.msra.mxu0 %v2539
        %2588 = vmatprep.subr.bf16.mxu0 %v2537
        %2589 = vmatpush1.bf16.msra.mxu0 %v2536
        %2590 = vmatprep.subr.bf16.mxu0 %v2534
        %2591 = vmatpush1.bf16.msra.mxu0 %v2533
        %2592 = vmatprep.subr.bf16.mxu0 %v2531
        %2593 = vmatpush1.bf16.msra.mxu0 %v2530
        %2594 = vmatprep.subr.bf16.mxu0 0
        %2595 = vmatpush2.bf16.msra.mxu0 0
        %2596 = vmatprep.subr.bf16.mxu0 0
        %2597 = vmatpush2.bf16.msra.mxu0 0
        %2598 = vmatprep.subr.bf16.mxu0 0
        %2599 = vmatpush2.bf16.msra.mxu0 0
        %2600 = vmatprep.subr.bf16.mxu0 0
        %2601 = vmatpush2.bf16.msra.mxu0 0
        %2602 = vmatprep.subr.bf16.mxu0 0
        %2603 = vmatpush2.bf16.msra.mxu0 0
        %2604 = vmatprep.subr.bf16.mxu0 0
        %2605 = vmatpush2.bf16.msra.mxu0 0
        %2606 = vmatprep.subr.bf16.mxu0 0
        %2607 = vmatpush2.bf16.msra.mxu0 0
        %2608 = vmatprep.subr.bf16.mxu0 0
        %2609 = vmatpush2.bf16.msra.mxu0 0
        %2610 = vmatprep.mubr.bf16.mxu0 0
        %2611 = vmatmul.mubr.bf16.gmra.mxu0 %v2399
        %v2612 = vpop.f32.mrf.mxu0
        %v2613 = vadd.f32 %v2438, %v2612
        %v2614 = vpop.f32.mrf.mxu0
        %v2615 = vadd.f32 %v2442, %v2614
        %v2616 = vpop.f32.mrf.mxu0
        %v2617 = vadd.f32 %v2438, %v2616
        %v2618 = vpop.f32.mrf.mxu0
        %v2619 = vadd.f32 %v2442, %v2618
        %2620 = vmatprep.mubr.bf16.mxu0 0
        %2621 = vmatmul.mubr.bf16.gmra.mxu0 %v2400
        %v2622 = vpop.f32.mrf.mxu0
        %v2623 = vadd.f32 %v2438, %v2622
        %v2624 = vpop.f32.mrf.mxu0
        %v2625 = vadd.f32 %v2442, %v2624
        %v2626 = vpop.f32.mrf.mxu0
        %v2627 = vpop.f32.mrf.mxu0
        %2628 = vdwg.mxu0
        %2629 = vmatprep.subr.bf16.mxu0 0
        %2630 = vmatpush1.bf16.msra.mxu0 %v2553
        %2631 = vmatprep.subr.bf16.mxu0 0
        %2632 = vmatpush1.bf16.msra.mxu0 %v2550
        %2633 = vmatprep.subr.bf16.mxu0 0
        %2634 = vmatpush1.bf16.msra.mxu0 %v2547
        %2635 = vmatprep.subr.bf16.mxu0 0
        %2636 = vmatpush1.bf16.msra.mxu0 %v2544
        %2637 = vmatprep.subr.bf16.mxu0 0
        %2638 = vmatpush1.bf16.msra.mxu0 %v2541
        %2639 = vmatprep.subr.bf16.mxu0 0
        %2640 = vmatpush1.bf16.msra.mxu0 %v2538
        %2641 = vmatprep.subr.bf16.mxu0 0
        %2642 = vmatpush1.bf16.msra.mxu0 %v2535
        %2643 = vmatprep.subr.bf16.mxu0 0
        %2644 = vmatpush1.bf16.msra.mxu0 %v2532
        %2645 = vmatprep.subr.bf16.mxu0 0
        %2646 = vmatpush2.bf16.msra.mxu0 0
        %2647 = vmatprep.subr.bf16.mxu0 0
        %2648 = vmatpush2.bf16.msra.mxu0 0
        %2649 = vmatprep.subr.bf16.mxu0 0
        %2650 = vmatpush2.bf16.msra.mxu0 0
        %2651 = vmatprep.subr.bf16.mxu0 0
        %2652 = vmatpush2.bf16.msra.mxu0 0
        %2653 = vmatprep.subr.bf16.mxu0 0
        %2654 = vmatpush2.bf16.msra.mxu0 0
        %2655 = vmatprep.subr.bf16.mxu0 0
        %2656 = vmatpush2.bf16.msra.mxu0 0
        %2657 = vmatprep.subr.bf16.mxu0 0
        %2658 = vmatpush2.bf16.msra.mxu0 0
        %2659 = vmatprep.subr.bf16.mxu0 0
        %2660 = vmatpush2.bf16.msra.mxu0 0
        %2661 = vmatprep.mubr.bf16.mxu0 0
        %2662 = vmatmul.mubr.bf16.gmra.mxu0 %v2399
        %v2663 = vpop.f32.mrf.mxu0
        %v2664 = vadd.f32 %v2446, %v2663
        %v2665 = vpop.f32.mrf.mxu0
        %v2666 = vpop.f32.mrf.mxu0
        %v2667 = vadd.f32 %v2446, %v2666
        %v2668 = vpop.f32.mrf.mxu0
        %2669 = vmatprep.mubr.bf16.mxu0 0
        %2670 = vmatmul.mubr.bf16.gmra.mxu0 %v2400
        %v2671 = vpop.f32.mrf.mxu0
        %v2672 = vadd.f32 %v2446, %v2671
        %v2673 = vpop.f32.mrf.mxu0
        %v2674 = vpop.f32.mrf.mxu0
        %v2675 = vpop.f32.mrf.mxu0
        %2676 = vdwg.mxu0
        %v2677 = vld [vmem:[%s10] sm:$0xff]
        %v2678 = vld [vmem:[%s10 + $0x8] sm:$0xff]
        %v2679 = vld [vmem:[%s10 + $0x10] sm:$0x3]
        %v2680 = vpack.c.bf16 %v2617, %v2613
        %v2681 = vpack.c.bf16 %v2623, %v2623
        %v2682 = vpack.c.bf16 %v2619, %v2615
        %v2683 = vpack.c.bf16 %v2625, %v2625
        %vm2684 = vcmask 261120
        %v2686 = vsel %vm2684, %v2680, 0
        %v2689 = vsel %vm2684, %v2681, 0
        %v2692 = vsel %vm2684, %v2682, 0
        %v2695 = vsel %vm2684, %v2683, 0
        %2697 = vmatprep.subr.bf16.mxu0 0
        %2698 = vmatpush1.bf16.xpose.msra.mxu0 0
        %2699 = vmatprep.subr.bf16.mxu0 0
        %2700 = vmatpush1.bf16.xpose.msra.mxu0 0
        %2701 = vmatprep.subr.bf16.mxu0 0
        %2702 = vmatpush1.bf16.xpose.msra.mxu0 0
        %2703 = vmatprep.subr.bf16.mxu0 0
        %2704 = vmatpush1.bf16.xpose.msra.mxu0 0
        %2705 = vmatprep.subr.bf16.mxu0 0
        %2706 = vmatpush1.bf16.xpose.msra.mxu0 0
        %2707 = vmatprep.subr.bf16.mxu0 0
        %2708 = vmatpush1.bf16.xpose.msra.mxu0 0
        %2709 = vmatprep.subr.bf16.mxu0 0
        %2710 = vmatpush1.bf16.xpose.msra.mxu0 %v2695
        %2711 = vmatprep.subr.bf16.mxu0 0
        %2712 = vmatpush1.bf16.xpose.msra.mxu0 %v2692
        %2713 = vmatprep.subr.bf16.mxu0 0
        %2714 = vmatpush2.bf16.xpose.msra.mxu0 0
        %2715 = vmatprep.subr.bf16.mxu0 0
        %2716 = vmatpush2.bf16.xpose.msra.mxu0 0
        %2717 = vmatprep.subr.bf16.mxu0 0
        %2718 = vmatpush2.bf16.xpose.msra.mxu0 0
        %2719 = vmatprep.subr.bf16.mxu0 0
        %2720 = vmatpush2.bf16.xpose.msra.mxu0 0
        %2721 = vmatprep.subr.bf16.mxu0 0
        %2722 = vmatpush2.bf16.xpose.msra.mxu0 0
        %2723 = vmatprep.subr.bf16.mxu0 0
        %2724 = vmatpush2.bf16.xpose.msra.mxu0 0
        %2725 = vmatprep.subr.bf16.mxu0 0
        %2726 = vmatpush2.bf16.xpose.msra.mxu0 0
        %2727 = vmatprep.subr.bf16.mxu0 0
        %2728 = vmatpush2.bf16.xpose.msra.mxu0 0
        %2729 = vmatprep.mubr.bf16.mxu0 0
        %2730 = vmatmul.mubr.bf16.gmra.mxu0 %v2686
        %v2731 = vpop.f32.mrf.mxu0
        %v2732 = vadd.f32 %v2677, %v2731
        %v2733 = vpop.f32.mrf.mxu0
        %v2734 = vpop.f32.mrf.mxu0
        %v2735 = vadd.f32 %v2678, %v2734
        %v2736 = vpop.f32.mrf.mxu0
        %2737 = vmatprep.mubr.bf16.mxu0 0
        %2738 = vmatmul.mubr.bf16.gmra.mxu0 %v2689
        %v2739 = vpop.f32.mrf.mxu0
        %v2740 = vadd.f32 %v2679, %v2739
        %v2741 = vpop.f32.mrf.mxu0
        %v2742 = vpop.f32.mrf.mxu0
        %v2743 = vpop.f32.mrf.mxu0
        %2744 = vdwg.mxu0
        %vm2745 = vcmask 146432
        %v2746 = vsel %vm2745, %v2732, -inf
        %2747 = vmax.xlane.f32.xlu0 %v2746
        %v2748 = vpop.xlane.xlu0 %2747
        %v2749 = vsel %vm2745, %v2735, -inf
        %2750 = vmax.xlane.f32.xlu0 %v2749
        %v2751 = vpop.xlane.xlu0 %2750
        %vm2752 = vcmask 140288
        %v2753 = vsel %vm2752, %v2740, -inf
        %2754 = vmax.xlane.f32.xlu0 %v2753
        %v2755 = vpop.xlane.xlu0 %2754
        %v2756 = vsub.f32 %v2732, %v2748
        %v2757 = vsub.f32 %v2735, %v2751
        %v2758 = vsub.f32 %v2740, %v2755
        %v2759 = vmul.f32 %v2756, 1.442695
        %v2760 = vpow.pop %v2759
        %v2761 = vmul.f32 %v2757, 1.442695
        %v2762 = vpow.pop %v2761
        %v2763 = vmul.f32 %v2758, 1.442695
        %v2764 = vpow.pop %v2763
        %v2765 = vsel %vm2745, %v2760, 0.0
        %2766 = vadd.xlane.f32.xlu0 %v2765
        %v2767 = vpop.xlane.xlu0 %2766
        %v2768 = vsel %vm2745, %v2762, 0.0
        %2769 = vadd.xlane.f32.xlu0 %v2768
        %v2770 = vpop.xlane.xlu0 %2769
        %v2771 = vsel %vm2752, %v2764, 0.0
        %2772 = vadd.xlane.f32.xlu0 %v2771
        %v2773 = vpop.xlane.xlu0 %2772
        %v2774 = vrcp.pop %v2767
        %v2775 = vrcp.pop %v2770
        %v2776 = vrcp.pop %v2773
        %v2777 = vmul.f32 %v2760, %v2774
        %v2778 = vmul.f32 %v2762, %v2775
        %v2779 = vmul.f32 %v2764, %v2776
        %v2780 = vpack.c.bf16 %v2778, %v2777
        %v2781 = vpack.c.bf16 %v2779, %v2779
        %v2782 = vpack.c.bf16 %v2667, %v2664
        %v2783 = vpack.c.bf16 %v2672, %v2672
        %v2785 = vsel %vm2745, %v2780, 0
        %v2788 = vsel %vm2745, %v2781, 0
        %vm2790 = vcmask 1040384
        %v2792 = vsel %vm2790, %v2783, 0
        %2794 = vmatprep.subr.bf16.mxu0 0
        %2795 = vmatpush1.bf16.msra.mxu0 0
        %2796 = vmatprep.subr.bf16.mxu0 0
        %2797 = vmatpush1.bf16.msra.mxu0 0
        %2798 = vmatprep.subr.bf16.mxu0 0
        %2799 = vmatpush1.bf16.msra.mxu0 0
        %2800 = vmatprep.subr.bf16.mxu0 0
        %2801 = vmatpush1.bf16.msra.mxu0 0
        %2802 = vmatprep.subr.bf16.mxu0 0
        %2803 = vmatpush1.bf16.msra.mxu0 0
        %2804 = vmatprep.subr.bf16.mxu0 0
        %2805 = vmatpush1.bf16.msra.mxu0 0
        %2806 = vmatprep.subr.bf16.mxu0 0
        %2807 = vmatpush1.bf16.msra.mxu0 %v2792
        %2808 = vmatprep.subr.bf16.mxu0 0
        %2809 = vmatpush1.bf16.msra.mxu0 %v2782
        %2810 = vmatprep.subr.bf16.mxu0 0
        %2811 = vmatpush2.bf16.msra.mxu0 0
        %2812 = vmatprep.subr.bf16.mxu0 0
        %2813 = vmatpush2.bf16.msra.mxu0 0
        %2814 = vmatprep.subr.bf16.mxu0 0
        %2815 = vmatpush2.bf16.msra.mxu0 0
        %2816 = vmatprep.subr.bf16.mxu0 0
        %2817 = vmatpush2.bf16.msra.mxu0 0
        %2818 = vmatprep.subr.bf16.mxu0 0
        %2819 = vmatpush2.bf16.msra.mxu0 0
        %2820 = vmatprep.subr.bf16.mxu0 0
        %2821 = vmatpush2.bf16.msra.mxu0 0
        %2822 = vmatprep.subr.bf16.mxu0 0
        %2823 = vmatpush2.bf16.msra.mxu0 0
        %2824 = vmatprep.subr.bf16.mxu0 0
        %2825 = vmatpush2.bf16.msra.mxu0 0
        %2826 = vmatprep.mubr.bf16.mxu0 0
        %2827 = vmatmul.mubr.bf16.gmra.mxu0 %v2785
        %v2828 = vpop.f32.mrf.mxu0
        %v2829 = vadd.f32 0.0, %v2828
        %v2830 = vpop.f32.mrf.mxu0
        %v2831 = vpop.f32.mrf.mxu0
        %v2832 = vadd.f32 0.0, %v2831
        %v2833 = vpop.f32.mrf.mxu0
        %2834 = vmatprep.mubr.bf16.mxu0 0
        %2835 = vmatmul.mubr.bf16.gmra.mxu0 %v2788
        %v2836 = vpop.f32.mrf.mxu0
        %v2837 = vadd.f32 0.0, %v2836
        %v2838 = vpop.f32.mrf.mxu0
        %v2839 = vpop.f32.mrf.mxu0
        %v2840 = vpop.f32.mrf.mxu0
        %2841 = vdwg.mxu0
        %2844 = vrot.lane.b32.xlu0 %v2680, 96
        %v2845 = vpop.permute.xlu0 %2844
        %2846 = vrot.lane.b32.xlu0 %v2681, 96
        %v2847 = vpop.permute.xlu0 %2846
        %2850 = vrot.lane.b32.xlu0 %v2682, 96
        %v2851 = vpop.permute.xlu0 %2850
        %2852 = vrot.lane.b32.xlu0 %v2683, 96
        %v2853 = vpop.permute.xlu0 %2852
        %v2855 = vsel %vm2684, %v2845, 0
        %v2858 = vsel %vm2684, %v2847, 0
        %v2861 = vsel %vm2684, %v2851, 0
        %v2864 = vsel %vm2684, %v2853, 0
        %2866 = vmatprep.subr.bf16.mxu0 0
        %2867 = vmatpush1.bf16.xpose.msra.mxu0 0
        %2868 = vmatprep.subr.bf16.mxu0 0
        %2869 = vmatpush1.bf16.xpose.msra.mxu0 0
        %2870 = vmatprep.subr.bf16.mxu0 0
        %2871 = vmatpush1.bf16.xpose.msra.mxu0 0
        %2872 = vmatprep.subr.bf16.mxu0 0
        %2873 = vmatpush1.bf16.xpose.msra.mxu0 0
        %2874 = vmatprep.subr.bf16.mxu0 0
        %2875 = vmatpush1.bf16.xpose.msra.mxu0 0
        %2876 = vmatprep.subr.bf16.mxu0 0
        %2877 = vmatpush1.bf16.xpose.msra.mxu0 0
        %2878 = vmatprep.subr.bf16.mxu0 0
        %2879 = vmatpush1.bf16.xpose.msra.mxu0 %v2864
        %2880 = vmatprep.subr.bf16.mxu0 0
        %2881 = vmatpush1.bf16.xpose.msra.mxu0 %v2861
        %2882 = vmatprep.subr.bf16.mxu0 0
        %2883 = vmatpush2.bf16.xpose.msra.mxu0 0
        %2884 = vmatprep.subr.bf16.mxu0 0
        %2885 = vmatpush2.bf16.xpose.msra.mxu0 0
        %2886 = vmatprep.subr.bf16.mxu0 0
        %2887 = vmatpush2.bf16.xpose.msra.mxu0 0
        %2888 = vmatprep.subr.bf16.mxu0 0
        %2889 = vmatpush2.bf16.xpose.msra.mxu0 0
        %2890 = vmatprep.subr.bf16.mxu0 0
        %2891 = vmatpush2.bf16.xpose.msra.mxu0 0
        %2892 = vmatprep.subr.bf16.mxu0 0
        %2893 = vmatpush2.bf16.xpose.msra.mxu0 0
        %2894 = vmatprep.subr.bf16.mxu0 0
        %2895 = vmatpush2.bf16.xpose.msra.mxu0 0
        %2896 = vmatprep.subr.bf16.mxu0 0
        %2897 = vmatpush2.bf16.xpose.msra.mxu0 0
        %2898 = vmatprep.mubr.bf16.mxu0 0
        %2899 = vmatmul.mubr.bf16.gmra.mxu0 %v2855
        %v2900 = vpop.f32.mrf.mxu0
        %v2901 = vadd.f32 %v2677, %v2900
        %v2902 = vpop.f32.mrf.mxu0
        %v2903 = vpop.f32.mrf.mxu0
        %v2904 = vadd.f32 %v2678, %v2903
        %v2905 = vpop.f32.mrf.mxu0
        %2906 = vmatprep.mubr.bf16.mxu0 0
        %2907 = vmatmul.mubr.bf16.gmra.mxu0 %v2858
        %v2908 = vpop.f32.mrf.mxu0
        %v2909 = vadd.f32 %v2679, %v2908
        %v2910 = vpop.f32.mrf.mxu0
        %v2911 = vpop.f32.mrf.mxu0
        %v2912 = vpop.f32.mrf.mxu0
        %2913 = vdwg.mxu0
        %v2914 = vsel %vm2745, %v2901, -inf
        %2915 = vmax.xlane.f32.xlu0 %v2914
        %v2916 = vpop.xlane.xlu0 %2915
        %v2917 = vsel %vm2745, %v2904, -inf
        %2918 = vmax.xlane.f32.xlu0 %v2917
        %v2919 = vpop.xlane.xlu0 %2918
        %v2920 = vsel %vm2752, %v2909, -inf
        %2921 = vmax.xlane.f32.xlu0 %v2920
        %v2922 = vpop.xlane.xlu0 %2921
        %v2923 = vsub.f32 %v2901, %v2916
        %v2924 = vsub.f32 %v2904, %v2919
        %v2925 = vsub.f32 %v2909, %v2922
        %v2926 = vmul.f32 %v2923, 1.442695
        %v2927 = vpow.pop %v2926
        %v2928 = vmul.f32 %v2924, 1.442695
        %v2929 = vpow.pop %v2928
        %v2930 = vmul.f32 %v2925, 1.442695
        %v2931 = vpow.pop %v2930
        %v2932 = vsel %vm2745, %v2927, 0.0
        %2933 = vadd.xlane.f32.xlu0 %v2932
        %v2934 = vpop.xlane.xlu0 %2933
        %v2935 = vsel %vm2745, %v2929, 0.0
        %2936 = vadd.xlane.f32.xlu0 %v2935
        %v2937 = vpop.xlane.xlu0 %2936
        %v2938 = vsel %vm2752, %v2931, 0.0
        %2939 = vadd.xlane.f32.xlu0 %v2938
        %v2940 = vpop.xlane.xlu0 %2939
        %v2941 = vrcp.pop %v2934
        %v2942 = vrcp.pop %v2937
        %v2943 = vrcp.pop %v2940
        %v2944 = vmul.f32 %v2927, %v2941
        %v2945 = vmul.f32 %v2929, %v2942
        %v2946 = vmul.f32 %v2931, %v2943
        %v2947 = vpack.c.bf16 %v2945, %v2944
        %v2948 = vpack.c.bf16 %v2946, %v2946
        %2951 = vrot.lane.b32.xlu0 %v2782, 96
        %v2952 = vpop.permute.xlu0 %2951
        %2953 = vrot.lane.b32.xlu0 %v2783, 96
        %v2954 = vpop.permute.xlu0 %2953
        %v2957 = vsel %vm2745, %v2947, 0
        %v2960 = vsel %vm2745, %v2948, 0
        %v2963 = vsel %vm2790, %v2954, 0
        %2965 = vmatprep.subr.bf16.mxu0 0
        %2966 = vmatpush1.bf16.msra.mxu0 0
        %2967 = vmatprep.subr.bf16.mxu0 0
        %2968 = vmatpush1.bf16.msra.mxu0 0
        %2969 = vmatprep.subr.bf16.mxu0 0
        %2970 = vmatpush1.bf16.msra.mxu0 0
        %2971 = vmatprep.subr.bf16.mxu0 0
        %2972 = vmatpush1.bf16.msra.mxu0 0
        %2973 = vmatprep.subr.bf16.mxu0 0
        %2974 = vmatpush1.bf16.msra.mxu0 0
        %2975 = vmatprep.subr.bf16.mxu0 0
        %2976 = vmatpush1.bf16.msra.mxu0 0
        %2977 = vmatprep.subr.bf16.mxu0 0
        %2978 = vmatpush1.bf16.msra.mxu0 %v2963
        %2979 = vmatprep.subr.bf16.mxu0 0
        %2980 = vmatpush1.bf16.msra.mxu0 %v2952
        %2981 = vmatprep.subr.bf16.mxu0 0
        %2982 = vmatpush2.bf16.msra.mxu0 0
        %2983 = vmatprep.subr.bf16.mxu0 0
        %2984 = vmatpush2.bf16.msra.mxu0 0
        %2985 = vmatprep.subr.bf16.mxu0 0
        %2986 = vmatpush2.bf16.msra.mxu0 0
        %2987 = vmatprep.subr.bf16.mxu0 0
        %2988 = vmatpush2.bf16.msra.mxu0 0
        %2989 = vmatprep.subr.bf16.mxu0 0
        %2990 = vmatpush2.bf16.msra.mxu0 0
        %2991 = vmatprep.subr.bf16.mxu0 0
        %2992 = vmatpush2.bf16.msra.mxu0 0
        %2993 = vmatprep.subr.bf16.mxu0 0
        %2994 = vmatpush2.bf16.msra.mxu0 0
        %2995 = vmatprep.subr.bf16.mxu0 0
        %2996 = vmatpush2.bf16.msra.mxu0 0
        %2997 = vmatprep.mubr.bf16.mxu0 0
        %2998 = vmatmul.mubr.bf16.gmra.mxu0 %v2957
        %v2999 = vpop.f32.mrf.mxu0
        %v3000 = vadd.f32 0.0, %v2999
        %v3001 = vpop.f32.mrf.mxu0
        %v3002 = vpop.f32.mrf.mxu0
        %v3003 = vadd.f32 0.0, %v3002
        %v3004 = vpop.f32.mrf.mxu0
        %3005 = vmatprep.mubr.bf16.mxu0 0
        %3006 = vmatmul.mubr.bf16.gmra.mxu0 %v2960
        %v3007 = vpop.f32.mrf.mxu0
        %v3008 = vadd.f32 0.0, %v3007
        %v3009 = vpop.f32.mrf.mxu0
        %v3010 = vpop.f32.mrf.mxu0
        %v3011 = vpop.f32.mrf.mxu0
        %3012 = vdwg.mxu0
        %3013 = vrot.lane.b32.xlu0 %v2680, 64
        %v3014 = vpop.permute.xlu0 %3013
        %3015 = vrot.lane.b32.xlu0 %v2681, 64
        %v3016 = vpop.permute.xlu0 %3015
        %3017 = vrot.lane.b32.xlu0 %v2682, 64
        %v3018 = vpop.permute.xlu0 %3017
        %3019 = vrot.lane.b32.xlu0 %v2683, 64
        %v3020 = vpop.permute.xlu0 %3019
        %v3022 = vsel %vm2684, %v3014, 0
        %v3025 = vsel %vm2684, %v3016, 0
        %v3028 = vsel %vm2684, %v3018, 0
        %v3031 = vsel %vm2684, %v3020, 0
        %3033 = vmatprep.subr.bf16.mxu0 0
        %3034 = vmatpush1.bf16.xpose.msra.mxu0 0
        %3035 = vmatprep.subr.bf16.mxu0 0
        %3036 = vmatpush1.bf16.xpose.msra.mxu0 0
        %3037 = vmatprep.subr.bf16.mxu0 0
        %3038 = vmatpush1.bf16.xpose.msra.mxu0 0
        %3039 = vmatprep.subr.bf16.mxu0 0
        %3040 = vmatpush1.bf16.xpose.msra.mxu0 0
        %3041 = vmatprep.subr.bf16.mxu0 0
        %3042 = vmatpush1.bf16.xpose.msra.mxu0 0
        %3043 = vmatprep.subr.bf16.mxu0 0
        %3044 = vmatpush1.bf16.xpose.msra.mxu0 0
        %3045 = vmatprep.subr.bf16.mxu0 0
        %3046 = vmatpush1.bf16.xpose.msra.mxu0 %v3031
        %3047 = vmatprep.subr.bf16.mxu0 0
        %3048 = vmatpush1.bf16.xpose.msra.mxu0 %v3028
        %3049 = vmatprep.subr.bf16.mxu0 0
        %3050 = vmatpush2.bf16.xpose.msra.mxu0 0
        %3051 = vmatprep.subr.bf16.mxu0 0
        %3052 = vmatpush2.bf16.xpose.msra.mxu0 0
        %3053 = vmatprep.subr.bf16.mxu0 0
        %3054 = vmatpush2.bf16.xpose.msra.mxu0 0
        %3055 = vmatprep.subr.bf16.mxu0 0
        %3056 = vmatpush2.bf16.xpose.msra.mxu0 0
        %3057 = vmatprep.subr.bf16.mxu0 0
        %3058 = vmatpush2.bf16.xpose.msra.mxu0 0
        %3059 = vmatprep.subr.bf16.mxu0 0
        %3060 = vmatpush2.bf16.xpose.msra.mxu0 0
        %3061 = vmatprep.subr.bf16.mxu0 0
        %3062 = vmatpush2.bf16.xpose.msra.mxu0 0
        %3063 = vmatprep.subr.bf16.mxu0 0
        %3064 = vmatpush2.bf16.xpose.msra.mxu0 0
        %3065 = vmatprep.mubr.bf16.mxu0 0
        %3066 = vmatmul.mubr.bf16.gmra.mxu0 %v3022
        %v3067 = vpop.f32.mrf.mxu0
        %v3068 = vadd.f32 %v2677, %v3067
        %v3069 = vpop.f32.mrf.mxu0
        %v3070 = vpop.f32.mrf.mxu0
        %v3071 = vadd.f32 %v2678, %v3070
        %v3072 = vpop.f32.mrf.mxu0
        %3073 = vmatprep.mubr.bf16.mxu0 0
        %3074 = vmatmul.mubr.bf16.gmra.mxu0 %v3025
        %v3075 = vpop.f32.mrf.mxu0
        %v3076 = vadd.f32 %v2679, %v3075
        %v3077 = vpop.f32.mrf.mxu0
        %v3078 = vpop.f32.mrf.mxu0
        %v3079 = vpop.f32.mrf.mxu0
        %3080 = vdwg.mxu0
        %v3081 = vsel %vm2745, %v3068, -inf
        %3082 = vmax.xlane.f32.xlu0 %v3081
        %v3083 = vpop.xlane.xlu0 %3082
        %v3084 = vsel %vm2745, %v3071, -inf
        %3085 = vmax.xlane.f32.xlu0 %v3084
        %v3086 = vpop.xlane.xlu0 %3085
        %v3087 = vsel %vm2752, %v3076, -inf
        %3088 = vmax.xlane.f32.xlu0 %v3087
        %v3089 = vpop.xlane.xlu0 %3088
        %v3090 = vsub.f32 %v3068, %v3083
        %v3091 = vsub.f32 %v3071, %v3086
        %v3092 = vsub.f32 %v3076, %v3089
        %v3093 = vmul.f32 %v3090, 1.442695
        %v3094 = vpow.pop %v3093
        %v3095 = vmul.f32 %v3091, 1.442695
        %v3096 = vpow.pop %v3095
        %v3097 = vmul.f32 %v3092, 1.442695
        %v3098 = vpow.pop %v3097
        %v3099 = vsel %vm2745, %v3094, 0.0
        %3100 = vadd.xlane.f32.xlu0 %v3099
        %v3101 = vpop.xlane.xlu0 %3100
        %v3102 = vsel %vm2745, %v3096, 0.0
        %3103 = vadd.xlane.f32.xlu0 %v3102
        %v3104 = vpop.xlane.xlu0 %3103
        %v3105 = vsel %vm2752, %v3098, 0.0
        %3106 = vadd.xlane.f32.xlu0 %v3105
        %v3107 = vpop.xlane.xlu0 %3106
        %v3108 = vrcp.pop %v3101
        %v3109 = vrcp.pop %v3104
        %v3110 = vrcp.pop %v3107
        %v3111 = vmul.f32 %v3094, %v3108
        %v3112 = vmul.f32 %v3096, %v3109
        %v3113 = vmul.f32 %v3098, %v3110
        %v3114 = vpack.c.bf16 %v3112, %v3111
        %v3115 = vpack.c.bf16 %v3113, %v3113
        %3116 = vrot.lane.b32.xlu0 %v2782, 64
        %v3117 = vpop.permute.xlu0 %3116
        %3118 = vrot.lane.b32.xlu0 %v2783, 64
        %v3119 = vpop.permute.xlu0 %3118
        %v3122 = vsel %vm2745, %v3114, 0
        %v3125 = vsel %vm2745, %v3115, 0
        %v3128 = vsel %vm2790, %v3119, 0
        %3130 = vmatprep.subr.bf16.mxu0 0
        %3131 = vmatpush1.bf16.msra.mxu0 0
        %3132 = vmatprep.subr.bf16.mxu0 0
        %3133 = vmatpush1.bf16.msra.mxu0 0
        %3134 = vmatprep.subr.bf16.mxu0 0
        %3135 = vmatpush1.bf16.msra.mxu0 0
        %3136 = vmatprep.subr.bf16.mxu0 0
        %3137 = vmatpush1.bf16.msra.mxu0 0
        %3138 = vmatprep.subr.bf16.mxu0 0
        %3139 = vmatpush1.bf16.msra.mxu0 0
        %3140 = vmatprep.subr.bf16.mxu0 0
        %3141 = vmatpush1.bf16.msra.mxu0 0
        %3142 = vmatprep.subr.bf16.mxu0 0
        %3143 = vmatpush1.bf16.msra.mxu0 %v3128
        %3144 = vmatprep.subr.bf16.mxu0 0
        %3145 = vmatpush1.bf16.msra.mxu0 %v3117
        %3146 = vmatprep.subr.bf16.mxu0 0
        %3147 = vmatpush2.bf16.msra.mxu0 0
        %3148 = vmatprep.subr.bf16.mxu0 0
        %3149 = vmatpush2.bf16.msra.mxu0 0
        %3150 = vmatprep.subr.bf16.mxu0 0
        %3151 = vmatpush2.bf16.msra.mxu0 0
        %3152 = vmatprep.subr.bf16.mxu0 0
        %3153 = vmatpush2.bf16.msra.mxu0 0
        %3154 = vmatprep.subr.bf16.mxu0 0
        %3155 = vmatpush2.bf16.msra.mxu0 0
        %3156 = vmatprep.subr.bf16.mxu0 0
        %3157 = vmatpush2.bf16.msra.mxu0 0
        %3158 = vmatprep.subr.bf16.mxu0 0
        %3159 = vmatpush2.bf16.msra.mxu0 0
        %3160 = vmatprep.subr.bf16.mxu0 0
        %3161 = vmatpush2.bf16.msra.mxu0 0
        %3162 = vmatprep.mubr.bf16.mxu0 0
        %3163 = vmatmul.mubr.bf16.gmra.mxu0 %v3122
        %v3164 = vpop.f32.mrf.mxu0
        %v3165 = vadd.f32 0.0, %v3164
        %v3166 = vpop.f32.mrf.mxu0
        %v3167 = vpop.f32.mrf.mxu0
        %v3168 = vadd.f32 0.0, %v3167
        %v3169 = vpop.f32.mrf.mxu0
        %3170 = vmatprep.mubr.bf16.mxu0 0
        %3171 = vmatmul.mubr.bf16.gmra.mxu0 %v3125
        %v3172 = vpop.f32.mrf.mxu0
        %v3173 = vadd.f32 0.0, %v3172
        %v3174 = vpop.f32.mrf.mxu0
        %v3175 = vpop.f32.mrf.mxu0
        %v3176 = vpop.f32.mrf.mxu0
        %3177 = vdwg.mxu0
        %3178 = vrot.lane.b32.xlu0 %v2680, 32
        %v3179 = vpop.permute.xlu0 %3178
        %3180 = vrot.lane.b32.xlu0 %v2681, 32
        %v3181 = vpop.permute.xlu0 %3180
        %3182 = vrot.lane.b32.xlu0 %v2682, 32
        %v3183 = vpop.permute.xlu0 %3182
        %3184 = vrot.lane.b32.xlu0 %v2683, 32
        %v3185 = vpop.permute.xlu0 %3184
        %v3187 = vsel %vm2684, %v3179, 0
        %v3190 = vsel %vm2684, %v3181, 0
        %v3193 = vsel %vm2684, %v3183, 0
        %v3196 = vsel %vm2684, %v3185, 0
        %3198 = vmatprep.subr.bf16.mxu0 0
        %3199 = vmatpush1.bf16.xpose.msra.mxu0 0
        %3200 = vmatprep.subr.bf16.mxu0 0
        %3201 = vmatpush1.bf16.xpose.msra.mxu0 0
        %3202 = vmatprep.subr.bf16.mxu0 0
        %3203 = vmatpush1.bf16.xpose.msra.mxu0 0
        %3204 = vmatprep.subr.bf16.mxu0 0
        %3205 = vmatpush1.bf16.xpose.msra.mxu0 0
        %3206 = vmatprep.subr.bf16.mxu0 0
        %3207 = vmatpush1.bf16.xpose.msra.mxu0 0
        %3208 = vmatprep.subr.bf16.mxu0 0
        %3209 = vmatpush1.bf16.xpose.msra.mxu0 0
        %3210 = vmatprep.subr.bf16.mxu0 0
        %3211 = vmatpush1.bf16.xpose.msra.mxu0 %v3196
        %3212 = vmatprep.subr.bf16.mxu0 0
        %3213 = vmatpush1.bf16.xpose.msra.mxu0 %v3193
        %3214 = vmatprep.subr.bf16.mxu0 0
        %3215 = vmatpush2.bf16.xpose.msra.mxu0 0
        %3216 = vmatprep.subr.bf16.mxu0 0
        %3217 = vmatpush2.bf16.xpose.msra.mxu0 0
        %3218 = vmatprep.subr.bf16.mxu0 0
        %3219 = vmatpush2.bf16.xpose.msra.mxu0 0
        %3220 = vmatprep.subr.bf16.mxu0 0
        %3221 = vmatpush2.bf16.xpose.msra.mxu0 0
        %3222 = vmatprep.subr.bf16.mxu0 0
        %3223 = vmatpush2.bf16.xpose.msra.mxu0 0
        %3224 = vmatprep.subr.bf16.mxu0 0
        %3225 = vmatpush2.bf16.xpose.msra.mxu0 0
        %3226 = vmatprep.subr.bf16.mxu0 0
        %3227 = vmatpush2.bf16.xpose.msra.mxu0 0
        %3228 = vmatprep.subr.bf16.mxu0 0
        %3229 = vmatpush2.bf16.xpose.msra.mxu0 0
        %3230 = vmatprep.mubr.bf16.mxu0 0
        %3231 = vmatmul.mubr.bf16.gmra.mxu0 %v3187
        %v3232 = vpop.f32.mrf.mxu0
        %v3233 = vadd.f32 %v2677, %v3232
        %v3234 = vpop.f32.mrf.mxu0
        %v3235 = vpop.f32.mrf.mxu0
        %v3236 = vadd.f32 %v2678, %v3235
        %v3237 = vpop.f32.mrf.mxu0
        %3238 = vmatprep.mubr.bf16.mxu0 0
        %3239 = vmatmul.mubr.bf16.gmra.mxu0 %v3190
        %v3240 = vpop.f32.mrf.mxu0
        %v3241 = vadd.f32 %v2679, %v3240
        %v3242 = vpop.f32.mrf.mxu0
        %v3243 = vpop.f32.mrf.mxu0
        %v3244 = vpop.f32.mrf.mxu0
        %3245 = vdwg.mxu0
        %v3246 = vsel %vm2745, %v3233, -inf
        %3247 = vmax.xlane.f32.xlu0 %v3246
        %v3248 = vpop.xlane.xlu0 %3247
        %v3249 = vsel %vm2745, %v3236, -inf
        %3250 = vmax.xlane.f32.xlu0 %v3249
        %v3251 = vpop.xlane.xlu0 %3250
        %v3252 = vsel %vm2752, %v3241, -inf
        %3253 = vmax.xlane.f32.xlu0 %v3252
        %v3254 = vpop.xlane.xlu0 %3253
        %v3255 = vsub.f32 %v3233, %v3248
        %v3256 = vsub.f32 %v3236, %v3251
        %v3257 = vsub.f32 %v3241, %v3254
        %v3258 = vmul.f32 %v3255, 1.442695
        %v3259 = vpow.pop %v3258
        %v3260 = vmul.f32 %v3256, 1.442695
        %v3261 = vpow.pop %v3260
        %v3262 = vmul.f32 %v3257, 1.442695
        %v3263 = vpow.pop %v3262
        %v3264 = vsel %vm2745, %v3259, 0.0
        %3265 = vadd.xlane.f32.xlu0 %v3264
        %v3266 = vpop.xlane.xlu0 %3265
        %v3267 = vsel %vm2745, %v3261, 0.0
        %3268 = vadd.xlane.f32.xlu0 %v3267
        %v3269 = vpop.xlane.xlu0 %3268
        %v3270 = vsel %vm2752, %v3263, 0.0
        %3271 = vadd.xlane.f32.xlu0 %v3270
        %v3272 = vpop.xlane.xlu0 %3271
        %v3273 = vrcp.pop %v3266
        %v3274 = vrcp.pop %v3269
        %v3275 = vrcp.pop %v3272
        %v3276 = vmul.f32 %v3259, %v3273
        %v3277 = vmul.f32 %v3261, %v3274
        %v3278 = vmul.f32 %v3263, %v3275
        %v3279 = vpack.c.bf16 %v3277, %v3276
        %v3280 = vpack.c.bf16 %v3278, %v3278
        %3281 = vrot.lane.b32.xlu0 %v2782, 32
        %v3282 = vpop.permute.xlu0 %3281
        %3283 = vrot.lane.b32.xlu0 %v2783, 32
        %v3284 = vpop.permute.xlu0 %3283
        %v3287 = vsel %vm2745, %v3279, 0
        %v3290 = vsel %vm2745, %v3280, 0
        %v3293 = vsel %vm2790, %v3284, 0
        %3295 = vmatprep.subr.bf16.mxu0 0
        %3296 = vmatpush1.bf16.msra.mxu0 0
        %3297 = vmatprep.subr.bf16.mxu0 0
        %3298 = vmatpush1.bf16.msra.mxu0 0
        %3299 = vmatprep.subr.bf16.mxu0 0
        %3300 = vmatpush1.bf16.msra.mxu0 0
        %3301 = vmatprep.subr.bf16.mxu0 0
        %3302 = vmatpush1.bf16.msra.mxu0 0
        %3303 = vmatprep.subr.bf16.mxu0 0
        %3304 = vmatpush1.bf16.msra.mxu0 0
        %3305 = vmatprep.subr.bf16.mxu0 0
        %3306 = vmatpush1.bf16.msra.mxu0 0
        %3307 = vmatprep.subr.bf16.mxu0 0
        %3308 = vmatpush1.bf16.msra.mxu0 %v3293
        %3309 = vmatprep.subr.bf16.mxu0 0
        %3310 = vmatpush1.bf16.msra.mxu0 %v3282
        %3311 = vmatprep.subr.bf16.mxu0 0
        %3312 = vmatpush2.bf16.msra.mxu0 0
        %3313 = vmatprep.subr.bf16.mxu0 0
        %3314 = vmatpush2.bf16.msra.mxu0 0
        %3315 = vmatprep.subr.bf16.mxu0 0
        %3316 = vmatpush2.bf16.msra.mxu0 0
        %3317 = vmatprep.subr.bf16.mxu0 0
        %3318 = vmatpush2.bf16.msra.mxu0 0
        %3319 = vmatprep.subr.bf16.mxu0 0
        %3320 = vmatpush2.bf16.msra.mxu0 0
        %3321 = vmatprep.subr.bf16.mxu0 0
        %3322 = vmatpush2.bf16.msra.mxu0 0
        %3323 = vmatprep.subr.bf16.mxu0 0
        %3324 = vmatpush2.bf16.msra.mxu0 0
        %3325 = vmatprep.subr.bf16.mxu0 0
        %3326 = vmatpush2.bf16.msra.mxu0 0
        %3327 = vmatprep.mubr.bf16.mxu0 0
        %3328 = vmatmul.mubr.bf16.gmra.mxu0 %v3287
        %v3329 = vpop.f32.mrf.mxu0
        %v3330 = vadd.f32 0.0, %v3329
        %v3331 = vpop.f32.mrf.mxu0
        %v3332 = vpop.f32.mrf.mxu0
        %v3333 = vadd.f32 0.0, %v3332
        %v3334 = vpop.f32.mrf.mxu0
        %3335 = vmatprep.mubr.bf16.mxu0 0
        %3336 = vmatmul.mubr.bf16.gmra.mxu0 %v3290
        %v3337 = vpop.f32.mrf.mxu0
        %v3338 = vadd.f32 0.0, %v3337
        %v3339 = vpop.f32.mrf.mxu0
        %v3340 = vpop.f32.mrf.mxu0
        %v3341 = vpop.f32.mrf.mxu0
        %3342 = vdwg.mxu0
        %3346 = vrot.lane.b32.xlu0 %v3000, 32
        %v3347 = vpop.permute.xlu0 %3346
        %3348 = vrot.lane.b32.xlu0 %v3003, 32
        %v3349 = vpop.permute.xlu0 %3348
        %3350 = vrot.lane.b32.xlu0 %v3008, 32
        %v3351 = vpop.permute.xlu0 %3350
        %3358 = vrot.lane.b32.xlu0 %v3165, 64
        %v3359 = vpop.permute.xlu0 %3358
        %3360 = vrot.lane.b32.xlu0 %v3168, 64
        %v3361 = vpop.permute.xlu0 %3360
        %3362 = vrot.lane.b32.xlu0 %v3173, 64
        %v3363 = vpop.permute.xlu0 %3362
        %3370 = vrot.lane.b32.xlu0 %v3330, 96
        %v3371 = vpop.permute.xlu0 %3370
        %3372 = vrot.lane.b32.xlu0 %v3333, 96
        %v3373 = vpop.permute.xlu0 %3372
        %3374 = vrot.lane.b32.xlu0 %v3338, 96
        %v3375 = vpop.permute.xlu0 %3374
        %v3379 = vsel %vm2684, %v2829, %v3347
        %v3380 = vsel %vm2684, %v2832, %v3349
        %v3381 = vsel %vm2684, %v2837, %v3351
        %vm3382 = vcmask 523264
        %v3383 = vsel %vm3382, %v3379, %v3359
        %v3384 = vsel %vm3382, %v3380, %v3361
        %v3385 = vsel %vm3382, %v3381, %v3363
        %vm3386 = vcmask 785408
        %v3387 = vsel %vm3386, %v3383, %v3371
        %v3388 = vsel %vm3386, %v3384, %v3373
        %v3389 = vsel %vm3386, %v3385, %v3375
        %v3390 = vpack.c.bf16 %v3388, %v3387
        %v3391 = vpack.c.bf16 %v3389, %v3389
        %v3392 = vld [vmem:[%s1017] sm:$0xf]
        %v3393 = vld [vmem:[%s1017 + $0x4] sm:$0xf]
        %v3394 = vld [vmem:[%s1017 + $0x8] sm:$0xf]
        %v3395 = vld [vmem:[%s1017 + $0xc] sm:$0xf]
        %v3396 = vld [vmem:[%s1017 + $0x10] sm:$0xf]
        %v3397 = vld [vmem:[%s1017 + $0x14] sm:$0xf]
        %v3398 = vld [vmem:[%s1017 + $0x18] sm:$0xf]
        %v3399 = vld [vmem:[%s1017 + $0x1c] sm:$0xf]
        %v3400 = vld [vmem:[%s1017 + $0x20] sm:$0xf]
        %v3401 = vld [vmem:[%s1017 + $0x24] sm:$0xf]
        %v3402 = vld [vmem:[%s1017 + $0x28] sm:$0xf]
        %v3403 = vld [vmem:[%s1017 + $0x2c] sm:$0xf]
        %v3404 = vld [vmem:[%s1017 + $0x30] sm:$0xf]
        %v3405 = vld [vmem:[%s1017 + $0x34] sm:$0xf]
        %v3406 = vld [vmem:[%s1017 + $0x38] sm:$0xf]
        %v3407 = vld [vmem:[%s1017 + $0x3c] sm:$0xf]
        %v3408 = vld [vmem:[%s1020] sm:$0x1]
        %v3410 = vlaneseq
        %v3411 = vshrl.u32 %v3410, 7
        %v3412 = vsub.s32 0, %v3411
        %v3413 = vrot.slane %v3408, %v3412
        %v3431 = vunpack.c.l.b16 %v3392
        %v3432 = vunpack.c.l.b16 %v3393
        %v3433 = vunpack.c.l.b16 %v3394
        %v3434 = vunpack.c.l.b16 %v3395
        %v3435 = vunpack.c.l.b16 %v3396
        %v3436 = vunpack.c.l.b16 %v3397
        %v3437 = vunpack.c.l.b16 %v3398
        %v3438 = vunpack.c.l.b16 %v3399
        %v3439 = vunpack.c.l.b16 %v3400
        %v3440 = vunpack.c.l.b16 %v3401
        %v3441 = vunpack.c.l.b16 %v3402
        %v3442 = vunpack.c.l.b16 %v3403
        %v3443 = vunpack.c.l.b16 %v3404
        %v3444 = vunpack.c.l.b16 %v3405
        %v3445 = vunpack.c.l.b16 %v3406
        %v3446 = vunpack.c.l.b16 %v3407
        %v3447 = vpack.c.b16 %v3432, %v3431
        %v3448 = vpack.c.b16 %v3434, %v3433
        %v3449 = vpack.c.b16 %v3436, %v3435
        %v3450 = vpack.c.b16 %v3438, %v3437
        %v3451 = vpack.c.b16 %v3440, %v3439
        %v3452 = vpack.c.b16 %v3442, %v3441
        %v3453 = vpack.c.b16 %v3444, %v3443
        %v3454 = vpack.c.b16 %v3446, %v3445
        %3463 = vmatprep.subr.bf16.mxu0 0
        %3464 = vmatpush1.bf16.msra.mxu0 %v3454
        %3465 = vmatprep.subr.bf16.mxu0 0
        %3466 = vmatpush1.bf16.msra.mxu0 %v3453
        %3467 = vmatprep.subr.bf16.mxu0 0
        %3468 = vmatpush1.bf16.msra.mxu0 %v3452
        %3469 = vmatprep.subr.bf16.mxu0 0
        %3470 = vmatpush1.bf16.msra.mxu0 %v3451
        %3471 = vmatprep.subr.bf16.mxu0 0
        %3472 = vmatpush1.bf16.msra.mxu0 %v3450
        %3473 = vmatprep.subr.bf16.mxu0 0
        %3474 = vmatpush1.bf16.msra.mxu0 %v3449
        %3475 = vmatprep.subr.bf16.mxu0 0
        %3476 = vmatpush1.bf16.msra.mxu0 %v3448
        %3477 = vmatprep.subr.bf16.mxu0 0
        %3478 = vmatpush1.bf16.msra.mxu0 %v3447
        %3479 = vmatprep.subr.bf16.mxu0 0
        %3480 = vmatpush2.bf16.msra.mxu0 0
        %3481 = vmatprep.subr.bf16.mxu0 0
        %3482 = vmatpush2.bf16.msra.mxu0 0
        %3483 = vmatprep.subr.bf16.mxu0 0
        %3484 = vmatpush2.bf16.msra.mxu0 0
        %3485 = vmatprep.subr.bf16.mxu0 0
        %3486 = vmatpush2.bf16.msra.mxu0 0
        %3487 = vmatprep.subr.bf16.mxu0 0
        %3488 = vmatpush2.bf16.msra.mxu0 0
        %3489 = vmatprep.subr.bf16.mxu0 0
        %3490 = vmatpush2.bf16.msra.mxu0 0
        %3491 = vmatprep.subr.bf16.mxu0 0
        %3492 = vmatpush2.bf16.msra.mxu0 0
        %3493 = vmatprep.subr.bf16.mxu0 0
        %3494 = vmatpush2.bf16.msra.mxu0 0
        %3495 = vmatprep.mubr.bf16.mxu0 0
        %3496 = vmatmul.mubr.bf16.gmra.mxu0 %v3390
        %v3497 = vpop.f32.mrf.mxu0
        %v3498 = vadd.f32 %v3413, %v3497
        %v3499 = vpop.f32.mrf.mxu0
        %v3500 = vpop.f32.mrf.mxu0
        %v3501 = vadd.f32 %v3413, %v3500
        %v3502 = vpop.f32.mrf.mxu0
        %3503 = vmatprep.mubr.bf16.mxu0 0
        %3504 = vmatmul.mubr.bf16.gmra.mxu0 %v3391
        %v3505 = vpop.f32.mrf.mxu0
        %v3506 = vadd.f32 %v3413, %v3505
        %v3507 = vpop.f32.mrf.mxu0
        %v3508 = vpop.f32.mrf.mxu0
        %v3509 = vpop.f32.mrf.mxu0
        %3510 = vdwg.mxu0
        %v3511 = vadd.f32 %v2396, %v3498
        %v3512 = vadd.f32 %v2397, %v3501
        %v3513 = vadd.f32 %v2398, %v3506
        %v3514 = vld [vmem:[%s1023] sm:$0x1]
        %v3515 = vld [vmem:[%s1026] sm:$0x1]
        %3516 = vadd.xlane.f32.xlu0 %v3511
        %v3517 = vpop.xlane.xlu0 %3516
        %3518 = vadd.xlane.f32.xlu0 %v3512
        %v3519 = vpop.xlane.xlu0 %3518
        %vm3520 = vcmask 1041408
        %v3521 = vsel %vm3520, %v3513, 0.0
        %3522 = vadd.xlane.f32.xlu0 %v3521
        %v3523 = vpop.xlane.xlu0 %3522
        %v3524 = vrcp.pop 128.0
        %v3525 = vmul.f32 %v3517, %v3524
        %v3526 = vmul.f32 %v3519, %v3524
        %v3527 = vmul.f32 %v3523, %v3524
        %v3528 = vsub.f32 %v3511, %v3525
        %v3529 = vsub.f32 %v3512, %v3526
        %v3530 = vsub.f32 %v3513, %v3527
        %v3531 = vmul.f32 %v3528, %v3528
        %v3532 = vmul.f32 %v3529, %v3529
        %v3533 = vmul.f32 %v3530, %v3530
        %3534 = vadd.xlane.f32.xlu0 %v3531
        %v3535 = vpop.xlane.xlu0 %3534
        %3536 = vadd.xlane.f32.xlu0 %v3532
        %v3537 = vpop.xlane.xlu0 %3536
        %v3538 = vsel %vm3520, %v3533, 0.0
        %3539 = vadd.xlane.f32.xlu0 %v3538
        %v3540 = vpop.xlane.xlu0 %3539
        %v3541 = vmul.f32 %v3535, %v3524
        %v3542 = vmul.f32 %v3537, %v3524
        %v3543 = vmul.f32 %v3540, %v3524
        %v3544 = vadd.f32 %v3541, 1e-05
        %v3545 = vadd.f32 %v3542, 1e-05
        %v3546 = vadd.f32 %v3543, 1e-05
        %v3547 = vrsqrt.pop %v3544
        %v3548 = vrsqrt.pop %v3545
        %v3549 = vrsqrt.pop %v3546
        %v3550 = vmul.f32 %v3528, %v3547
        %v3551 = vmul.f32 %v3529, %v3548
        %v3552 = vmul.f32 %v3530, %v3549
        %v3554 = vlaneseq
        %v3555 = vshrl.u32 %v3554, 7
        %v3556 = vsub.s32 0, %v3555
        %v3557 = vrot.slane %v3514, %v3556
        %v3559 = vmul.f32 %v3550, %v3557
        %v3560 = vmul.f32 %v3551, %v3557
        %v3561 = vmul.f32 %v3552, %v3557
        %v3563 = vlaneseq
        %v3564 = vshrl.u32 %v3563, 7
        %v3565 = vsub.s32 0, %v3564
        %v3566 = vrot.slane %v3515, %v3565
        %v3568 = vadd.f32 %v3559, %v3566
        %v3569 = vadd.f32 %v3560, %v3566
        %v3570 = vadd.f32 %v3561, %v3566
        %v3571 = vpack.c.bf16 %v3569, %v3568
        %v3572 = vpack.c.bf16 %v3570, %v3570
        %v3573 = vld [vmem:[%s893] sm:$0xff]
        %v3574 = vld [vmem:[%s893 + $0x8] sm:$0xff]
        %v3575 = vld [vmem:[%s893 + $0x10] sm:$0xff]
        %v3576 = vld [vmem:[%s893 + $0x18] sm:$0xff]
        %v3577 = vld [vmem:[%s893 + $0x20] sm:$0xff]
        %v3578 = vld [vmem:[%s893 + $0x28] sm:$0xff]
        %v3579 = vld [vmem:[%s893 + $0x30] sm:$0xff]
        %v3580 = vld [vmem:[%s893 + $0x38] sm:$0xff]
        %v3581 = vld [vmem:[%s893 + $0x40] sm:$0xff]
        %v3582 = vld [vmem:[%s893 + $0x48] sm:$0xff]
        %v3583 = vld [vmem:[%s893 + $0x50] sm:$0xff]
        %v3584 = vld [vmem:[%s893 + $0x58] sm:$0xff]
        %v3585 = vld [vmem:[%s893 + $0x60] sm:$0xff]
        %v3586 = vld [vmem:[%s893 + $0x68] sm:$0xff]
        %v3587 = vld [vmem:[%s893 + $0x70] sm:$0xff]
        %v3588 = vld [vmem:[%s893 + $0x78] sm:$0xff]
        %v3589 = vld [vmem:[%s893 + $0x80] sm:$0xff]
        %v3590 = vld [vmem:[%s893 + $0x88] sm:$0xff]
        %v3591 = vld [vmem:[%s893 + $0x90] sm:$0xff]
        %v3592 = vld [vmem:[%s893 + $0x98] sm:$0xff]
        %v3593 = vld [vmem:[%s893 + $0xa0] sm:$0xff]
        %v3594 = vld [vmem:[%s893 + $0xa8] sm:$0xff]
        %v3595 = vld [vmem:[%s893 + $0xb0] sm:$0xff]
        %v3596 = vld [vmem:[%s893 + $0xb8] sm:$0xff]
        %v3597 = vld [vmem:[%s893 + $0xc0] sm:$0xff]
        %v3598 = vld [vmem:[%s893 + $0xc8] sm:$0xff]
        %v3599 = vld [vmem:[%s893 + $0xd0] sm:$0xff]
        %v3600 = vld [vmem:[%s893 + $0xd8] sm:$0xff]
        %v3601 = vld [vmem:[%s893 + $0xe0] sm:$0xff]
        %v3602 = vld [vmem:[%s893 + $0xe8] sm:$0xff]
        %v3603 = vld [vmem:[%s893 + $0xf0] sm:$0xff]
        %v3604 = vld [vmem:[%s893 + $0xf8] sm:$0xff]
        %v3605 = vld [vmem:[%s1030] sm:$0xf]
        %v3607 = vlaneseq
        %v3608 = vshrl.u32 %v3607, 7
        %v3609 = vsub.s32 0, %v3608
        %v3610 = vrot.slane %v3605, %v3609
        %v3611 = vlaneseq
        %v3612 = vshrl.u32 %v3611, 7
        %v3613 = vsub.s32 1, %v3612
        %v3614 = vrot.slane %v3605, %v3613
        %v3615 = vlaneseq
        %v3616 = vshrl.u32 %v3615, 7
        %v3617 = vsub.s32 2, %v3616
        %v3618 = vrot.slane %v3605, %v3617
        %v3619 = vlaneseq
        %v3620 = vshrl.u32 %v3619, 7
        %v3621 = vsub.s32 3, %v3620
        %v3622 = vrot.slane %v3605, %v3621
        %v3659 = vunpack.c.l.b16 %v3573
        %v3660 = vunpack.c.h.b16 %v3573
        %v3661 = vunpack.c.l.b16 %v3574
        %v3662 = vunpack.c.h.b16 %v3574
        %v3663 = vunpack.c.l.b16 %v3575
        %v3664 = vunpack.c.h.b16 %v3575
        %v3665 = vunpack.c.l.b16 %v3576
        %v3666 = vunpack.c.h.b16 %v3576
        %v3667 = vunpack.c.l.b16 %v3577
        %v3668 = vunpack.c.h.b16 %v3577
        %v3669 = vunpack.c.l.b16 %v3578
        %v3670 = vunpack.c.h.b16 %v3578
        %v3671 = vunpack.c.l.b16 %v3579
        %v3672 = vunpack.c.h.b16 %v3579
        %v3673 = vunpack.c.l.b16 %v3580
        %v3674 = vunpack.c.h.b16 %v3580
        %v3675 = vunpack.c.l.b16 %v3581
        %v3676 = vunpack.c.h.b16 %v3581
        %v3677 = vunpack.c.l.b16 %v3582
        %v3678 = vunpack.c.h.b16 %v3582
        %v3679 = vunpack.c.l.b16 %v3583
        %v3680 = vunpack.c.h.b16 %v3583
        %v3681 = vunpack.c.l.b16 %v3584
        %v3682 = vunpack.c.h.b16 %v3584
        %v3683 = vunpack.c.l.b16 %v3585
        %v3684 = vunpack.c.h.b16 %v3585
        %v3685 = vunpack.c.l.b16 %v3586
        %v3686 = vunpack.c.h.b16 %v3586
        %v3687 = vunpack.c.l.b16 %v3587
        %v3688 = vunpack.c.h.b16 %v3587
        %v3689 = vunpack.c.l.b16 %v3588
        %v3690 = vunpack.c.h.b16 %v3588
        %v3691 = vunpack.c.l.b16 %v3589
        %v3692 = vunpack.c.h.b16 %v3589
        %v3693 = vunpack.c.l.b16 %v3590
        %v3694 = vunpack.c.h.b16 %v3590
        %v3695 = vunpack.c.l.b16 %v3591
        %v3696 = vunpack.c.h.b16 %v3591
        %v3697 = vunpack.c.l.b16 %v3592
        %v3698 = vunpack.c.h.b16 %v3592
        %v3699 = vunpack.c.l.b16 %v3593
        %v3700 = vunpack.c.h.b16 %v3593
        %v3701 = vunpack.c.l.b16 %v3594
        %v3702 = vunpack.c.h.b16 %v3594
        %v3703 = vunpack.c.l.b16 %v3595
        %v3704 = vunpack.c.h.b16 %v3595
        %v3705 = vunpack.c.l.b16 %v3596
        %v3706 = vunpack.c.h.b16 %v3596
        %v3707 = vunpack.c.l.b16 %v3597
        %v3708 = vunpack.c.h.b16 %v3597
        %v3709 = vunpack.c.l.b16 %v3598
        %v3710 = vunpack.c.h.b16 %v3598
        %v3711 = vunpack.c.l.b16 %v3599
        %v3712 = vunpack.c.h.b16 %v3599
        %v3713 = vunpack.c.l.b16 %v3600
        %v3714 = vunpack.c.h.b16 %v3600
        %v3715 = vunpack.c.l.b16 %v3601
        %v3716 = vunpack.c.h.b16 %v3601
        %v3717 = vunpack.c.l.b16 %v3602
        %v3718 = vunpack.c.h.b16 %v3602
        %v3719 = vunpack.c.l.b16 %v3603
        %v3720 = vunpack.c.h.b16 %v3603
        %v3721 = vunpack.c.l.b16 %v3604
        %v3722 = vunpack.c.h.b16 %v3604
        %v3723 = vpack.c.b16 %v3663, %v3659
        %v3724 = vpack.c.b16 %v3664, %v3660
        %v3725 = vpack.c.b16 %v3665, %v3661
        %v3726 = vpack.c.b16 %v3666, %v3662
        %v3727 = vpack.c.b16 %v3671, %v3667
        %v3728 = vpack.c.b16 %v3672, %v3668
        %v3729 = vpack.c.b16 %v3673, %v3669
        %v3730 = vpack.c.b16 %v3674, %v3670
        %v3731 = vpack.c.b16 %v3679, %v3675
        %v3732 = vpack.c.b16 %v3680, %v3676
        %v3733 = vpack.c.b16 %v3681, %v3677
        %v3734 = vpack.c.b16 %v3682, %v3678
        %v3735 = vpack.c.b16 %v3687, %v3683
        %v3736 = vpack.c.b16 %v3688, %v3684
        %v3737 = vpack.c.b16 %v3689, %v3685
        %v3738 = vpack.c.b16 %v3690, %v3686
        %v3739 = vpack.c.b16 %v3695, %v3691
        %v3740 = vpack.c.b16 %v3696, %v3692
        %v3741 = vpack.c.b16 %v3697, %v3693
        %v3742 = vpack.c.b16 %v3698, %v3694
        %v3743 = vpack.c.b16 %v3703, %v3699
        %v3744 = vpack.c.b16 %v3704, %v3700
        %v3745 = vpack.c.b16 %v3705, %v3701
        %v3746 = vpack.c.b16 %v3706, %v3702
        %v3747 = vpack.c.b16 %v3711, %v3707
        %v3748 = vpack.c.b16 %v3712, %v3708
        %v3749 = vpack.c.b16 %v3713, %v3709
        %v3750 = vpack.c.b16 %v3714, %v3710
        %v3751 = vpack.c.b16 %v3719, %v3715
        %v3752 = vpack.c.b16 %v3720, %v3716
        %v3753 = vpack.c.b16 %v3721, %v3717
        %v3754 = vpack.c.b16 %v3722, %v3718
        %3787 = vmatprep.subr.bf16.mxu0 %v3752
        %3788 = vmatpush1.bf16.msra.mxu0 %v3751
        %3789 = vmatprep.subr.bf16.mxu0 %v3748
        %3790 = vmatpush1.bf16.msra.mxu0 %v3747
        %3791 = vmatprep.subr.bf16.mxu0 %v3744
        %3792 = vmatpush1.bf16.msra.mxu0 %v3743
        %3793 = vmatprep.subr.bf16.mxu0 %v3740
        %3794 = vmatpush1.bf16.msra.mxu0 %v3739
        %3795 = vmatprep.subr.bf16.mxu0 %v3736
        %3796 = vmatpush1.bf16.msra.mxu0 %v3735
        %3797 = vmatprep.subr.bf16.mxu0 %v3732
        %3798 = vmatpush1.bf16.msra.mxu0 %v3731
        %3799 = vmatprep.subr.bf16.mxu0 %v3728
        %3800 = vmatpush1.bf16.msra.mxu0 %v3727
        %3801 = vmatprep.subr.bf16.mxu0 %v3724
        %3802 = vmatpush1.bf16.msra.mxu0 %v3723
        %3803 = vmatprep.subr.bf16.mxu0 0
        %3804 = vmatpush2.bf16.msra.mxu0 0
        %3805 = vmatprep.subr.bf16.mxu0 0
        %3806 = vmatpush2.bf16.msra.mxu0 0
        %3807 = vmatprep.subr.bf16.mxu0 0
        %3808 = vmatpush2.bf16.msra.mxu0 0
        %3809 = vmatprep.subr.bf16.mxu0 0
        %3810 = vmatpush2.bf16.msra.mxu0 0
        %3811 = vmatprep.subr.bf16.mxu0 0
        %3812 = vmatpush2.bf16.msra.mxu0 0
        %3813 = vmatprep.subr.bf16.mxu0 0
        %3814 = vmatpush2.bf16.msra.mxu0 0
        %3815 = vmatprep.subr.bf16.mxu0 0
        %3816 = vmatpush2.bf16.msra.mxu0 0
        %3817 = vmatprep.subr.bf16.mxu0 0
        %3818 = vmatpush2.bf16.msra.mxu0 0
        %3819 = vmatprep.mubr.bf16.mxu0 0
        %3820 = vmatmul.mubr.bf16.gmra.mxu0 %v3571
        %v3821 = vpop.f32.mrf.mxu0
        %v3822 = vadd.f32 %v3610, %v3821
        %v3823 = vpop.f32.mrf.mxu0
        %v3824 = vadd.f32 %v3614, %v3823
        %v3825 = vpop.f32.mrf.mxu0
        %v3826 = vadd.f32 %v3610, %v3825
        %v3827 = vpop.f32.mrf.mxu0
        %v3828 = vadd.f32 %v3614, %v3827
        %3829 = vmatprep.mubr.bf16.mxu0 0
        %3830 = vmatmul.mubr.bf16.gmra.mxu0 %v3572
        %v3831 = vpop.f32.mrf.mxu0
        %v3832 = vadd.f32 %v3610, %v3831
        %v3833 = vpop.f32.mrf.mxu0
        %v3834 = vadd.f32 %v3614, %v3833
        %v3835 = vpop.f32.mrf.mxu0
        %v3836 = vpop.f32.mrf.mxu0
        %3837 = vdwg.mxu0
        %3838 = vmatprep.subr.bf16.mxu0 %v3754
        %3839 = vmatpush1.bf16.msra.mxu0 %v3753
        %3840 = vmatprep.subr.bf16.mxu0 %v3750
        %3841 = vmatpush1.bf16.msra.mxu0 %v3749
        %3842 = vmatprep.subr.bf16.mxu0 %v3746
        %3843 = vmatpush1.bf16.msra.mxu0 %v3745
        %3844 = vmatprep.subr.bf16.mxu0 %v3742
        %3845 = vmatpush1.bf16.msra.mxu0 %v3741
        %3846 = vmatprep.subr.bf16.mxu0 %v3738
        %3847 = vmatpush1.bf16.msra.mxu0 %v3737
        %3848 = vmatprep.subr.bf16.mxu0 %v3734
        %3849 = vmatpush1.bf16.msra.mxu0 %v3733
        %3850 = vmatprep.subr.bf16.mxu0 %v3730
        %3851 = vmatpush1.bf16.msra.mxu0 %v3729
        %3852 = vmatprep.subr.bf16.mxu0 %v3726
        %3853 = vmatpush1.bf16.msra.mxu0 %v3725
        %3854 = vmatprep.subr.bf16.mxu0 0
        %3855 = vmatpush2.bf16.msra.mxu0 0
        %3856 = vmatprep.subr.bf16.mxu0 0
        %3857 = vmatpush2.bf16.msra.mxu0 0
        %3858 = vmatprep.subr.bf16.mxu0 0
        %3859 = vmatpush2.bf16.msra.mxu0 0
        %3860 = vmatprep.subr.bf16.mxu0 0
        %3861 = vmatpush2.bf16.msra.mxu0 0
        %3862 = vmatprep.subr.bf16.mxu0 0
        %3863 = vmatpush2.bf16.msra.mxu0 0
        %3864 = vmatprep.subr.bf16.mxu0 0
        %3865 = vmatpush2.bf16.msra.mxu0 0
        %3866 = vmatprep.subr.bf16.mxu0 0
        %3867 = vmatpush2.bf16.msra.mxu0 0
        %3868 = vmatprep.subr.bf16.mxu0 0
        %3869 = vmatpush2.bf16.msra.mxu0 0
        %3870 = vmatprep.mubr.bf16.mxu0 0
        %3871 = vmatmul.mubr.bf16.gmra.mxu0 %v3571
        %v3872 = vpop.f32.mrf.mxu0
        %v3873 = vadd.f32 %v3618, %v3872
        %v3874 = vpop.f32.mrf.mxu0
        %v3875 = vadd.f32 %v3622, %v3874
        %v3876 = vpop.f32.mrf.mxu0
        %v3877 = vadd.f32 %v3618, %v3876
        %v3878 = vpop.f32.mrf.mxu0
        %v3879 = vadd.f32 %v3622, %v3878
        %3880 = vmatprep.mubr.bf16.mxu0 0
        %3881 = vmatmul.mubr.bf16.gmra.mxu0 %v3572
        %v3882 = vpop.f32.mrf.mxu0
        %v3883 = vadd.f32 %v3618, %v3882
        %v3884 = vpop.f32.mrf.mxu0
        %v3885 = vadd.f32 %v3622, %v3884
        %v3886 = vpop.f32.mrf.mxu0
        %v3887 = vpop.f32.mrf.mxu0
        %3888 = vdwg.mxu0
        %v3889 = vmax.f32 %v3822, 0.0
        %v3890 = vmax.f32 %v3824, 0.0
        %v3891 = vmax.f32 %v3873, 0.0
        %v3892 = vmax.f32 %v3875, 0.0
        %v3893 = vmax.f32 %v3826, 0.0
        %v3894 = vmax.f32 %v3828, 0.0
        %v3895 = vmax.f32 %v3877, 0.0
        %v3896 = vmax.f32 %v3879, 0.0
        %v3897 = vmax.f32 %v3832, 0.0
        %v3898 = vmax.f32 %v3834, 0.0
        %v3899 = vmax.f32 %v3883, 0.0
        %v3900 = vmax.f32 %v3885, 0.0
        %v3901 = vpack.c.bf16 %v3893, %v3889
        %v3902 = vpack.c.bf16 %v3894, %v3890
        %v3903 = vpack.c.bf16 %v3895, %v3891
        %v3904 = vpack.c.bf16 %v3896, %v3892
        %v3905 = vpack.c.bf16 %v3897, %v3897
        %v3906 = vpack.c.bf16 %v3898, %v3898
        %v3907 = vpack.c.bf16 %v3899, %v3899
        %v3908 = vpack.c.bf16 %v3900, %v3900
        %v3909 = vld [vmem:[%s902] sm:$0xf]
        %v3910 = vld [vmem:[%s902 + $0x4] sm:$0xf]
        %v3911 = vld [vmem:[%s902 + $0x8] sm:$0xf]
        %v3912 = vld [vmem:[%s902 + $0xc] sm:$0xf]
        %v3913 = vld [vmem:[%s902 + $0x10] sm:$0xf]
        %v3914 = vld [vmem:[%s902 + $0x14] sm:$0xf]
        %v3915 = vld [vmem:[%s902 + $0x18] sm:$0xf]
        %v3916 = vld [vmem:[%s902 + $0x1c] sm:$0xf]
        %v3917 = vld [vmem:[%s902 + $0x20] sm:$0xf]
        %v3918 = vld [vmem:[%s902 + $0x24] sm:$0xf]
        %v3919 = vld [vmem:[%s902 + $0x28] sm:$0xf]
        %v3920 = vld [vmem:[%s902 + $0x2c] sm:$0xf]
        %v3921 = vld [vmem:[%s902 + $0x30] sm:$0xf]
        %v3922 = vld [vmem:[%s902 + $0x34] sm:$0xf]
        %v3923 = vld [vmem:[%s902 + $0x38] sm:$0xf]
        %v3924 = vld [vmem:[%s902 + $0x3c] sm:$0xf]
        %v3925 = vld [vmem:[%s902 + $0x40] sm:$0xf]
        %v3926 = vld [vmem:[%s902 + $0x44] sm:$0xf]
        %v3927 = vld [vmem:[%s902 + $0x48] sm:$0xf]
        %v3928 = vld [vmem:[%s902 + $0x4c] sm:$0xf]
        %v3929 = vld [vmem:[%s902 + $0x50] sm:$0xf]
        %v3930 = vld [vmem:[%s902 + $0x54] sm:$0xf]
        %v3931 = vld [vmem:[%s902 + $0x58] sm:$0xf]
        %v3932 = vld [vmem:[%s902 + $0x5c] sm:$0xf]
        %v3933 = vld [vmem:[%s902 + $0x60] sm:$0xf]
        %v3934 = vld [vmem:[%s902 + $0x64] sm:$0xf]
        %v3935 = vld [vmem:[%s902 + $0x68] sm:$0xf]
        %v3936 = vld [vmem:[%s902 + $0x6c] sm:$0xf]
        %v3937 = vld [vmem:[%s902 + $0x70] sm:$0xf]
        %v3938 = vld [vmem:[%s902 + $0x74] sm:$0xf]
        %v3939 = vld [vmem:[%s902 + $0x78] sm:$0xf]
        %v3940 = vld [vmem:[%s902 + $0x7c] sm:$0xf]
        %v3941 = vld [vmem:[%s902 + $0x80] sm:$0xf]
        %v3942 = vld [vmem:[%s902 + $0x84] sm:$0xf]
        %v3943 = vld [vmem:[%s902 + $0x88] sm:$0xf]
        %v3944 = vld [vmem:[%s902 + $0x8c] sm:$0xf]
        %v3945 = vld [vmem:[%s902 + $0x90] sm:$0xf]
        %v3946 = vld [vmem:[%s902 + $0x94] sm:$0xf]
        %v3947 = vld [vmem:[%s902 + $0x98] sm:$0xf]
        %v3948 = vld [vmem:[%s902 + $0x9c] sm:$0xf]
        %v3949 = vld [vmem:[%s902 + $0xa0] sm:$0xf]
        %v3950 = vld [vmem:[%s902 + $0xa4] sm:$0xf]
        %v3951 = vld [vmem:[%s902 + $0xa8] sm:$0xf]
        %v3952 = vld [vmem:[%s902 + $0xac] sm:$0xf]
        %v3953 = vld [vmem:[%s902 + $0xb0] sm:$0xf]
        %v3954 = vld [vmem:[%s902 + $0xb4] sm:$0xf]
        %v3955 = vld [vmem:[%s902 + $0xb8] sm:$0xf]
        %v3956 = vld [vmem:[%s902 + $0xbc] sm:$0xf]
        %v3957 = vld [vmem:[%s902 + $0xc0] sm:$0xf]
        %v3958 = vld [vmem:[%s902 + $0xc4] sm:$0xf]
        %v3959 = vld [vmem:[%s902 + $0xc8] sm:$0xf]
        %v3960 = vld [vmem:[%s902 + $0xcc] sm:$0xf]
        %v3961 = vld [vmem:[%s902 + $0xd0] sm:$0xf]
        %v3962 = vld [vmem:[%s902 + $0xd4] sm:$0xf]
        %v3963 = vld [vmem:[%s902 + $0xd8] sm:$0xf]
        %v3964 = vld [vmem:[%s902 + $0xdc] sm:$0xf]
        %v3965 = vld [vmem:[%s902 + $0xe0] sm:$0xf]
        %v3966 = vld [vmem:[%s902 + $0xe4] sm:$0xf]
        %v3967 = vld [vmem:[%s902 + $0xe8] sm:$0xf]
        %v3968 = vld [vmem:[%s902 + $0xec] sm:$0xf]
        %v3969 = vld [vmem:[%s902 + $0xf0] sm:$0xf]
        %v3970 = vld [vmem:[%s902 + $0xf4] sm:$0xf]
        %v3971 = vld [vmem:[%s902 + $0xf8] sm:$0xf]
        %v3972 = vld [vmem:[%s902 + $0xfc] sm:$0xf]
        %v3973 = vld [vmem:[%s1033] sm:$0x1]
        %v3975 = vlaneseq
        %v3976 = vshrl.u32 %v3975, 7
        %v3977 = vsub.s32 0, %v3976
        %v3978 = vrot.slane %v3973, %v3977
        %v4044 = vunpack.c.l.b16 %v3909
        %v4045 = vunpack.c.l.b16 %v3910
        %v4046 = vunpack.c.l.b16 %v3911
        %v4047 = vunpack.c.l.b16 %v3912
        %v4048 = vunpack.c.l.b16 %v3913
        %v4049 = vunpack.c.l.b16 %v3914
        %v4050 = vunpack.c.l.b16 %v3915
        %v4051 = vunpack.c.l.b16 %v3916
        %v4052 = vunpack.c.l.b16 %v3917
        %v4053 = vunpack.c.l.b16 %v3918
        %v4054 = vunpack.c.l.b16 %v3919
        %v4055 = vunpack.c.l.b16 %v3920
        %v4056 = vunpack.c.l.b16 %v3921
        %v4057 = vunpack.c.l.b16 %v3922
        %v4058 = vunpack.c.l.b16 %v3923
        %v4059 = vunpack.c.l.b16 %v3924
        %v4060 = vunpack.c.l.b16 %v3925
        %v4061 = vunpack.c.l.b16 %v3926
        %v4062 = vunpack.c.l.b16 %v3927
        %v4063 = vunpack.c.l.b16 %v3928
        %v4064 = vunpack.c.l.b16 %v3929
        %v4065 = vunpack.c.l.b16 %v3930
        %v4066 = vunpack.c.l.b16 %v3931
        %v4067 = vunpack.c.l.b16 %v3932
        %v4068 = vunpack.c.l.b16 %v3933
        %v4069 = vunpack.c.l.b16 %v3934
        %v4070 = vunpack.c.l.b16 %v3935
        %v4071 = vunpack.c.l.b16 %v3936
        %v4072 = vunpack.c.l.b16 %v3937
        %v4073 = vunpack.c.l.b16 %v3938
        %v4074 = vunpack.c.l.b16 %v3939
        %v4075 = vunpack.c.l.b16 %v3940
        %v4076 = vunpack.c.l.b16 %v3941
        %v4077 = vunpack.c.l.b16 %v3942
        %v4078 = vunpack.c.l.b16 %v3943
        %v4079 = vunpack.c.l.b16 %v3944
        %v4080 = vunpack.c.l.b16 %v3945
        %v4081 = vunpack.c.l.b16 %v3946
        %v4082 = vunpack.c.l.b16 %v3947
        %v4083 = vunpack.c.l.b16 %v3948
        %v4084 = vunpack.c.l.b16 %v3949
        %v4085 = vunpack.c.l.b16 %v3950
        %v4086 = vunpack.c.l.b16 %v3951
        %v4087 = vunpack.c.l.b16 %v3952
        %v4088 = vunpack.c.l.b16 %v3953
        %v4089 = vunpack.c.l.b16 %v3954
        %v4090 = vunpack.c.l.b16 %v3955
        %v4091 = vunpack.c.l.b16 %v3956
        %v4092 = vunpack.c.l.b16 %v3957
        %v4093 = vunpack.c.l.b16 %v3958
        %v4094 = vunpack.c.l.b16 %v3959
        %v4095 = vunpack.c.l.b16 %v3960
        %v4096 = vunpack.c.l.b16 %v3961
        %v4097 = vunpack.c.l.b16 %v3962
        %v4098 = vunpack.c.l.b16 %v3963
        %v4099 = vunpack.c.l.b16 %v3964
        %v4100 = vunpack.c.l.b16 %v3965
        %v4101 = vunpack.c.l.b16 %v3966
        %v4102 = vunpack.c.l.b16 %v3967
        %v4103 = vunpack.c.l.b16 %v3968
        %v4104 = vunpack.c.l.b16 %v3969
        %v4105 = vunpack.c.l.b16 %v3970
        %v4106 = vunpack.c.l.b16 %v3971
        %v4107 = vunpack.c.l.b16 %v3972
        %v4108 = vpack.c.b16 %v4045, %v4044
        %v4109 = vpack.c.b16 %v4047, %v4046
        %v4110 = vpack.c.b16 %v4049, %v4048
        %v4111 = vpack.c.b16 %v4051, %v4050
        %v4112 = vpack.c.b16 %v4053, %v4052
        %v4113 = vpack.c.b16 %v4055, %v4054
        %v4114 = vpack.c.b16 %v4057, %v4056
        %v4115 = vpack.c.b16 %v4059, %v4058
        %v4116 = vpack.c.b16 %v4061, %v4060
        %v4117 = vpack.c.b16 %v4063, %v4062
        %v4118 = vpack.c.b16 %v4065, %v4064
        %v4119 = vpack.c.b16 %v4067, %v4066
        %v4120 = vpack.c.b16 %v4069, %v4068
        %v4121 = vpack.c.b16 %v4071, %v4070
        %v4122 = vpack.c.b16 %v4073, %v4072
        %v4123 = vpack.c.b16 %v4075, %v4074
        %v4124 = vpack.c.b16 %v4077, %v4076
        %v4125 = vpack.c.b16 %v4079, %v4078
        %v4126 = vpack.c.b16 %v4081, %v4080
        %v4127 = vpack.c.b16 %v4083, %v4082
        %v4128 = vpack.c.b16 %v4085, %v4084
        %v4129 = vpack.c.b16 %v4087, %v4086
        %v4130 = vpack.c.b16 %v4089, %v4088
        %v4131 = vpack.c.b16 %v4091, %v4090
        %v4132 = vpack.c.b16 %v4093, %v4092
        %v4133 = vpack.c.b16 %v4095, %v4094
        %v4134 = vpack.c.b16 %v4097, %v4096
        %v4135 = vpack.c.b16 %v4099, %v4098
        %v4136 = vpack.c.b16 %v4101, %v4100
        %v4137 = vpack.c.b16 %v4103, %v4102
        %v4138 = vpack.c.b16 %v4105, %v4104
        %v4139 = vpack.c.b16 %v4107, %v4106
        %4172 = vmatprep.subr.bf16.mxu0 0
        %4173 = vmatpush1.bf16.msra.mxu0 %v4115
        %4174 = vmatprep.subr.bf16.mxu0 0
        %4175 = vmatpush1.bf16.msra.mxu0 %v4114
        %4176 = vmatprep.subr.bf16.mxu0 0
        %4177 = vmatpush1.bf16.msra.mxu0 %v4113
        %4178 = vmatprep.subr.bf16.mxu0 0
        %4179 = vmatpush1.bf16.msra.mxu0 %v4112
        %4180 = vmatprep.subr.bf16.mxu0 0
        %4181 = vmatpush1.bf16.msra.mxu0 %v4111
        %4182 = vmatprep.subr.bf16.mxu0 0
        %4183 = vmatpush1.bf16.msra.mxu0 %v4110
        %4184 = vmatprep.subr.bf16.mxu0 0
        %4185 = vmatpush1.bf16.msra.mxu0 %v4109
        %4186 = vmatprep.subr.bf16.mxu0 0
        %4187 = vmatpush1.bf16.msra.mxu0 %v4108
        %4188 = vmatprep.subr.bf16.mxu0 0
        %4189 = vmatpush2.bf16.msra.mxu0 %v4123
        %4190 = vmatprep.subr.bf16.mxu0 0
        %4191 = vmatpush2.bf16.msra.mxu0 %v4122
        %4192 = vmatprep.subr.bf16.mxu0 0
        %4193 = vmatpush2.bf16.msra.mxu0 %v4121
        %4194 = vmatprep.subr.bf16.mxu0 0
        %4195 = vmatpush2.bf16.msra.mxu0 %v4120
        %4196 = vmatprep.subr.bf16.mxu0 0
        %4197 = vmatpush2.bf16.msra.mxu0 %v4119
        %4198 = vmatprep.subr.bf16.mxu0 0
        %4199 = vmatpush2.bf16.msra.mxu0 %v4118
        %4200 = vmatprep.subr.bf16.mxu0 0
        %4201 = vmatpush2.bf16.msra.mxu0 %v4117
        %4202 = vmatprep.subr.bf16.mxu0 0
        %4203 = vmatpush2.bf16.msra.mxu0 %v4116
        %4204 = vmatprep.mubr.bf16.mxu0 %v3902
        %4205 = vmatmul.mubr.bf16.gmra.mxu0 %v3901
        %v4206 = vpop.f32.mrf.mxu0
        %v4207 = vadd.f32 %v3978, %v4206
        %v4208 = vpop.f32.mrf.mxu0
        %v4209 = vpop.f32.mrf.mxu0
        %v4210 = vadd.f32 %v3978, %v4209
        %v4211 = vpop.f32.mrf.mxu0
        %4212 = vmatprep.mubr.bf16.mxu0 %v3906
        %4213 = vmatmul.mubr.bf16.gmra.mxu0 %v3905
        %v4214 = vpop.f32.mrf.mxu0
        %v4215 = vadd.f32 %v3978, %v4214
        %v4216 = vpop.f32.mrf.mxu0
        %v4217 = vpop.f32.mrf.mxu0
        %v4218 = vpop.f32.mrf.mxu0
        %4219 = vdwg.mxu0
        %4220 = vmatprep.subr.bf16.mxu0 0
        %4221 = vmatpush1.bf16.msra.mxu0 %v4131
        %4222 = vmatprep.subr.bf16.mxu0 0
        %4223 = vmatpush1.bf16.msra.mxu0 %v4130
        %4224 = vmatprep.subr.bf16.mxu0 0
        %4225 = vmatpush1.bf16.msra.mxu0 %v4129
        %4226 = vmatprep.subr.bf16.mxu0 0
        %4227 = vmatpush1.bf16.msra.mxu0 %v4128
        %4228 = vmatprep.subr.bf16.mxu0 0
        %4229 = vmatpush1.bf16.msra.mxu0 %v4127
        %4230 = vmatprep.subr.bf16.mxu0 0
        %4231 = vmatpush1.bf16.msra.mxu0 %v4126
        %4232 = vmatprep.subr.bf16.mxu0 0
        %4233 = vmatpush1.bf16.msra.mxu0 %v4125
        %4234 = vmatprep.subr.bf16.mxu0 0
        %4235 = vmatpush1.bf16.msra.mxu0 %v4124
        %4236 = vmatprep.subr.bf16.mxu0 0
        %4237 = vmatpush2.bf16.msra.mxu0 %v4139
        %4238 = vmatprep.subr.bf16.mxu0 0
        %4239 = vmatpush2.bf16.msra.mxu0 %v4138
        %4240 = vmatprep.subr.bf16.mxu0 0
        %4241 = vmatpush2.bf16.msra.mxu0 %v4137
        %4242 = vmatprep.subr.bf16.mxu0 0
        %4243 = vmatpush2.bf16.msra.mxu0 %v4136
        %4244 = vmatprep.subr.bf16.mxu0 0
        %4245 = vmatpush2.bf16.msra.mxu0 %v4135
        %4246 = vmatprep.subr.bf16.mxu0 0
        %4247 = vmatpush2.bf16.msra.mxu0 %v4134
        %4248 = vmatprep.subr.bf16.mxu0 0
        %4249 = vmatpush2.bf16.msra.mxu0 %v4133
        %4250 = vmatprep.subr.bf16.mxu0 0
        %4251 = vmatpush2.bf16.msra.mxu0 %v4132
        %4252 = vmatprep.mubr.bf16.mxu0 %v3904
        %4253 = vmatmul.mubr.bf16.gmra.mxu0 %v3903
        %v4254 = vpop.f32.mrf.mxu0
        %v4255 = vadd.f32 %v4207, %v4254
        %v4256 = vpop.f32.mrf.mxu0
        %v4257 = vpop.f32.mrf.mxu0
        %v4258 = vadd.f32 %v4210, %v4257
        %v4259 = vpop.f32.mrf.mxu0
        %4260 = vmatprep.mubr.bf16.mxu0 %v3908
        %4261 = vmatmul.mubr.bf16.gmra.mxu0 %v3907
        %v4262 = vpop.f32.mrf.mxu0
        %v4263 = vadd.f32 %v4215, %v4262
        %v4264 = vpop.f32.mrf.mxu0
        %v4265 = vpop.f32.mrf.mxu0
        %v4266 = vpop.f32.mrf.mxu0
        %4267 = vdwg.mxu0
        %v4268 = vadd.f32 %v3568, %v4255
        %v4269 = vadd.f32 %v3569, %v4258
        %v4270 = vadd.f32 %v3570, %v4263
        %v4271 = vld [vmem:[%s1036] sm:$0x1]
        %v4272 = vld [vmem:[%s1039] sm:$0x1]
        %4273 = vadd.xlane.f32.xlu0 %v4268
        %v4274 = vpop.xlane.xlu0 %4273
        %4275 = vadd.xlane.f32.xlu0 %v4269
        %v4276 = vpop.xlane.xlu0 %4275
        %v4277 = vsel %vm3520, %v4270, 0.0
        %4278 = vadd.xlane.f32.xlu0 %v4277
        %v4279 = vpop.xlane.xlu0 %4278
        %v4280 = vmul.f32 %v4274, %v3524
        %v4281 = vmul.f32 %v4276, %v3524
        %v4282 = vmul.f32 %v4279, %v3524
        %v4283 = vsub.f32 %v4268, %v4280
        %v4284 = vsub.f32 %v4269, %v4281
        %v4285 = vsub.f32 %v4270, %v4282
        %v4286 = vmul.f32 %v4283, %v4283
        %v4287 = vmul.f32 %v4284, %v4284
        %v4288 = vmul.f32 %v4285, %v4285
        %4289 = vadd.xlane.f32.xlu0 %v4286
        %v4290 = vpop.xlane.xlu0 %4289
        %4291 = vadd.xlane.f32.xlu0 %v4287
        %v4292 = vpop.xlane.xlu0 %4291
        %v4293 = vsel %vm3520, %v4288, 0.0
        %4294 = vadd.xlane.f32.xlu0 %v4293
        %v4295 = vpop.xlane.xlu0 %4294
        %v4296 = vmul.f32 %v4290, %v3524
        %v4297 = vmul.f32 %v4292, %v3524
        %v4298 = vmul.f32 %v4295, %v3524
        %v4299 = vadd.f32 %v4296, 1e-05
        %v4300 = vadd.f32 %v4297, 1e-05
        %v4301 = vadd.f32 %v4298, 1e-05
        %v4302 = vrsqrt.pop %v4299
        %v4303 = vrsqrt.pop %v4300
        %v4304 = vrsqrt.pop %v4301
        %v4305 = vmul.f32 %v4283, %v4302
        %v4306 = vmul.f32 %v4284, %v4303
        %v4307 = vmul.f32 %v4285, %v4304
        %v4309 = vlaneseq
        %v4310 = vshrl.u32 %v4309, 7
        %v4311 = vsub.s32 0, %v4310
        %v4312 = vrot.slane %v4271, %v4311
        %v4314 = vmul.f32 %v4305, %v4312
        %v4315 = vmul.f32 %v4306, %v4312
        %v4316 = vmul.f32 %v4307, %v4312
        %v4318 = vlaneseq
        %v4319 = vshrl.u32 %v4318, 7
        %v4320 = vsub.s32 0, %v4319
        %v4321 = vrot.slane %v4272, %v4320
        %v4323 = vadd.f32 %v4314, %v4321
        %v4324 = vadd.f32 %v4315, %v4321
        %v4325 = vadd.f32 %v4316, %v4321
        %p4326 = scmp.lt.s32.totalorder %s45, 3
        // Predicated region
        $region145: #{forward.1} parent=127 // pred_check
          %p4327 = pneg %p4326
        $region146: #{forward.1} parent=127 // pred_check_branch
          %4329 = sbr.rel (%p4327) target = $region148
        $region147: #{forward.1} parent=127 // pred_region
          %4330 = vst [vmem:[#allocation2] sm:$0xff] %v4323
          %4331 = vst [vmem:[#allocation2 + $0x8] sm:$0xff] %v4324
          %4332 = vst [vmem:[#allocation2 + $0x10] sm:$0x3] %v4325
        $region148: #{forward.1} parent=127 // pred_fallthru
          _
        %p4333 = scmp.eq.s32.totalorder %s45, 3
        // Predicated region
        $region149: #{forward.1} parent=127 // pred_check
          %p4334 = pneg %p4333
        $region150: #{forward.1} parent=127 // pred_check_branch
          %4336 = sbr.rel (%p4334) target = $region152
        $region151: #{forward.1} parent=127 // pred_region
          %v4337 = vpack.c.bf16 %v4325, %v4325
          %v4338 = vld [vmem:[%s23] sm:$0xf]
          %v4339 = vld [vmem:[%s23 + $0x4] sm:$0xf]
          %v4340 = vld [vmem:[%s23 + $0x8] sm:$0xf]
          %v4341 = vld [vmem:[%s23 + $0xc] sm:$0xf]
          %v4342 = vld [vmem:[%s23 + $0x10] sm:$0xf]
          %v4343 = vld [vmem:[%s23 + $0x14] sm:$0xf]
          %v4344 = vld [vmem:[%s23 + $0x18] sm:$0xf]
          %v4345 = vld [vmem:[%s23 + $0x1c] sm:$0xf]
          %v4346 = vld [vmem:[%s23 + $0x20] sm:$0xf]
          %v4347 = vld [vmem:[%s23 + $0x24] sm:$0xf]
          %v4348 = vld [vmem:[%s23 + $0x28] sm:$0xf]
          %v4349 = vld [vmem:[%s23 + $0x2c] sm:$0xf]
          %v4350 = vld [vmem:[%s23 + $0x30] sm:$0xf]
          %v4351 = vld [vmem:[%s23 + $0x34] sm:$0xf]
          %v4352 = vld [vmem:[%s23 + $0x38] sm:$0xf]
          %v4353 = vld [vmem:[%s23 + $0x3c] sm:$0xf]
          %v4354 = vld [vmem:[%s24] sm:$0x1]
          %v4356 = vlaneseq
          %v4357 = vshrl.u32 %v4356, 7
          %v4358 = vsub.s32 0, %v4357
          %v4359 = vrot.slane %v4354, %v4358
          %v4377 = vunpack.c.l.b16 %v4338
          %v4378 = vunpack.c.l.b16 %v4339
          %v4379 = vunpack.c.l.b16 %v4340
          %v4380 = vunpack.c.l.b16 %v4341
          %v4381 = vunpack.c.l.b16 %v4342
          %v4382 = vunpack.c.l.b16 %v4343
          %v4383 = vunpack.c.l.b16 %v4344
          %v4384 = vunpack.c.l.b16 %v4345
          %v4385 = vunpack.c.l.b16 %v4346
          %v4386 = vunpack.c.l.b16 %v4347
          %v4387 = vunpack.c.l.b16 %v4348
          %v4388 = vunpack.c.l.b16 %v4349
          %v4389 = vunpack.c.l.b16 %v4350
          %v4390 = vunpack.c.l.b16 %v4351
          %v4391 = vunpack.c.l.b16 %v4352
          %v4392 = vunpack.c.l.b16 %v4353
          %v4393 = vpack.c.b16 %v4378, %v4377
          %v4394 = vpack.c.b16 %v4380, %v4379
          %v4395 = vpack.c.b16 %v4382, %v4381
          %v4396 = vpack.c.b16 %v4384, %v4383
          %v4397 = vpack.c.b16 %v4386, %v4385
          %v4398 = vpack.c.b16 %v4388, %v4387
          %v4399 = vpack.c.b16 %v4390, %v4389
          %v4400 = vpack.c.b16 %v4392, %v4391
          %4409 = vmatprep.subr.bf16.mxu0 0
          %4410 = vmatpush1.bf16.msra.mxu0 %v4400
          %4411 = vmatprep.subr.bf16.mxu0 0
          %4412 = vmatpush1.bf16.msra.mxu0 %v4399
          %4413 = vmatprep.subr.bf16.mxu0 0
          %4414 = vmatpush1.bf16.msra.mxu0 %v4398
          %4415 = vmatprep.subr.bf16.mxu0 0
          %4416 = vmatpush1.bf16.msra.mxu0 %v4397
          %4417 = vmatprep.subr.bf16.mxu0 0
          %4418 = vmatpush1.bf16.msra.mxu0 %v4396
          %4419 = vmatprep.subr.bf16.mxu0 0
          %4420 = vmatpush1.bf16.msra.mxu0 %v4395
          %4421 = vmatprep.subr.bf16.mxu0 0
          %4422 = vmatpush1.bf16.msra.mxu0 %v4394
          %4423 = vmatprep.subr.bf16.mxu0 0
          %4424 = vmatpush1.bf16.msra.mxu0 %v4393
          %4425 = vmatprep.subr.bf16.mxu0 0
          %4426 = vmatpush2.bf16.msra.mxu0 0
          %4427 = vmatprep.subr.bf16.mxu0 0
          %4428 = vmatpush2.bf16.msra.mxu0 0
          %4429 = vmatprep.subr.bf16.mxu0 0
          %4430 = vmatpush2.bf16.msra.mxu0 0
          %4431 = vmatprep.subr.bf16.mxu0 0
          %4432 = vmatpush2.bf16.msra.mxu0 0
          %4433 = vmatprep.subr.bf16.mxu0 0
          %4434 = vmatpush2.bf16.msra.mxu0 0
          %4435 = vmatprep.subr.bf16.mxu0 0
          %4436 = vmatpush2.bf16.msra.mxu0 0
          %4437 = vmatprep.subr.bf16.mxu0 0
          %4438 = vmatpush2.bf16.msra.mxu0 0
          %4439 = vmatprep.subr.bf16.mxu0 0
          %4440 = vmatpush2.bf16.msra.mxu0 0
          %4441 = vmatprep.mubr.bf16.mxu0 0
          %4442 = vmatmul.mubr.bf16.gmra.mxu0 %v4337
          %v4443 = vpop.f32.mrf.mxu0
          %v4444 = vadd.f32 %v4359, %v4443
          %v4445 = vpop.f32.mrf.mxu0
          %v4446 = vpop.f32.mrf.mxu0
          %v4447 = vpop.f32.mrf.mxu0
          %4448 = vdwg.mxu0
          %v4449 = vmax.f32 %v4444, 0.0
          %v4450 = vpack.c.bf16 %v4449, %v4449
          %v4451 = vld [vmem:[%s25] sm:$0xf]
          %v4452 = vld [vmem:[%s25 + $0x4] sm:$0xf]
          %v4453 = vld [vmem:[%s25 + $0x8] sm:$0xf]
          %v4454 = vld [vmem:[%s25 + $0xc] sm:$0xf]
          %v4455 = vld [vmem:[%s25 + $0x10] sm:$0xf]
          %v4456 = vld [vmem:[%s25 + $0x14] sm:$0xf]
          %v4457 = vld [vmem:[%s25 + $0x18] sm:$0xf]
          %v4458 = vld [vmem:[%s25 + $0x1c] sm:$0xf]
          %v4459 = vld [vmem:[%s26] sm:$0x1]
          %v4461 = vlaneseq
          %v4462 = vshrl.u32 %v4461, 7
          %v4463 = vsub.s32 0, %v4462
          %v4464 = vrot.slane %v4459, %v4463
          %v4474 = vunpack.c.l.b16 %v4451
          %v4475 = vunpack.c.l.b16 %v4452
          %v4476 = vunpack.c.l.b16 %v4453
          %v4477 = vunpack.c.l.b16 %v4454
          %v4478 = vunpack.c.l.b16 %v4455
          %v4479 = vunpack.c.l.b16 %v4456
          %v4480 = vunpack.c.l.b16 %v4457
          %v4481 = vunpack.c.l.b16 %v4458
          %v4482 = vpack.c.b16 %v4475, %v4474
          %v4483 = vpack.c.b16 %v4477, %v4476
          %v4484 = vpack.c.b16 %v4479, %v4478
          %v4485 = vpack.c.b16 %v4481, %v4480
          %v4491 = vsel %vm3382, %v4450, 0
          %4493 = vmatprep.subr.bf16.mxu0 0
          %4494 = vmatpush1.bf16.msra.mxu0 0
          %4495 = vmatprep.subr.bf16.mxu0 0
          %4496 = vmatpush1.bf16.msra.mxu0 0
          %4497 = vmatprep.subr.bf16.mxu0 0
          %4498 = vmatpush1.bf16.msra.mxu0 0
          %4499 = vmatprep.subr.bf16.mxu0 0
          %4500 = vmatpush1.bf16.msra.mxu0 0
          %4501 = vmatprep.subr.bf16.mxu0 0
          %4502 = vmatpush1.bf16.msra.mxu0 %v4485
          %4503 = vmatprep.subr.bf16.mxu0 0
          %4504 = vmatpush1.bf16.msra.mxu0 %v4484
          %4505 = vmatprep.subr.bf16.mxu0 0
          %4506 = vmatpush1.bf16.msra.mxu0 %v4483
          %4507 = vmatprep.subr.bf16.mxu0 0
          %4508 = vmatpush1.bf16.msra.mxu0 %v4482
          %4509 = vmatprep.subr.bf16.mxu0 0
          %4510 = vmatpush2.bf16.msra.mxu0 0
          %4511 = vmatprep.subr.bf16.mxu0 0
          %4512 = vmatpush2.bf16.msra.mxu0 0
          %4513 = vmatprep.subr.bf16.mxu0 0
          %4514 = vmatpush2.bf16.msra.mxu0 0
          %4515 = vmatprep.subr.bf16.mxu0 0
          %4516 = vmatpush2.bf16.msra.mxu0 0
          %4517 = vmatprep.subr.bf16.mxu0 0
          %4518 = vmatpush2.bf16.msra.mxu0 0
          %4519 = vmatprep.subr.bf16.mxu0 0
          %4520 = vmatpush2.bf16.msra.mxu0 0
          %4521 = vmatprep.subr.bf16.mxu0 0
          %4522 = vmatpush2.bf16.msra.mxu0 0
          %4523 = vmatprep.subr.bf16.mxu0 0
          %4524 = vmatpush2.bf16.msra.mxu0 0
          %4525 = vmatprep.mubr.bf16.mxu0 0
          %4526 = vmatmul.mubr.bf16.gmra.mxu0 %v4491
          %v4527 = vpop.f32.mrf.mxu0
          %v4528 = vadd.f32 %v4464, %v4527
          %v4529 = vpop.f32.mrf.mxu0
          %v4530 = vpop.f32.mrf.mxu0
          %v4531 = vpop.f32.mrf.mxu0
          %4532 = vdwg.mxu0
          %4533 = vst [vmem:[#allocation9] sm:$0x3] %v4528
        $region152: #{forward.1} parent=127 // pred_fallthru
          _
        // Predicated region
        $region153: #{forward.1} parent=127 // pred_check
          %p4534 = pneg %p685
        $region154: #{forward.1} parent=127 // pred_check_branch
          %4536 = sbr.rel (%p4534) target = $region156
        $region155: #{forward.1} parent=127 // pred_region
          %s4538 = ssub.s32 32, 32
          %4539 = vsyncadd [#allocation5], %s4538
          %s4541 = sshll.u32 [#allocation9], 4
          %s4542 = int_to_ptr.vmem [resolvable:$true] %s4541
          %4544 = dma.vmem_to_hbm [thread:$0]  %s4542, 32, %s27, [#allocation5]
        $region156: #{forward.1} parent=127 // pred_fallthru
          _
        // Predicated region
        $region157: #{forward.1} parent=127 // pred_check
          %p4545 = pneg %p685
        $region158: #{forward.1} parent=127 // pred_check_branch
          %4547 = sbr.rel (%p4545) target = $region160
        $region159: #{forward.1} parent=127 // pred_region
          %4548 = dma.done [#allocation5], 32
        $region160: #{forward.1} parent=127 // pred_fallthru
          _
      $region128: #{forward.1} parent=5 // pred_fallthru
        _
      %p4549 = scmp.le.s32.totalorder 2, %s40
      // Predicated region
      $region161: #{forward.1} parent=5 // pred_check
        %p4550 = pneg %p4549
      $region162: #{forward.1} parent=5 // pred_check_branch
        %4552 = sbr.rel (%p4550) target = $region164
      $region163: #{forward.1} parent=5 // pred_region
        %s4553 = ssub.s32 %s40, 2
      $region164: #{forward.1} parent=5 // pred_fallthru
        _
    $region6: #{forward.1} parent=1 // loop_footer
      %s44 = sadd.s32 1, %s40
    $region7: #{forward.1} parent=1 // loop_footer_branch
      %39 = sbr.rel target = $region3
    $region8: #{forward.1} parent=1 // loop_exit
      _
    %4554 = vsyncpa [#allocation4], 1
    %s4555 = scalar_lea.sflag [#allocation4], 1
    %4556 = vsyncpa %s4555, 1
    %4557 = vsyncpa [#allocation7], 1
    %s4558 = scalar_lea.sflag [#allocation7], 1
    %4559 = vsyncpa %s4558, 1
    %4560 = vsyncpa [#allocation5], 1
    %s4561 = scalar_lea.sflag [#allocation5], 1
    %4562 = vsyncpa %s4561, 1

</llo_original>
